<compile_context>
chip_gen: v5e
topology: v5e:2x2
jax: 0.10.0
libtpu: 0.0.40
codegen_flags: <defaults>
</compile_context>

<pallas_src>
import jax
import jax.numpy as jnp
from jax.experimental import pallas as pl
from jax.experimental.pallas import tpu as pltpu


_VMEM_SPEC = pl.BlockSpec(memory_space=pltpu.MemorySpace.VMEM)


# ----------------------------- Pallas kernels ----------------------------- #

def _conv_gemm_kernel(w_ref, p_ref, b_ref, o_ref):
    """(OC, K)bf16 @ (K, Mp)bf16 -> f32 acc, + bias, ReLU, store bf16.

    Mp is a multiple of 128, so the output store is lane-dense.
    """
    acc = jnp.dot(w_ref[...], p_ref[...], preferred_element_type=jnp.float32)
    acc = acc + b_ref[...]                     # (OC, 1) f32 broadcasts over lanes
    o_ref[...] = jnp.maximum(acc, 0.0).astype(o_ref.dtype)


def _mlp_kernel(x_ref, w1_ref, b1_ref, w2_ref, b2_ref, o_ref):
    """Fused fc1 (ReLU) + fc2.  x and fc1_w are bf16 -> MXU directly, f32 acc."""
    h = jnp.dot(x_ref[...], w1_ref[...],
                preferred_element_type=jnp.float32) + b1_ref[...]
    h = jnp.maximum(h, 0.0)                    # (B, 512) f32, stays in VMEM
    o = jnp.dot(h, w2_ref[...],
                preferred_element_type=jnp.float32) + b2_ref[...]
    o_ref[...] = o.astype(o_ref.dtype)         # (B, 128) lane-dense (padded fc2)


# ------------------------------ Pallas calls ------------------------------ #

def _conv_gemm(w_mat, patches, b_col):
    OC, Kp = w_mat.shape
    Kp2, Mp = patches.shape
    assert Kp == Kp2, (Kp, Kp2)
    return pl.pallas_call(
        _conv_gemm_kernel,
        out_shape=jax.ShapeDtypeStruct((OC, Mp), jnp.bfloat16),
        in_specs=[_VMEM_SPEC, _VMEM_SPEC, _VMEM_SPEC],
        out_specs=_VMEM_SPEC,
    )(w_mat, patches, b_col)


def _mlp(x_flat, w1, b1, w2, b2):
    B = x_flat.shape[0]
    Np = w2.shape[1]
    return pl.pallas_call(
        _mlp_kernel,
        out_shape=jax.ShapeDtypeStruct((B, Np), jnp.float32),
        in_specs=[_VMEM_SPEC] * 5,
        out_specs=_VMEM_SPEC,
    )(x_flat, w1, b1, w2, b2)


# ------------------------------ conv helpers ------------------------------ #

def _im2col_T(a_cbhw, ksize=3, stride=2):
    """Patch matrix (C*k*k, B*OH*OW) from a (C, B, H, W) activation (bf16).

    Row ordering (c, kh, kw) matches PyTorch Conv2d weight.reshape(OC, -1);
    column ordering is (b, oh, ow).  Only strided slices + stack/reshape.
    """
    C, B, H, W = a_cbhw.shape
    OH = (H - ksize) // stride + 1
    OW = (W - ksize) // stride + 1
    cols = []
    for kh in range(ksize):
        for kw in range(ksize):
            cols.append(
                a_cbhw[:, :,
                       kh:kh + stride * (OH - 1) + 1:stride,
                       kw:kw + stride * (OW - 1) + 1:stride])    # (C, B, OH, OW)
    p = jnp.stack(cols, axis=1)                                  # (C, k*k, B, OH, OW)
    return p.reshape(C * ksize * ksize, B * OH * OW), OH, OW


def _conv_layer(a_cbhw, w_mat, b_col, ksize=3, stride=2):
    """Conv2d(valid, stride=2) + ReLU; (C, B, H, W) bf16 in / out."""
    OC, Kp = w_mat.shape
    patches, OH, OW = _im2col_T(a_cbhw, ksize, stride)           # (K, M) bf16
    K, M = patches.shape
    pad_k = Kp - K                  # weight K was padded to a sublane multiple
    pad_m = (-M) % 128              # lane-dense output store
    if pad_k or pad_m:
        patches = jnp.pad(patches, ((0, pad_k), (0, pad_m)))
    out = _conv_gemm(w_mat, patches, b_col)                      # (OC, Mp) bf16
    B = a_cbhw.shape[1]
    return out[:, :M].reshape(OC, B, OH, OW)


# ------------------------------ full forward ------------------------------ #

def flappy_bird_cnn(kp, x_nchw):
    """Forward pass. x_nchw: (B, 3, 55, 55) float32, PyTorch NCHW convention."""
    # (C, B, H, W) bf16 once; every conv then emits its output in this layout.
    a = jnp.transpose(x_nchw, (1, 0, 2, 3)).astype(jnp.bfloat16)
    a = _conv_layer(a, kp["conv1_w"], kp["conv1_b"])   # (32, B, 27, 27)
    a = _conv_layer(a, kp["conv2_w"], kp["conv2_b"])   # (64, B, 13, 13)
    a = _conv_layer(a, kp["conv3_w"], kp["conv3_b"])   # (64, B, 6, 6)
    B = x_nchw.shape[0]
    # torch's x.view(B, -1) flattens (C, H, W) per batch element (18 KB glue).
    x_flat = jnp.transpose(a, (1, 0, 2, 3)).reshape(B, -1)       # (B, 2304) bf16
    out = _mlp(x_flat, kp["fc1_w"], kp["fc1_b"], kp["fc2_w"], kp["fc2_b"])
    return out[:, :2]                                            # drop fc2 padding


# ------------------------------ parameters -------------------------------- #

def init_params(key):
    """Random params in PyTorch layouts: Conv2d (OC,IC,KH,KW), Linear (out,in)."""
    ks = jax.random.split(key, 5)

    def w(k, shape, fan_in):
        return jax.random.normal(k, shape, jnp.float32) * jnp.sqrt(2.0 / fan_in)

    return {
        "conv1_w": w(ks[0], (32, 3, 3, 3), 3 * 9),
        "conv1_b": jnp.zeros((32,), jnp.float32),
        "conv2_w": w(ks[1], (64, 32, 3, 3), 32 * 9),
        "conv2_b": jnp.zeros((64,), jnp.float32),
        "conv3_w": w(ks[2], (64, 64, 3, 3), 64 * 9),
        "conv3_b": jnp.zeros((64,), jnp.float32),
        "fc1_w": w(ks[3], (512, 64 * 6 * 6), 64 * 6 * 6),   # (out, in)
        "fc1_b": jnp.zeros((512,), jnp.float32),
        "fc2_w": w(ks[4], (2, 512), 512),                   # (out, in)
        "fc2_b": jnp.zeros((2,), jnp.float32),
    }


def prepare_params(p):
    """Convert PyTorch-layout params to kernel-friendly layouts (done once).

    bf16 weights are an intentional (inference-grade) precision reduction vs.
    the f32 torch reference; matmuls still accumulate in f32.
    """
    def prep_conv(w, b):
        w_mat = w.reshape(w.shape[0], -1)                       # (OC, IC*KH*KW)
        pad = (-w_mat.shape[1]) % 8                             # sublane-pad K
        if pad:
            w_mat = jnp.pad(w_mat, ((0, 0), (0, pad)))
        return w_mat.astype(jnp.bfloat16), b.reshape(-1, 1).astype(jnp.float32)

    c1w, c1b = prep_conv(p["conv1_w"], p["conv1_b"])
    c2w, c2b = prep_conv(p["conv2_w"], p["conv2_b"])
    c3w, c3b = prep_conv(p["conv3_w"], p["conv3_b"])

    # fc2 padded from 2 to 128 output features -> lane-dense final store;
    # kept f32 (tiny) so the fc2 matmul runs on the f32 hidden activation.
    fc2_w = jnp.pad(p["fc2_w"].T, ((0, 0), (0, 126))).astype(jnp.float32)
    fc2_b = jnp.pad(p["fc2_b"], (0, 126)).reshape(1, -1).astype(jnp.float32)

    return {
        "conv1_w": c1w, "conv1_b": c1b,
        "conv2_w": c2w, "conv2_b": c2b,
        "conv3_w": c3w, "conv3_b": c3b,
        # fc1 weight: largest HBM transfer of the forward -> bf16, fed to the
        # MXU as-is (no in-kernel upcast).
        "fc1_w": p["fc1_w"].T.astype(jnp.bfloat16),             # (2304, 512)
        "fc1_b": p["fc1_b"].reshape(1, -1).astype(jnp.float32),
        "fc2_w": fc2_w,                                         # (512, 128)
        "fc2_b": fc2_b,                                         # (1, 128)
    }


if __name__ == "__main__":
    key = jax.random.PRNGKey(0)
    pkey, xkey = jax.random.split(key)
    params = init_params(pkey)          # PyTorch-layout params (checkpoint-like)
    kp = prepare_params(params)         # one-time conversion for the kernels
    # 55x55 input -> 27 -> 13 -> 6 spatial, matching fc1's 64*6*6 = 2304 inputs.
    x = jax.random.normal(xkey, (2, 3, 55, 55), jnp.float32)
    out = jax.jit(flappy_bird_cnn)(kp, x)
    out = jax.block_until_ready(out)
    assert out.shape == (2, 2) and out.dtype == jnp.float32
    print("KERNEL_OK")
</pallas_src>

<mosaic_0001>
module attributes {stable_mosaic.version = 11 : i64} {
  func.func @_conv_gemm_kernel(%arg0: memref<32x32xbf16, #tpu.memory_space<vmem>>, %arg1: memref<32x1536xbf16, #tpu.memory_space<vmem>>, %arg2: memref<32x1xf32, #tpu.memory_space<vmem>>, %arg3: memref<32x1536xbf16, #tpu.memory_space<vmem>>) attributes {dimension_semantics = [], scalar_prefetch = 0 : i64, scratch_operands = 0 : i64, tpu.core_type = #tpu.core_type<tc>} {
    %c0 = arith.constant 0 : index
    %c0_0 = arith.constant 0 : index
    %0 = vector.load %arg0[%c0, %c0_0] : memref<32x32xbf16, #tpu.memory_space<vmem>>, vector<32x32xbf16>
    %c0_1 = arith.constant 0 : index
    %c0_2 = arith.constant 0 : index
    %1 = vector.load %arg1[%c0_1, %c0_2] : memref<32x1536xbf16, #tpu.memory_space<vmem>>, vector<32x1536xbf16>
    %cst = arith.constant dense<0.000000e+00> : vector<32x1536xf32>
    %2 = tpu.matmul %0, %1, %cst {dimension_numbers = #tpu.dot_dimension_numbers<[1], [0], [0], [1], [0, 0, 1, 1], [], []>} : vector<32x32xbf16>, vector<32x1536xbf16>, vector<32x1536xf32> -> vector<32x1536xf32>
    %c0_3 = arith.constant 0 : index
    %c0_4 = arith.constant 0 : index
    %3 = vector.load %arg2[%c0_3, %c0_4] : memref<32x1xf32, #tpu.memory_space<vmem>>, vector<32x1xf32>
    %4 = vector.broadcast %3 : vector<32x1xf32> to vector<32x1536xf32>
    %5 = arith.addf %2, %4 : vector<32x1536xf32>
    %cst_5 = arith.constant 0.000000e+00 : f32
    %6 = vector.broadcast %cst_5 : f32 to vector<32x1536xf32>
    %7 = arith.maximumf %5, %6 : vector<32x1536xf32>
    %8 = arith.truncf %7 : vector<32x1536xf32> to vector<32x1536xbf16>
    %c0_6 = arith.constant 0 : index
    %c0_7 = arith.constant 0 : index
    %9 = vector.load %arg3[%c0_6, %c0_7] : memref<32x1536xbf16, #tpu.memory_space<vmem>>, vector<32x1536xbf16>
    tpu.vector_store %arg3[%c0_6, %c0_7], %8 {strides = array<i32>} : memref<32x1536xbf16, #tpu.memory_space<vmem>>, vector<32x1536xbf16>,
    return
  }
}

module attributes {stable_mosaic.version = 11 : i64} {
  func.func @_conv_gemm_kernel(%arg0: memref<64x288xbf16, #tpu.memory_space<vmem>>, %arg1: memref<288x384xbf16, #tpu.memory_space<vmem>>, %arg2: memref<64x1xf32, #tpu.memory_space<vmem>>, %arg3: memref<64x384xbf16, #tpu.memory_space<vmem>>) attributes {dimension_semantics = [], scalar_prefetch = 0 : i64, scratch_operands = 0 : i64, tpu.core_type = #tpu.core_type<tc>} {
    %c0 = arith.constant 0 : index
    %c0_0 = arith.constant 0 : index
    %0 = vector.load %arg0[%c0, %c0_0] : memref<64x288xbf16, #tpu.memory_space<vmem>>, vector<64x288xbf16>
    %c0_1 = arith.constant 0 : index
    %c0_2 = arith.constant 0 : index
    %1 = vector.load %arg1[%c0_1, %c0_2] : memref<288x384xbf16, #tpu.memory_space<vmem>>, vector<288x384xbf16>
    %cst = arith.constant dense<0.000000e+00> : vector<64x384xf32>
    %2 = tpu.matmul %0, %1, %cst {dimension_numbers = #tpu.dot_dimension_numbers<[1], [0], [0], [1], [0, 0, 1, 1], [], []>} : vector<64x288xbf16>, vector<288x384xbf16>, vector<64x384xf32> -> vector<64x384xf32>
    %c0_3 = arith.constant 0 : index
    %c0_4 = arith.constant 0 : index
    %3 = vector.load %arg2[%c0_3, %c0_4] : memref<64x1xf32, #tpu.memory_space<vmem>>, vector<64x1xf32>
    %4 = vector.broadcast %3 : vector<64x1xf32> to vector<64x384xf32>
    %5 = arith.addf %2, %4 : vector<64x384xf32>
    %cst_5 = arith.constant 0.000000e+00 : f32
    %6 = vector.broadcast %cst_5 : f32 to vector<64x384xf32>
    %7 = arith.maximumf %5, %6 : vector<64x384xf32>
    %8 = arith.truncf %7 : vector<64x384xf32> to vector<64x384xbf16>
    %c0_6 = arith.constant 0 : index
    %c0_7 = arith.constant 0 : index
    %9 = vector.load %arg3[%c0_6, %c0_7] : memref<64x384xbf16, #tpu.memory_space<vmem>>, vector<64x384xbf16>
    tpu.vector_store %arg3[%c0_6, %c0_7], %8 {strides = array<i32>} : memref<64x384xbf16, #tpu.memory_space<vmem>>, vector<64x384xbf16>,
    return
  }
}

module attributes {stable_mosaic.version = 11 : i64} {
  func.func @_conv_gemm_kernel(%arg0: memref<64x576xbf16, #tpu.memory_space<vmem>>, %arg1: memref<576x128xbf16, #tpu.memory_space<vmem>>, %arg2: memref<64x1xf32, #tpu.memory_space<vmem>>, %arg3: memref<64x128xbf16, #tpu.memory_space<vmem>>) attributes {dimension_semantics = [], scalar_prefetch = 0 : i64, scratch_operands = 0 : i64, tpu.core_type = #tpu.core_type<tc>} {
    %c0 = arith.constant 0 : index
    %c0_0 = arith.constant 0 : index
    %0 = vector.load %arg0[%c0, %c0_0] : memref<64x576xbf16, #tpu.memory_space<vmem>>, vector<64x576xbf16>
    %c0_1 = arith.constant 0 : index
    %c0_2 = arith.constant 0 : index
    %1 = vector.load %arg1[%c0_1, %c0_2] : memref<576x128xbf16, #tpu.memory_space<vmem>>, vector<576x128xbf16>
    %cst = arith.constant dense<0.000000e+00> : vector<64x128xf32>
    %2 = tpu.matmul %0, %1, %cst {dimension_numbers = #tpu.dot_dimension_numbers<[1], [0], [0], [1], [0, 0, 1, 1], [], []>} : vector<64x576xbf16>, vector<576x128xbf16>, vector<64x128xf32> -> vector<64x128xf32>
    %c0_3 = arith.constant 0 : index
    %c0_4 = arith.constant 0 : index
    %3 = vector.load %arg2[%c0_3, %c0_4] : memref<64x1xf32, #tpu.memory_space<vmem>>, vector<64x1xf32>
    %4 = vector.broadcast %3 : vector<64x1xf32> to vector<64x128xf32>
    %5 = arith.addf %2, %4 : vector<64x128xf32>
    %cst_5 = arith.constant 0.000000e+00 : f32
    %6 = vector.broadcast %cst_5 : f32 to vector<64x128xf32>
    %7 = arith.maximumf %5, %6 : vector<64x128xf32>
    %8 = arith.truncf %7 : vector<64x128xf32> to vector<64x128xbf16>
    %c0_6 = arith.constant 0 : index
    %c0_7 = arith.constant 0 : index
    %9 = vector.load %arg3[%c0_6, %c0_7] : memref<64x128xbf16, #tpu.memory_space<vmem>>, vector<64x128xbf16>
    tpu.vector_store %arg3[%c0_6, %c0_7], %8 {strides = array<i32>} : memref<64x128xbf16, #tpu.memory_space<vmem>>, vector<64x128xbf16>,
    return
  }
}

module attributes {stable_mosaic.version = 11 : i64} {
  func.func @_mlp_kernel(%arg0: memref<2x2304xbf16, #tpu.memory_space<vmem>>, %arg1: memref<2304x512xbf16, #tpu.memory_space<vmem>>, %arg2: memref<1x512xf32, #tpu.memory_space<vmem>>, %arg3: memref<512x128xf32, #tpu.memory_space<vmem>>, %arg4: memref<1x128xf32, #tpu.memory_space<vmem>>, %arg5: memref<2x128xf32, #tpu.memory_space<vmem>>) attributes {dimension_semantics = [], scalar_prefetch = 0 : i64, scratch_operands = 0 : i64, tpu.core_type = #tpu.core_type<tc>} {
    %c0 = arith.constant 0 : index
    %c0_0 = arith.constant 0 : index
    %0 = vector.load %arg0[%c0, %c0_0] : memref<2x2304xbf16, #tpu.memory_space<vmem>>, vector<2x2304xbf16>
    %c0_1 = arith.constant 0 : index
    %c0_2 = arith.constant 0 : index
    %1 = vector.load %arg1[%c0_1, %c0_2] : memref<2304x512xbf16, #tpu.memory_space<vmem>>, vector<2304x512xbf16>
    %cst = arith.constant dense<0.000000e+00> : vector<2x512xf32>
    %2 = tpu.matmul %0, %1, %cst {dimension_numbers = #tpu.dot_dimension_numbers<[1], [0], [0], [1], [0, 0, 1, 1], [], []>} : vector<2x2304xbf16>, vector<2304x512xbf16>, vector<2x512xf32> -> vector<2x512xf32>
    %c0_3 = arith.constant 0 : index
    %c0_4 = arith.constant 0 : index
    %3 = vector.load %arg2[%c0_3, %c0_4] : memref<1x512xf32, #tpu.memory_space<vmem>>, vector<1x512xf32>
    %4 = vector.broadcast %3 : vector<1x512xf32> to vector<2x512xf32>
    %5 = arith.addf %2, %4 : vector<2x512xf32>
    %cst_5 = arith.constant 0.000000e+00 : f32
    %6 = vector.broadcast %cst_5 : f32 to vector<2x512xf32>
    %7 = arith.maximumf %5, %6 : vector<2x512xf32>
    %c0_6 = arith.constant 0 : index
    %c0_7 = arith.constant 0 : index
    %8 = vector.load %arg3[%c0_6, %c0_7] : memref<512x128xf32, #tpu.memory_space<vmem>>, vector<512x128xf32>
    %cst_8 = arith.constant dense<0.000000e+00> : vector<2x128xf32>
    %9 = tpu.matmul %7, %8, %cst_8 {dimension_numbers = #tpu.dot_dimension_numbers<[1], [0], [0], [1], [0, 0, 1, 1], [], []>} : vector<2x512xf32>, vector<512x128xf32>, vector<2x128xf32> -> vector<2x128xf32>
    %c0_9 = arith.constant 0 : index
    %c0_10 = arith.constant 0 : index
    %10 = vector.load %arg4[%c0_9, %c0_10] : memref<1x128xf32, #tpu.memory_space<vmem>>, vector<1x128xf32>
    %11 = vector.broadcast %10 : vector<1x128xf32> to vector<2x128xf32>
    %12 = arith.addf %9, %11 : vector<2x128xf32>
    %c0_11 = arith.constant 0 : index
    %c0_12 = arith.constant 0 : index
    %13 = vector.load %arg5[%c0_11, %c0_12] : memref<2x128xf32, #tpu.memory_space<vmem>>, vector<2x128xf32>
    tpu.vector_store %arg5[%c0_11, %c0_12], %12 {strides = array<i32>} : memref<2x128xf32, #tpu.memory_space<vmem>>, vector<2x128xf32>,
    return
  }
}

</mosaic_0001>

<llo_original>
// kernel: flappy_bird_cnn.4
$region0: #{flappy_bird_cnn.4}
  #allocation0 [shape = 'u32[]', space=smem, size = 0x4, offset = 0x4, fixed_abs, tag = 'smem constant byte address 0x4 - core index']
  #allocation1 [shape = 'u32[72,128]{1,0:T(1,128)}', space=vmem, size = 0x9000, scoped, tag = 'internal scratch']
  %s0 = inlined_call_operand.vmem [shape: bf16[32,32], index: 0, kind: input, shape index: {}]
  %s1 = inlined_call_operand.vmem [shape: bf16[32,1536], index: 1, kind: input, shape index: {}]
  %s2 = inlined_call_operand.vmem [shape: f32[32,1], index: 2, kind: input, shape index: {}]
  %s3 = inlined_call_operand.vmem [shape: bf16[32,1536], index: 3, kind: output, shape index: {}]
  %s4 = sld [smem:[#allocation0]]
  $region22: #{flappy_bird_cnn.4} parent=0
    _
  %s6 = ssub.s32 1, %s4
  %s7 = scalar_select 0, %s6, %s4
  // Predicated region
  $region2: #{flappy_bird_cnn.4} parent=0 // pred_check
    _
  $region3: #{flappy_bird_cnn.4} parent=0 // pred_check_branch
    %9 = sbr.rel (0) target = $region5
  $region4: #{flappy_bird_cnn.4} parent=0 // pred_region
    _
  $region5: #{flappy_bird_cnn.4} parent=0 // pred_fallthru
    _
  // Predicated region
  $region6: #{flappy_bird_cnn.4} parent=0 // pred_check
    _
  $region7: #{flappy_bird_cnn.4} parent=0 // pred_check_branch
    %11 = sbr.rel (0) target = $region9
  $region8: #{flappy_bird_cnn.4} parent=0 // pred_region
    _
  $region9: #{flappy_bird_cnn.4} parent=0 // pred_fallthru
    _
  // Predicated region
  $region10: #{flappy_bird_cnn.4} parent=0 // pred_check
    _
  $region11: #{flappy_bird_cnn.4} parent=0 // pred_check_branch
    %13 = sbr.rel (0) target = $region13
  $region12: #{flappy_bird_cnn.4} parent=0 // pred_region
    _
  $region13: #{flappy_bird_cnn.4} parent=0 // pred_fallthru
    _
  %v15 = vld [vmem:[%s0] sm:$0xf]
  %v16 = vld [vmem:[%s0 + $0x4] sm:$0xf]
  %v17 = vld [vmem:[%s0 + $0x8] sm:$0xf]
  %v18 = vld [vmem:[%s0 + $0xc] sm:$0xf]
  %v19 = vld [vmem:[%s1] sm:$0xff]
  %v20 = vld [vmem:[%s1 + $0x8] sm:$0xff]
  %v21 = vld [vmem:[%s1 + $0x10] sm:$0xff]
  %v22 = vld [vmem:[%s1 + $0x18] sm:$0xff]
  %v23 = vld [vmem:[%s1 + $0x20] sm:$0xff]
  %v24 = vld [vmem:[%s1 + $0x28] sm:$0xff]
  %v25 = vld [vmem:[%s1 + $0x30] sm:$0xff]
  %v26 = vld [vmem:[%s1 + $0x38] sm:$0xff]
  %v27 = vld [vmem:[%s1 + $0x40] sm:$0xff]
  %v28 = vld [vmem:[%s1 + $0x48] sm:$0xff]
  %v29 = vld [vmem:[%s1 + $0x50] sm:$0xff]
  %v30 = vld [vmem:[%s1 + $0x58] sm:$0xff]
  %v31 = vld [vmem:[%s1 + $0x60] sm:$0xff]
  %v32 = vld [vmem:[%s1 + $0x68] sm:$0xff]
  %v33 = vld [vmem:[%s1 + $0x70] sm:$0xff]
  %v34 = vld [vmem:[%s1 + $0x78] sm:$0xff]
  %v35 = vld [vmem:[%s1 + $0x80] sm:$0xff]
  %v36 = vld [vmem:[%s1 + $0x88] sm:$0xff]
  %v37 = vld [vmem:[%s1 + $0x90] sm:$0xff]
  %v38 = vld [vmem:[%s1 + $0x98] sm:$0xff]
  %v39 = vld [vmem:[%s1 + $0xa0] sm:$0xff]
  %v40 = vld [vmem:[%s1 + $0xa8] sm:$0xff]
  %v41 = vld [vmem:[%s1 + $0xb0] sm:$0xff]
  %v42 = vld [vmem:[%s1 + $0xb8] sm:$0xff]
  %v43 = vld [vmem:[%s2] sm:$0xff]
  %v44 = vld [vmem:[%s2 + $0x8] sm:$0xff]
  %v45 = vld [vmem:[%s2 + $0x10] sm:$0xff]
  %v46 = vld [vmem:[%s2 + $0x18] sm:$0xff]
  %48 = vset.pattern.permute.xlu0 0
  %49 = vperm.xlu0 %48, %v43
  %v50 = vpop.permute.xlu0 %49
  %53 = vset.pattern.permute.xlu0 0
  %54 = vperm.xlu0 %53, %v44
  %v55 = vpop.permute.xlu0 %54
  %58 = vset.pattern.permute.xlu0 0
  %59 = vperm.xlu0 %58, %v45
  %v60 = vpop.permute.xlu0 %59
  %63 = vset.pattern.permute.xlu0 0
  %64 = vperm.xlu0 %63, %v46
  %v65 = vpop.permute.xlu0 %64
  %v71 = vunpack.c.l.b16 %v15
  %v72 = vunpack.c.l.b16 %v16
  %v73 = vunpack.c.l.b16 %v17
  %v74 = vunpack.c.l.b16 %v18
  %v75 = vpack.c.b16 %v72, %v71
  %v76 = vpack.c.b16 %v74, %v73
  %v101 = vunpack.c.l.b16 %v19
  %v102 = vunpack.c.h.b16 %v19
  %v103 = vunpack.c.l.b16 %v20
  %v104 = vunpack.c.h.b16 %v20
  %v105 = vunpack.c.l.b16 %v21
  %v106 = vunpack.c.h.b16 %v21
  %v107 = vunpack.c.l.b16 %v22
  %v108 = vunpack.c.h.b16 %v22
  %v109 = vunpack.c.l.b16 %v23
  %v110 = vunpack.c.h.b16 %v23
  %v111 = vunpack.c.l.b16 %v24
  %v112 = vunpack.c.h.b16 %v24
  %v113 = vunpack.c.l.b16 %v25
  %v114 = vunpack.c.h.b16 %v25
  %v115 = vunpack.c.l.b16 %v26
  %v116 = vunpack.c.h.b16 %v26
  %v117 = vunpack.c.l.b16 %v27
  %v118 = vunpack.c.h.b16 %v27
  %v119 = vunpack.c.l.b16 %v28
  %v120 = vunpack.c.h.b16 %v28
  %v121 = vunpack.c.l.b16 %v29
  %v122 = vunpack.c.h.b16 %v29
  %v123 = vunpack.c.l.b16 %v30
  %v124 = vunpack.c.h.b16 %v30
  %v125 = vunpack.c.l.b16 %v31
  %v126 = vunpack.c.h.b16 %v31
  %v127 = vunpack.c.l.b16 %v32
  %v128 = vunpack.c.h.b16 %v32
  %v129 = vunpack.c.l.b16 %v33
  %v130 = vunpack.c.h.b16 %v33
  %v131 = vunpack.c.l.b16 %v34
  %v132 = vunpack.c.h.b16 %v34
  %v133 = vunpack.c.l.b16 %v35
  %v134 = vunpack.c.h.b16 %v35
  %v135 = vunpack.c.l.b16 %v36
  %v136 = vunpack.c.h.b16 %v36
  %v137 = vunpack.c.l.b16 %v37
  %v138 = vunpack.c.h.b16 %v37
  %v139 = vunpack.c.l.b16 %v38
  %v140 = vunpack.c.h.b16 %v38
  %v141 = vunpack.c.l.b16 %v39
  %v142 = vunpack.c.h.b16 %v39
  %v143 = vunpack.c.l.b16 %v40
  %v144 = vunpack.c.h.b16 %v40
  %v145 = vunpack.c.l.b16 %v41
  %v146 = vunpack.c.h.b16 %v41
  %v147 = vunpack.c.l.b16 %v42
  %v148 = vunpack.c.h.b16 %v42
  %v149 = vpack.c.b16 %v113, %v101
  %v150 = vpack.c.b16 %v114, %v102
  %v151 = vpack.c.b16 %v115, %v103
  %v152 = vpack.c.b16 %v116, %v104
  %v153 = vpack.c.b16 %v117, %v105
  %v154 = vpack.c.b16 %v118, %v106
  %v155 = vpack.c.b16 %v119, %v107
  %v156 = vpack.c.b16 %v120, %v108
  %v157 = vpack.c.b16 %v121, %v109
  %v158 = vpack.c.b16 %v122, %v110
  %v159 = vpack.c.b16 %v123, %v111
  %v160 = vpack.c.b16 %v124, %v112
  %v161 = vpack.c.b16 %v137, %v125
  %v162 = vpack.c.b16 %v138, %v126
  %v163 = vpack.c.b16 %v139, %v127
  %v164 = vpack.c.b16 %v140, %v128
  %v165 = vpack.c.b16 %v141, %v129
  %v166 = vpack.c.b16 %v142, %v130
  %v167 = vpack.c.b16 %v143, %v131
  %v168 = vpack.c.b16 %v144, %v132
  %v169 = vpack.c.b16 %v145, %v133
  %v170 = vpack.c.b16 %v146, %v134
  %v171 = vpack.c.b16 %v147, %v135
  %v172 = vpack.c.b16 %v148, %v136
  %vm197 = vcmask 261120
  %v199 = vsel %vm197, %v75, 0
  %v202 = vsel %vm197, %v76, 0
  %204 = vmatpush.bf16.msra.mxu0 0
  %205 = vmatpush.bf16.msra.mxu0 0
  %206 = vmatpush.bf16.msra.mxu0 0
  %207 = vmatpush.bf16.msra.mxu0 0
  %208 = vmatpush.bf16.msra.mxu0 0
  %209 = vmatpush.bf16.msra.mxu0 0
  %210 = vmatpush.bf16.msra.mxu0 %v161
  %211 = vmatpush.bf16.msra.mxu0 %v149
  %212 = vmatmul.bf16.gmra.mxu0 %v199
  %v213 = vpop.f32.mrf.mxu0
  %v214 = vadd.f32 %v50, %v213
  %v215 = vpop.f32.mrf.mxu0
  %v216 = vadd.f32 %v55, %v215
  %217 = vmatmul.bf16.gmra.mxu0 %v202
  %v218 = vpop.f32.mrf.mxu0
  %v219 = vadd.f32 %v60, %v218
  %v220 = vpop.f32.mrf.mxu0
  %v221 = vadd.f32 %v65, %v220
  %222 = vdwg.mxu0
  %223 = vmatpush.bf16.msra.mxu0 0
  %224 = vmatpush.bf16.msra.mxu0 0
  %225 = vmatpush.bf16.msra.mxu0 0
  %226 = vmatpush.bf16.msra.mxu0 0
  %227 = vmatpush.bf16.msra.mxu0 0
  %228 = vmatpush.bf16.msra.mxu0 0
  %229 = vmatpush.bf16.msra.mxu0 %v162
  %230 = vmatpush.bf16.msra.mxu0 %v150
  %231 = vmatmul.bf16.gmra.mxu0 %v199
  %v232 = vpop.f32.mrf.mxu0
  %v233 = vadd.f32 %v50, %v232
  %v234 = vpop.f32.mrf.mxu0
  %v235 = vadd.f32 %v55, %v234
  %236 = vmatmul.bf16.gmra.mxu0 %v202
  %v237 = vpop.f32.mrf.mxu0
  %v238 = vadd.f32 %v60, %v237
  %v239 = vpop.f32.mrf.mxu0
  %v240 = vadd.f32 %v65, %v239
  %241 = vdwg.mxu0
  %242 = vmatpush.bf16.msra.mxu0 0
  %243 = vmatpush.bf16.msra.mxu0 0
  %244 = vmatpush.bf16.msra.mxu0 0
  %245 = vmatpush.bf16.msra.mxu0 0
  %246 = vmatpush.bf16.msra.mxu0 0
  %247 = vmatpush.bf16.msra.mxu0 0
  %248 = vmatpush.bf16.msra.mxu0 %v163
  %249 = vmatpush.bf16.msra.mxu0 %v151
  %250 = vmatmul.bf16.gmra.mxu0 %v199
  %v251 = vpop.f32.mrf.mxu0
  %v252 = vadd.f32 %v50, %v251
  %v253 = vpop.f32.mrf.mxu0
  %v254 = vadd.f32 %v55, %v253
  %255 = vmatmul.bf16.gmra.mxu0 %v202
  %v256 = vpop.f32.mrf.mxu0
  %v257 = vadd.f32 %v60, %v256
  %v258 = vpop.f32.mrf.mxu0
  %v259 = vadd.f32 %v65, %v258
  %260 = vdwg.mxu0
  %261 = vmatpush.bf16.msra.mxu0 0
  %262 = vmatpush.bf16.msra.mxu0 0
  %263 = vmatpush.bf16.msra.mxu0 0
  %264 = vmatpush.bf16.msra.mxu0 0
  %265 = vmatpush.bf16.msra.mxu0 0
  %266 = vmatpush.bf16.msra.mxu0 0
  %267 = vmatpush.bf16.msra.mxu0 %v164
  %268 = vmatpush.bf16.msra.mxu0 %v152
  %269 = vmatmul.bf16.gmra.mxu0 %v199
  %v270 = vpop.f32.mrf.mxu0
  %v271 = vadd.f32 %v50, %v270
  %v272 = vpop.f32.mrf.mxu0
  %v273 = vadd.f32 %v55, %v272
  %274 = vmatmul.bf16.gmra.mxu0 %v202
  %v275 = vpop.f32.mrf.mxu0
  %v276 = vadd.f32 %v60, %v275
  %v277 = vpop.f32.mrf.mxu0
  %v278 = vadd.f32 %v65, %v277
  %279 = vdwg.mxu0
  %280 = vmatpush.bf16.msra.mxu0 0
  %281 = vmatpush.bf16.msra.mxu0 0
  %282 = vmatpush.bf16.msra.mxu0 0
  %283 = vmatpush.bf16.msra.mxu0 0
  %284 = vmatpush.bf16.msra.mxu0 0
  %285 = vmatpush.bf16.msra.mxu0 0
  %286 = vmatpush.bf16.msra.mxu0 %v165
  %287 = vmatpush.bf16.msra.mxu0 %v153
  %288 = vmatmul.bf16.gmra.mxu0 %v199
  %v289 = vpop.f32.mrf.mxu0
  %v290 = vadd.f32 %v50, %v289
  %v291 = vpop.f32.mrf.mxu0
  %v292 = vadd.f32 %v55, %v291
  %293 = vmatmul.bf16.gmra.mxu0 %v202
  %v294 = vpop.f32.mrf.mxu0
  %v295 = vadd.f32 %v60, %v294
  %v296 = vpop.f32.mrf.mxu0
  %v297 = vadd.f32 %v65, %v296
  %298 = vdwg.mxu0
  %299 = vmatpush.bf16.msra.mxu0 0
  %300 = vmatpush.bf16.msra.mxu0 0
  %301 = vmatpush.bf16.msra.mxu0 0
  %302 = vmatpush.bf16.msra.mxu0 0
  %303 = vmatpush.bf16.msra.mxu0 0
  %304 = vmatpush.bf16.msra.mxu0 0
  %305 = vmatpush.bf16.msra.mxu0 %v166
  %306 = vmatpush.bf16.msra.mxu0 %v154
  %307 = vmatmul.bf16.gmra.mxu0 %v199
  %v308 = vpop.f32.mrf.mxu0
  %v309 = vadd.f32 %v50, %v308
  %v310 = vpop.f32.mrf.mxu0
  %v311 = vadd.f32 %v55, %v310
  %312 = vmatmul.bf16.gmra.mxu0 %v202
  %v313 = vpop.f32.mrf.mxu0
  %v314 = vadd.f32 %v60, %v313
  %v315 = vpop.f32.mrf.mxu0
  %v316 = vadd.f32 %v65, %v315
  %317 = vdwg.mxu0
  %318 = vmatpush.bf16.msra.mxu0 0
  %319 = vmatpush.bf16.msra.mxu0 0
  %320 = vmatpush.bf16.msra.mxu0 0
  %321 = vmatpush.bf16.msra.mxu0 0
  %322 = vmatpush.bf16.msra.mxu0 0
  %323 = vmatpush.bf16.msra.mxu0 0
  %324 = vmatpush.bf16.msra.mxu0 %v167
  %325 = vmatpush.bf16.msra.mxu0 %v155
  %326 = vmatmul.bf16.gmra.mxu0 %v199
  %v327 = vpop.f32.mrf.mxu0
  %v328 = vadd.f32 %v50, %v327
  %v329 = vpop.f32.mrf.mxu0
  %v330 = vadd.f32 %v55, %v329
  %331 = vmatmul.bf16.gmra.mxu0 %v202
  %v332 = vpop.f32.mrf.mxu0
  %v333 = vadd.f32 %v60, %v332
  %v334 = vpop.f32.mrf.mxu0
  %v335 = vadd.f32 %v65, %v334
  %336 = vdwg.mxu0
  %337 = vmatpush.bf16.msra.mxu0 0
  %338 = vmatpush.bf16.msra.mxu0 0
  %339 = vmatpush.bf16.msra.mxu0 0
  %340 = vmatpush.bf16.msra.mxu0 0
  %341 = vmatpush.bf16.msra.mxu0 0
  %342 = vmatpush.bf16.msra.mxu0 0
  %343 = vmatpush.bf16.msra.mxu0 %v168
  %344 = vmatpush.bf16.msra.mxu0 %v156
  %345 = vmatmul.bf16.gmra.mxu0 %v199
  %v346 = vpop.f32.mrf.mxu0
  %v347 = vadd.f32 %v50, %v346
  %v348 = vpop.f32.mrf.mxu0
  %v349 = vadd.f32 %v55, %v348
  %350 = vmatmul.bf16.gmra.mxu0 %v202
  %v351 = vpop.f32.mrf.mxu0
  %v352 = vadd.f32 %v60, %v351
  %v353 = vpop.f32.mrf.mxu0
  %v354 = vadd.f32 %v65, %v353
  %355 = vdwg.mxu0
  %356 = vmatpush.bf16.msra.mxu0 0
  %357 = vmatpush.bf16.msra.mxu0 0
  %358 = vmatpush.bf16.msra.mxu0 0
  %359 = vmatpush.bf16.msra.mxu0 0
  %360 = vmatpush.bf16.msra.mxu0 0
  %361 = vmatpush.bf16.msra.mxu0 0
  %362 = vmatpush.bf16.msra.mxu0 %v169
  %363 = vmatpush.bf16.msra.mxu0 %v157
  %364 = vmatmul.bf16.gmra.mxu0 %v199
  %v365 = vpop.f32.mrf.mxu0
  %v366 = vadd.f32 %v50, %v365
  %v367 = vpop.f32.mrf.mxu0
  %v368 = vadd.f32 %v55, %v367
  %369 = vmatmul.bf16.gmra.mxu0 %v202
  %v370 = vpop.f32.mrf.mxu0
  %v371 = vadd.f32 %v60, %v370
  %v372 = vpop.f32.mrf.mxu0
  %v373 = vadd.f32 %v65, %v372
  %374 = vdwg.mxu0
  %375 = vmatpush.bf16.msra.mxu0 0
  %376 = vmatpush.bf16.msra.mxu0 0
  %377 = vmatpush.bf16.msra.mxu0 0
  %378 = vmatpush.bf16.msra.mxu0 0
  %379 = vmatpush.bf16.msra.mxu0 0
  %380 = vmatpush.bf16.msra.mxu0 0
  %381 = vmatpush.bf16.msra.mxu0 %v170
  %382 = vmatpush.bf16.msra.mxu0 %v158
  %383 = vmatmul.bf16.gmra.mxu0 %v199
  %v384 = vpop.f32.mrf.mxu0
  %v385 = vadd.f32 %v50, %v384
  %v386 = vpop.f32.mrf.mxu0
  %v387 = vadd.f32 %v55, %v386
  %388 = vmatmul.bf16.gmra.mxu0 %v202
  %v389 = vpop.f32.mrf.mxu0
  %v390 = vadd.f32 %v60, %v389
  %v391 = vpop.f32.mrf.mxu0
  %v392 = vadd.f32 %v65, %v391
  %393 = vdwg.mxu0
  %394 = vmatpush.bf16.msra.mxu0 0
  %395 = vmatpush.bf16.msra.mxu0 0
  %396 = vmatpush.bf16.msra.mxu0 0
  %397 = vmatpush.bf16.msra.mxu0 0
  %398 = vmatpush.bf16.msra.mxu0 0
  %399 = vmatpush.bf16.msra.mxu0 0
  %400 = vmatpush.bf16.msra.mxu0 %v171
  %401 = vmatpush.bf16.msra.mxu0 %v159
  %402 = vmatmul.bf16.gmra.mxu0 %v199
  %v403 = vpop.f32.mrf.mxu0
  %v404 = vadd.f32 %v50, %v403
  %v405 = vpop.f32.mrf.mxu0
  %v406 = vadd.f32 %v55, %v405
  %407 = vmatmul.bf16.gmra.mxu0 %v202
  %v408 = vpop.f32.mrf.mxu0
  %v409 = vadd.f32 %v60, %v408
  %v410 = vpop.f32.mrf.mxu0
  %v411 = vadd.f32 %v65, %v410
  %412 = vdwg.mxu0
  %413 = vmatpush.bf16.msra.mxu0 0
  %414 = vmatpush.bf16.msra.mxu0 0
  %415 = vmatpush.bf16.msra.mxu0 0
  %416 = vmatpush.bf16.msra.mxu0 0
  %417 = vmatpush.bf16.msra.mxu0 0
  %418 = vmatpush.bf16.msra.mxu0 0
  %419 = vmatpush.bf16.msra.mxu0 %v172
  %420 = vmatpush.bf16.msra.mxu0 %v160
  %421 = vmatmul.bf16.gmra.mxu0 %v199
  %v422 = vpop.f32.mrf.mxu0
  %v423 = vadd.f32 %v50, %v422
  %v424 = vpop.f32.mrf.mxu0
  %v425 = vadd.f32 %v55, %v424
  %426 = vmatmul.bf16.gmra.mxu0 %v202
  %v427 = vpop.f32.mrf.mxu0
  %v428 = vadd.f32 %v60, %v427
  %v429 = vpop.f32.mrf.mxu0
  %v430 = vadd.f32 %v65, %v429
  %431 = vdwg.mxu0
  %v432 = vmax.f32 %v214, 0.0
  %v433 = vmax.f32 %v233, 0.0
  %v434 = vmax.f32 %v252, 0.0
  %v435 = vmax.f32 %v271, 0.0
  %v436 = vmax.f32 %v290, 0.0
  %v437 = vmax.f32 %v309, 0.0
  %v438 = vmax.f32 %v328, 0.0
  %v439 = vmax.f32 %v347, 0.0
  %v440 = vmax.f32 %v366, 0.0
  %v441 = vmax.f32 %v385, 0.0
  %v442 = vmax.f32 %v404, 0.0
  %v443 = vmax.f32 %v423, 0.0
  %v444 = vmax.f32 %v216, 0.0
  %v445 = vmax.f32 %v235, 0.0
  %v446 = vmax.f32 %v254, 0.0
  %v447 = vmax.f32 %v273, 0.0
  %v448 = vmax.f32 %v292, 0.0
  %v449 = vmax.f32 %v311, 0.0
  %v450 = vmax.f32 %v330, 0.0
  %v451 = vmax.f32 %v349, 0.0
  %v452 = vmax.f32 %v368, 0.0
  %v453 = vmax.f32 %v387, 0.0
  %v454 = vmax.f32 %v406, 0.0
  %v455 = vmax.f32 %v425, 0.0
  %v456 = vmax.f32 %v219, 0.0
  %v457 = vmax.f32 %v238, 0.0
  %v458 = vmax.f32 %v257, 0.0
  %v459 = vmax.f32 %v276, 0.0
  %v460 = vmax.f32 %v295, 0.0
  %v461 = vmax.f32 %v314, 0.0
  %v462 = vmax.f32 %v333, 0.0
  %v463 = vmax.f32 %v352, 0.0
  %v464 = vmax.f32 %v371, 0.0
  %v465 = vmax.f32 %v390, 0.0
  %v466 = vmax.f32 %v409, 0.0
  %v467 = vmax.f32 %v428, 0.0
  %v468 = vmax.f32 %v221, 0.0
  %v469 = vmax.f32 %v240, 0.0
  %v470 = vmax.f32 %v259, 0.0
  %v471 = vmax.f32 %v278, 0.0
  %v472 = vmax.f32 %v297, 0.0
  %v473 = vmax.f32 %v316, 0.0
  %v474 = vmax.f32 %v335, 0.0
  %v475 = vmax.f32 %v354, 0.0
  %v476 = vmax.f32 %v373, 0.0
  %v477 = vmax.f32 %v392, 0.0
  %v478 = vmax.f32 %v411, 0.0
  %v479 = vmax.f32 %v430, 0.0
  %v480 = vpack.c.bf16 %v433, %v432
  %v481 = vpack.c.bf16 %v435, %v434
  %v482 = vpack.c.bf16 %v437, %v436
  %v483 = vpack.c.bf16 %v439, %v438
  %v484 = vpack.c.bf16 %v441, %v440
  %v485 = vpack.c.bf16 %v443, %v442
  %v486 = vpack.c.bf16 %v445, %v444
  %v487 = vpack.c.bf16 %v447, %v446
  %v488 = vpack.c.bf16 %v449, %v448
  %v489 = vpack.c.bf16 %v451, %v450
  %v490 = vpack.c.bf16 %v453, %v452
  %v491 = vpack.c.bf16 %v455, %v454
  %v492 = vpack.c.bf16 %v457, %v456
  %v493 = vpack.c.bf16 %v459, %v458
  %v494 = vpack.c.bf16 %v461, %v460
  %v495 = vpack.c.bf16 %v463, %v462
  %v496 = vpack.c.bf16 %v465, %v464
  %v497 = vpack.c.bf16 %v467, %v466
  %v498 = vpack.c.bf16 %v469, %v468
  %v499 = vpack.c.bf16 %v471, %v470
  %v500 = vpack.c.bf16 %v473, %v472
  %v501 = vpack.c.bf16 %v475, %v474
  %v502 = vpack.c.bf16 %v477, %v476
  %v503 = vpack.c.bf16 %v479, %v478
  %504 = vst [vmem:[%s3] sm:$0xff] %v480
  %505 = vst [vmem:[%s3 + $0x8] sm:$0xff] %v481
  %506 = vst [vmem:[%s3 + $0x10] sm:$0xff] %v482
  %507 = vst [vmem:[%s3 + $0x18] sm:$0xff] %v483
  %508 = vst [vmem:[%s3 + $0x20] sm:$0xff] %v484
  %509 = vst [vmem:[%s3 + $0x28] sm:$0xff] %v485
  %510 = vst [vmem:[%s3 + $0x30] sm:$0xff] %v486
  %511 = vst [vmem:[%s3 + $0x38] sm:$0xff] %v487
  %512 = vst [vmem:[%s3 + $0x40] sm:$0xff] %v488
  %513 = vst [vmem:[%s3 + $0x48] sm:$0xff] %v489
  %514 = vst [vmem:[%s3 + $0x50] sm:$0xff] %v490
  %515 = vst [vmem:[%s3 + $0x58] sm:$0xff] %v491
  %516 = vst [vmem:[%s3 + $0x60] sm:$0xff] %v492
  %517 = vst [vmem:[%s3 + $0x68] sm:$0xff] %v493
  %518 = vst [vmem:[%s3 + $0x70] sm:$0xff] %v494
  %519 = vst [vmem:[%s3 + $0x78] sm:$0xff] %v495
  %520 = vst [vmem:[%s3 + $0x80] sm:$0xff] %v496
  %521 = vst [vmem:[%s3 + $0x88] sm:$0xff] %v497
  %522 = vst [vmem:[%s3 + $0x90] sm:$0xff] %v498
  %523 = vst [vmem:[%s3 + $0x98] sm:$0xff] %v499
  %524 = vst [vmem:[%s3 + $0xa0] sm:$0xff] %v500
  %525 = vst [vmem:[%s3 + $0xa8] sm:$0xff] %v501
  %526 = vst [vmem:[%s3 + $0xb0] sm:$0xff] %v502
  %527 = vst [vmem:[%s3 + $0xb8] sm:$0xff] %v503
  // Predicated region
  $region14: #{flappy_bird_cnn.4} parent=0 // pred_check
    _
  $region15: #{flappy_bird_cnn.4} parent=0 // pred_check_branch
    %529 = sbr.rel (0) target = $region17
  $region16: #{flappy_bird_cnn.4} parent=0 // pred_region
    _
  $region17: #{flappy_bird_cnn.4} parent=0 // pred_fallthru
    _
  // Predicated region
  $region18: #{flappy_bird_cnn.4} parent=0 // pred_check
    _
  $region19: #{flappy_bird_cnn.4} parent=0 // pred_check_branch
    %531 = sbr.rel (0) target = $region21
  $region20: #{flappy_bird_cnn.4} parent=0 // pred_region
    _
  $region21: #{flappy_bird_cnn.4} parent=0 // pred_fallthru
    _

// kernel: flappy_bird_cnn.5
$region0: #{flappy_bird_cnn.5}
  #allocation0 [shape = 'u32[]', space=smem, size = 0x4, offset = 0x4, fixed_abs, tag = 'smem constant byte address 0x4 - core index']
  #allocation1 [shape = 'u32[72,128]{1,0:T(1,128)}', space=vmem, size = 0x9000, scoped, tag = 'internal scratch']
  %s0 = inlined_call_operand.vmem [shape: bf16[64,288], index: 0, kind: input, shape index: {}]
  %s1 = inlined_call_operand.vmem [shape: bf16[288,384], index: 1, kind: input, shape index: {}]
  %s2 = inlined_call_operand.vmem [shape: f32[64,1], index: 2, kind: input, shape index: {}]
  %s3 = inlined_call_operand.vmem [shape: bf16[64,384], index: 3, kind: output, shape index: {}]
  %s4 = sld [smem:[#allocation0]]
  $region22: #{flappy_bird_cnn.5} parent=0
    _
  %s6 = ssub.s32 1, %s4
  %s7 = scalar_select 0, %s6, %s4
  // Predicated region
  $region2: #{flappy_bird_cnn.5} parent=0 // pred_check
    _
  $region3: #{flappy_bird_cnn.5} parent=0 // pred_check_branch
    %9 = sbr.rel (0) target = $region5
  $region4: #{flappy_bird_cnn.5} parent=0 // pred_region
    _
  $region5: #{flappy_bird_cnn.5} parent=0 // pred_fallthru
    _
  // Predicated region
  $region6: #{flappy_bird_cnn.5} parent=0 // pred_check
    _
  $region7: #{flappy_bird_cnn.5} parent=0 // pred_check_branch
    %11 = sbr.rel (0) target = $region9
  $region8: #{flappy_bird_cnn.5} parent=0 // pred_region
    _
  $region9: #{flappy_bird_cnn.5} parent=0 // pred_fallthru
    _
  // Predicated region
  $region10: #{flappy_bird_cnn.5} parent=0 // pred_check
    _
  $region11: #{flappy_bird_cnn.5} parent=0 // pred_check_branch
    %13 = sbr.rel (0) target = $region13
  $region12: #{flappy_bird_cnn.5} parent=0 // pred_region
    _
  $region13: #{flappy_bird_cnn.5} parent=0 // pred_fallthru
    _
  %v15 = vld [vmem:[%s0] sm:$0xff]
  %v16 = vld [vmem:[%s0 + $0x8] sm:$0xf]
  %v17 = vld [vmem:[%s0 + $0xc] sm:$0xff]
  %v18 = vld [vmem:[%s0 + $0x14] sm:$0xf]
  %v19 = vld [vmem:[%s0 + $0x18] sm:$0xff]
  %v20 = vld [vmem:[%s0 + $0x20] sm:$0xf]
  %v21 = vld [vmem:[%s0 + $0x24] sm:$0xff]
  %v22 = vld [vmem:[%s0 + $0x2c] sm:$0xf]
  %v23 = vld [vmem:[%s0 + $0x30] sm:$0xff]
  %v24 = vld [vmem:[%s0 + $0x38] sm:$0xf]
  %v25 = vld [vmem:[%s0 + $0x3c] sm:$0xff]
  %v26 = vld [vmem:[%s0 + $0x44] sm:$0xf]
  %v27 = vld [vmem:[%s0 + $0x48] sm:$0xff]
  %v28 = vld [vmem:[%s0 + $0x50] sm:$0xf]
  %v29 = vld [vmem:[%s0 + $0x54] sm:$0xff]
  %v30 = vld [vmem:[%s0 + $0x5c] sm:$0xf]
  %v31 = vld [vmem:[%s1] sm:$0xff]
  %v32 = vld [vmem:[%s1 + $0x8] sm:$0xf]
  %v33 = vld [vmem:[%s1 + $0xc] sm:$0xff]
  %v34 = vld [vmem:[%s1 + $0x14] sm:$0xf]
  %v35 = vld [vmem:[%s1 + $0x18] sm:$0xff]
  %v36 = vld [vmem:[%s1 + $0x20] sm:$0xf]
  %v37 = vld [vmem:[%s1 + $0x24] sm:$0xff]
  %v38 = vld [vmem:[%s1 + $0x2c] sm:$0xf]
  %v39 = vld [vmem:[%s1 + $0x30] sm:$0xff]
  %v40 = vld [vmem:[%s1 + $0x38] sm:$0xf]
  %v41 = vld [vmem:[%s1 + $0x3c] sm:$0xff]
  %v42 = vld [vmem:[%s1 + $0x44] sm:$0xf]
  %v43 = vld [vmem:[%s1 + $0x48] sm:$0xff]
  %v44 = vld [vmem:[%s1 + $0x50] sm:$0xf]
  %v45 = vld [vmem:[%s1 + $0x54] sm:$0xff]
  %v46 = vld [vmem:[%s1 + $0x5c] sm:$0xf]
  %v47 = vld [vmem:[%s1 + $0x60] sm:$0xff]
  %v48 = vld [vmem:[%s1 + $0x68] sm:$0xf]
  %v49 = vld [vmem:[%s1 + $0x6c] sm:$0xff]
  %v50 = vld [vmem:[%s1 + $0x74] sm:$0xf]
  %v51 = vld [vmem:[%s1 + $0x78] sm:$0xff]
  %v52 = vld [vmem:[%s1 + $0x80] sm:$0xf]
  %v53 = vld [vmem:[%s1 + $0x84] sm:$0xff]
  %v54 = vld [vmem:[%s1 + $0x8c] sm:$0xf]
  %v55 = vld [vmem:[%s1 + $0x90] sm:$0xff]
  %v56 = vld [vmem:[%s1 + $0x98] sm:$0xf]
  %v57 = vld [vmem:[%s1 + $0x9c] sm:$0xff]
  %v58 = vld [vmem:[%s1 + $0xa4] sm:$0xf]
  %v59 = vld [vmem:[%s1 + $0xa8] sm:$0xff]
  %v60 = vld [vmem:[%s1 + $0xb0] sm:$0xf]
  %v61 = vld [vmem:[%s1 + $0xb4] sm:$0xff]
  %v62 = vld [vmem:[%s1 + $0xbc] sm:$0xf]
  %v63 = vld [vmem:[%s1 + $0xc0] sm:$0xff]
  %v64 = vld [vmem:[%s1 + $0xc8] sm:$0xf]
  %v65 = vld [vmem:[%s1 + $0xcc] sm:$0xff]
  %v66 = vld [vmem:[%s1 + $0xd4] sm:$0xf]
  %v67 = vld [vmem:[%s1 + $0xd8] sm:$0xff]
  %v68 = vld [vmem:[%s1 + $0xe0] sm:$0xf]
  %v69 = vld [vmem:[%s1 + $0xe4] sm:$0xff]
  %v70 = vld [vmem:[%s1 + $0xec] sm:$0xf]
  %v71 = vld [vmem:[%s1 + $0xf0] sm:$0xff]
  %v72 = vld [vmem:[%s1 + $0xf8] sm:$0xf]
  %v73 = vld [vmem:[%s1 + $0xfc] sm:$0xff]
  %v74 = vld [vmem:[%s1 + $0x104] sm:$0xf]
  %v75 = vld [vmem:[%s1 + $0x108] sm:$0xff]
  %v76 = vld [vmem:[%s1 + $0x110] sm:$0xf]
  %v77 = vld [vmem:[%s1 + $0x114] sm:$0xff]
  %v78 = vld [vmem:[%s1 + $0x11c] sm:$0xf]
  %v79 = vld [vmem:[%s1 + $0x120] sm:$0xff]
  %v80 = vld [vmem:[%s1 + $0x128] sm:$0xf]
  %v81 = vld [vmem:[%s1 + $0x12c] sm:$0xff]
  %v82 = vld [vmem:[%s1 + $0x134] sm:$0xf]
  %v83 = vld [vmem:[%s1 + $0x138] sm:$0xff]
  %v84 = vld [vmem:[%s1 + $0x140] sm:$0xf]
  %v85 = vld [vmem:[%s1 + $0x144] sm:$0xff]
  %v86 = vld [vmem:[%s1 + $0x14c] sm:$0xf]
  %v87 = vld [vmem:[%s1 + $0x150] sm:$0xff]
  %v88 = vld [vmem:[%s1 + $0x158] sm:$0xf]
  %v89 = vld [vmem:[%s1 + $0x15c] sm:$0xff]
  %v90 = vld [vmem:[%s1 + $0x164] sm:$0xf]
  %v91 = vld [vmem:[%s1 + $0x168] sm:$0xff]
  %v92 = vld [vmem:[%s1 + $0x170] sm:$0xf]
  %v93 = vld [vmem:[%s1 + $0x174] sm:$0xff]
  %v94 = vld [vmem:[%s1 + $0x17c] sm:$0xf]
  %v95 = vld [vmem:[%s1 + $0x180] sm:$0xff]
  %v96 = vld [vmem:[%s1 + $0x188] sm:$0xf]
  %v97 = vld [vmem:[%s1 + $0x18c] sm:$0xff]
  %v98 = vld [vmem:[%s1 + $0x194] sm:$0xf]
  %v99 = vld [vmem:[%s1 + $0x198] sm:$0xff]
  %v100 = vld [vmem:[%s1 + $0x1a0] sm:$0xf]
  %v101 = vld [vmem:[%s1 + $0x1a4] sm:$0xff]
  %v102 = vld [vmem:[%s1 + $0x1ac] sm:$0xf]
  %v103 = vld [vmem:[%s2] sm:$0xff]
  %v104 = vld [vmem:[%s2 + $0x8] sm:$0xff]
  %v105 = vld [vmem:[%s2 + $0x10] sm:$0xff]
  %v106 = vld [vmem:[%s2 + $0x18] sm:$0xff]
  %v107 = vld [vmem:[%s2 + $0x20] sm:$0xff]
  %v108 = vld [vmem:[%s2 + $0x28] sm:$0xff]
  %v109 = vld [vmem:[%s2 + $0x30] sm:$0xff]
  %v110 = vld [vmem:[%s2 + $0x38] sm:$0xff]
  %112 = vset.pattern.permute.xlu0 0
  %113 = vperm.xlu0 %112, %v103
  %v114 = vpop.permute.xlu0 %113
  %117 = vset.pattern.permute.xlu0 0
  %118 = vperm.xlu0 %117, %v104
  %v119 = vpop.permute.xlu0 %118
  %122 = vset.pattern.permute.xlu0 0
  %123 = vperm.xlu0 %122, %v105
  %v124 = vpop.permute.xlu0 %123
  %127 = vset.pattern.permute.xlu0 0
  %128 = vperm.xlu0 %127, %v106
  %v129 = vpop.permute.xlu0 %128
  %132 = vset.pattern.permute.xlu0 0
  %133 = vperm.xlu0 %132, %v107
  %v134 = vpop.permute.xlu0 %133
  %137 = vset.pattern.permute.xlu0 0
  %138 = vperm.xlu0 %137, %v108
  %v139 = vpop.permute.xlu0 %138
  %142 = vset.pattern.permute.xlu0 0
  %143 = vperm.xlu0 %142, %v109
  %v144 = vpop.permute.xlu0 %143
  %147 = vset.pattern.permute.xlu0 0
  %148 = vperm.xlu0 %147, %v110
  %v149 = vpop.permute.xlu0 %148
  %v167 = vunpack.c.l.b16 %v15
  %v168 = vunpack.c.h.b16 %v15
  %v169 = vunpack.c.l.b16 %v16
  %v170 = vunpack.c.l.b16 %v17
  %v171 = vunpack.c.h.b16 %v17
  %v172 = vunpack.c.l.b16 %v18
  %v173 = vunpack.c.l.b16 %v19
  %v174 = vunpack.c.h.b16 %v19
  %v175 = vunpack.c.l.b16 %v20
  %v176 = vunpack.c.l.b16 %v21
  %v177 = vunpack.c.h.b16 %v21
  %v178 = vunpack.c.l.b16 %v22
  %v179 = vunpack.c.l.b16 %v23
  %v180 = vunpack.c.h.b16 %v23
  %v181 = vunpack.c.l.b16 %v24
  %v182 = vunpack.c.l.b16 %v25
  %v183 = vunpack.c.h.b16 %v25
  %v184 = vunpack.c.l.b16 %v26
  %v185 = vunpack.c.l.b16 %v27
  %v186 = vunpack.c.h.b16 %v27
  %v187 = vunpack.c.l.b16 %v28
  %v188 = vunpack.c.l.b16 %v29
  %v189 = vunpack.c.h.b16 %v29
  %v190 = vunpack.c.l.b16 %v30
  %v191 = vpack.c.b16 %v170, %v167
  %v192 = vpack.c.b16 %v171, %v168
  %v193 = vpack.c.b16 %v172, %v169
  %v194 = vpack.c.b16 %v176, %v173
  %v195 = vpack.c.b16 %v177, %v174
  %v196 = vpack.c.b16 %v178, %v175
  %v197 = vpack.c.b16 %v182, %v179
  %v198 = vpack.c.b16 %v183, %v180
  %v199 = vpack.c.b16 %v184, %v181
  %v200 = vpack.c.b16 %v188, %v185
  %v201 = vpack.c.b16 %v189, %v186
  %v202 = vpack.c.b16 %v190, %v187
  %v283 = vunpack.c.l.b16 %v31
  %v284 = vunpack.c.h.b16 %v31
  %v285 = vunpack.c.l.b16 %v32
  %v286 = vunpack.c.l.b16 %v33
  %v287 = vunpack.c.h.b16 %v33
  %v288 = vunpack.c.l.b16 %v34
  %v289 = vunpack.c.l.b16 %v35
  %v290 = vunpack.c.h.b16 %v35
  %v291 = vunpack.c.l.b16 %v36
  %v292 = vunpack.c.l.b16 %v37
  %v293 = vunpack.c.h.b16 %v37
  %v294 = vunpack.c.l.b16 %v38
  %v295 = vunpack.c.l.b16 %v39
  %v296 = vunpack.c.h.b16 %v39
  %v297 = vunpack.c.l.b16 %v40
  %v298 = vunpack.c.l.b16 %v41
  %v299 = vunpack.c.h.b16 %v41
  %v300 = vunpack.c.l.b16 %v42
  %v301 = vunpack.c.l.b16 %v43
  %v302 = vunpack.c.h.b16 %v43
  %v303 = vunpack.c.l.b16 %v44
  %v304 = vunpack.c.l.b16 %v45
  %v305 = vunpack.c.h.b16 %v45
  %v306 = vunpack.c.l.b16 %v46
  %v307 = vunpack.c.l.b16 %v47
  %v308 = vunpack.c.h.b16 %v47
  %v309 = vunpack.c.l.b16 %v48
  %v310 = vunpack.c.l.b16 %v49
  %v311 = vunpack.c.h.b16 %v49
  %v312 = vunpack.c.l.b16 %v50
  %v313 = vunpack.c.l.b16 %v51
  %v314 = vunpack.c.h.b16 %v51
  %v315 = vunpack.c.l.b16 %v52
  %v316 = vunpack.c.l.b16 %v53
  %v317 = vunpack.c.h.b16 %v53
  %v318 = vunpack.c.l.b16 %v54
  %v319 = vunpack.c.l.b16 %v55
  %v320 = vunpack.c.h.b16 %v55
  %v321 = vunpack.c.l.b16 %v56
  %v322 = vunpack.c.l.b16 %v57
  %v323 = vunpack.c.h.b16 %v57
  %v324 = vunpack.c.l.b16 %v58
  %v325 = vunpack.c.l.b16 %v59
  %v326 = vunpack.c.h.b16 %v59
  %v327 = vunpack.c.l.b16 %v60
  %v328 = vunpack.c.l.b16 %v61
  %v329 = vunpack.c.h.b16 %v61
  %v330 = vunpack.c.l.b16 %v62
  %v331 = vunpack.c.l.b16 %v63
  %v332 = vunpack.c.h.b16 %v63
  %v333 = vunpack.c.l.b16 %v64
  %v334 = vunpack.c.l.b16 %v65
  %v335 = vunpack.c.h.b16 %v65
  %v336 = vunpack.c.l.b16 %v66
  %v337 = vunpack.c.l.b16 %v67
  %v338 = vunpack.c.h.b16 %v67
  %v339 = vunpack.c.l.b16 %v68
  %v340 = vunpack.c.l.b16 %v69
  %v341 = vunpack.c.h.b16 %v69
  %v342 = vunpack.c.l.b16 %v70
  %v343 = vunpack.c.l.b16 %v71
  %v344 = vunpack.c.h.b16 %v71
  %v345 = vunpack.c.l.b16 %v72
  %v346 = vunpack.c.l.b16 %v73
  %v347 = vunpack.c.h.b16 %v73
  %v348 = vunpack.c.l.b16 %v74
  %v349 = vunpack.c.l.b16 %v75
  %v350 = vunpack.c.h.b16 %v75
  %v351 = vunpack.c.l.b16 %v76
  %v352 = vunpack.c.l.b16 %v77
  %v353 = vunpack.c.h.b16 %v77
  %v354 = vunpack.c.l.b16 %v78
  %v355 = vunpack.c.l.b16 %v79
  %v356 = vunpack.c.h.b16 %v79
  %v357 = vunpack.c.l.b16 %v80
  %v358 = vunpack.c.l.b16 %v81
  %v359 = vunpack.c.h.b16 %v81
  %v360 = vunpack.c.l.b16 %v82
  %v361 = vunpack.c.l.b16 %v83
  %v362 = vunpack.c.h.b16 %v83
  %v363 = vunpack.c.l.b16 %v84
  %v364 = vunpack.c.l.b16 %v85
  %v365 = vunpack.c.h.b16 %v85
  %v366 = vunpack.c.l.b16 %v86
  %v367 = vunpack.c.l.b16 %v87
  %v368 = vunpack.c.h.b16 %v87
  %v369 = vunpack.c.l.b16 %v88
  %v370 = vunpack.c.l.b16 %v89
  %v371 = vunpack.c.h.b16 %v89
  %v372 = vunpack.c.l.b16 %v90
  %v373 = vunpack.c.l.b16 %v91
  %v374 = vunpack.c.h.b16 %v91
  %v375 = vunpack.c.l.b16 %v92
  %v376 = vunpack.c.l.b16 %v93
  %v377 = vunpack.c.h.b16 %v93
  %v378 = vunpack.c.l.b16 %v94
  %v379 = vunpack.c.l.b16 %v95
  %v380 = vunpack.c.h.b16 %v95
  %v381 = vunpack.c.l.b16 %v96
  %v382 = vunpack.c.l.b16 %v97
  %v383 = vunpack.c.h.b16 %v97
  %v384 = vunpack.c.l.b16 %v98
  %v385 = vunpack.c.l.b16 %v99
  %v386 = vunpack.c.h.b16 %v99
  %v387 = vunpack.c.l.b16 %v100
  %v388 = vunpack.c.l.b16 %v101
  %v389 = vunpack.c.h.b16 %v101
  %v390 = vunpack.c.l.b16 %v102
  %v391 = vpack.c.b16 %v286, %v283
  %v392 = vpack.c.b16 %v287, %v284
  %v393 = vpack.c.b16 %v288, %v285
  %v394 = vpack.c.b16 %v292, %v289
  %v395 = vpack.c.b16 %v293, %v290
  %v396 = vpack.c.b16 %v294, %v291
  %v397 = vpack.c.b16 %v298, %v295
  %v398 = vpack.c.b16 %v299, %v296
  %v399 = vpack.c.b16 %v300, %v297
  %v400 = vpack.c.b16 %v304, %v301
  %v401 = vpack.c.b16 %v305, %v302
  %v402 = vpack.c.b16 %v306, %v303
  %v403 = vpack.c.b16 %v310, %v307
  %v404 = vpack.c.b16 %v311, %v308
  %v405 = vpack.c.b16 %v312, %v309
  %v406 = vpack.c.b16 %v316, %v313
  %v407 = vpack.c.b16 %v317, %v314
  %v408 = vpack.c.b16 %v318, %v315
  %v409 = vpack.c.b16 %v322, %v319
  %v410 = vpack.c.b16 %v323, %v320
  %v411 = vpack.c.b16 %v324, %v321
  %v412 = vpack.c.b16 %v328, %v325
  %v413 = vpack.c.b16 %v329, %v326
  %v414 = vpack.c.b16 %v330, %v327
  %v415 = vpack.c.b16 %v334, %v331
  %v416 = vpack.c.b16 %v335, %v332
  %v417 = vpack.c.b16 %v336, %v333
  %v418 = vpack.c.b16 %v340, %v337
  %v419 = vpack.c.b16 %v341, %v338
  %v420 = vpack.c.b16 %v342, %v339
  %v421 = vpack.c.b16 %v346, %v343
  %v422 = vpack.c.b16 %v347, %v344
  %v423 = vpack.c.b16 %v348, %v345
  %v424 = vpack.c.b16 %v352, %v349
  %v425 = vpack.c.b16 %v353, %v350
  %v426 = vpack.c.b16 %v354, %v351
  %v427 = vpack.c.b16 %v358, %v355
  %v428 = vpack.c.b16 %v359, %v356
  %v429 = vpack.c.b16 %v360, %v357
  %v430 = vpack.c.b16 %v364, %v361
  %v431 = vpack.c.b16 %v365, %v362
  %v432 = vpack.c.b16 %v366, %v363
  %v433 = vpack.c.b16 %v370, %v367
  %v434 = vpack.c.b16 %v371, %v368
  %v435 = vpack.c.b16 %v372, %v369
  %v436 = vpack.c.b16 %v376, %v373
  %v437 = vpack.c.b16 %v377, %v374
  %v438 = vpack.c.b16 %v378, %v375
  %v439 = vpack.c.b16 %v382, %v379
  %v440 = vpack.c.b16 %v383, %v380
  %v441 = vpack.c.b16 %v384, %v381
  %v442 = vpack.c.b16 %v388, %v385
  %v443 = vpack.c.b16 %v389, %v386
  %v444 = vpack.c.b16 %v390, %v387
  %vm499 = vcmask 261120
  %v501 = vsel %vm499, %v193, 0
  %v504 = vsel %vm499, %v196, 0
  %v507 = vsel %vm499, %v199, 0
  %v510 = vsel %vm499, %v202, 0
  %512 = vmatpush.bf16.msra.mxu0 %v412
  %513 = vmatpush.bf16.msra.mxu0 %v409
  %514 = vmatpush.bf16.msra.mxu0 %v406
  %515 = vmatpush.bf16.msra.mxu0 %v403
  %516 = vmatpush.bf16.msra.mxu0 %v400
  %517 = vmatpush.bf16.msra.mxu0 %v397
  %518 = vmatpush.bf16.msra.mxu0 %v394
  %519 = vmatpush.bf16.msra.mxu0 %v391
  %520 = vmatmul.bf16.gmra.mxu0 %v191
  %v521 = vpop.f32.mrf.mxu0
  %v522 = vadd.f32 %v114, %v521
  %v523 = vpop.f32.mrf.mxu0
  %v524 = vadd.f32 %v119, %v523
  %525 = vmatmul.bf16.gmra.mxu0 %v194
  %v526 = vpop.f32.mrf.mxu0
  %v527 = vadd.f32 %v124, %v526
  %v528 = vpop.f32.mrf.mxu0
  %v529 = vadd.f32 %v129, %v528
  %530 = vmatmul.bf16.gmra.mxu0 %v197
  %v531 = vpop.f32.mrf.mxu0
  %v532 = vadd.f32 %v134, %v531
  %v533 = vpop.f32.mrf.mxu0
  %v534 = vadd.f32 %v139, %v533
  %535 = vmatmul.bf16.gmra.mxu0 %v200
  %v536 = vpop.f32.mrf.mxu0
  %v537 = vadd.f32 %v144, %v536
  %v538 = vpop.f32.mrf.mxu0
  %v539 = vadd.f32 %v149, %v538
  %540 = vdwg.mxu0
  %541 = vmatpush.bf16.msra.mxu0 %v436
  %542 = vmatpush.bf16.msra.mxu0 %v433
  %543 = vmatpush.bf16.msra.mxu0 %v430
  %544 = vmatpush.bf16.msra.mxu0 %v427
  %545 = vmatpush.bf16.msra.mxu0 %v424
  %546 = vmatpush.bf16.msra.mxu0 %v421
  %547 = vmatpush.bf16.msra.mxu0 %v418
  %548 = vmatpush.bf16.msra.mxu0 %v415
  %549 = vmatmul.bf16.gmra.mxu0 %v192
  %v550 = vpop.f32.mrf.mxu0
  %v551 = vadd.f32 %v522, %v550
  %v552 = vpop.f32.mrf.mxu0
  %v553 = vadd.f32 %v524, %v552
  %554 = vmatmul.bf16.gmra.mxu0 %v195
  %v555 = vpop.f32.mrf.mxu0
  %v556 = vadd.f32 %v527, %v555
  %v557 = vpop.f32.mrf.mxu0
  %v558 = vadd.f32 %v529, %v557
  %559 = vmatmul.bf16.gmra.mxu0 %v198
  %v560 = vpop.f32.mrf.mxu0
  %v561 = vadd.f32 %v532, %v560
  %v562 = vpop.f32.mrf.mxu0
  %v563 = vadd.f32 %v534, %v562
  %564 = vmatmul.bf16.gmra.mxu0 %v201
  %v565 = vpop.f32.mrf.mxu0
  %v566 = vadd.f32 %v537, %v565
  %v567 = vpop.f32.mrf.mxu0
  %v568 = vadd.f32 %v539, %v567
  %569 = vdwg.mxu0
  %570 = vmatpush.bf16.msra.mxu0 0
  %571 = vmatpush.bf16.msra.mxu0 0
  %572 = vmatpush.bf16.msra.mxu0 0
  %573 = vmatpush.bf16.msra.mxu0 0
  %574 = vmatpush.bf16.msra.mxu0 0
  %575 = vmatpush.bf16.msra.mxu0 0
  %576 = vmatpush.bf16.msra.mxu0 %v442
  %577 = vmatpush.bf16.msra.mxu0 %v439
  %578 = vmatmul.bf16.gmra.mxu0 %v501
  %v579 = vpop.f32.mrf.mxu0
  %v580 = vadd.f32 %v551, %v579
  %v581 = vpop.f32.mrf.mxu0
  %v582 = vadd.f32 %v553, %v581
  %583 = vmatmul.bf16.gmra.mxu0 %v504
  %v584 = vpop.f32.mrf.mxu0
  %v585 = vadd.f32 %v556, %v584
  %v586 = vpop.f32.mrf.mxu0
  %v587 = vadd.f32 %v558, %v586
  %588 = vmatmul.bf16.gmra.mxu0 %v507
  %v589 = vpop.f32.mrf.mxu0
  %v590 = vadd.f32 %v561, %v589
  %v591 = vpop.f32.mrf.mxu0
  %v592 = vadd.f32 %v563, %v591
  %593 = vmatmul.bf16.gmra.mxu0 %v510
  %v594 = vpop.f32.mrf.mxu0
  %v595 = vadd.f32 %v566, %v594
  %v596 = vpop.f32.mrf.mxu0
  %v597 = vadd.f32 %v568, %v596
  %598 = vdwg.mxu0
  %599 = vmatpush.bf16.msra.mxu0 %v413
  %600 = vmatpush.bf16.msra.mxu0 %v410
  %601 = vmatpush.bf16.msra.mxu0 %v407
  %602 = vmatpush.bf16.msra.mxu0 %v404
  %603 = vmatpush.bf16.msra.mxu0 %v401
  %604 = vmatpush.bf16.msra.mxu0 %v398
  %605 = vmatpush.bf16.msra.mxu0 %v395
  %606 = vmatpush.bf16.msra.mxu0 %v392
  %607 = vmatmul.bf16.gmra.mxu0 %v191
  %v608 = vpop.f32.mrf.mxu0
  %v609 = vadd.f32 %v114, %v608
  %v610 = vpop.f32.mrf.mxu0
  %v611 = vadd.f32 %v119, %v610
  %612 = vmatmul.bf16.gmra.mxu0 %v194
  %v613 = vpop.f32.mrf.mxu0
  %v614 = vadd.f32 %v124, %v613
  %v615 = vpop.f32.mrf.mxu0
  %v616 = vadd.f32 %v129, %v615
  %617 = vmatmul.bf16.gmra.mxu0 %v197
  %v618 = vpop.f32.mrf.mxu0
  %v619 = vadd.f32 %v134, %v618
  %v620 = vpop.f32.mrf.mxu0
  %v621 = vadd.f32 %v139, %v620
  %622 = vmatmul.bf16.gmra.mxu0 %v200
  %v623 = vpop.f32.mrf.mxu0
  %v624 = vadd.f32 %v144, %v623
  %v625 = vpop.f32.mrf.mxu0
  %v626 = vadd.f32 %v149, %v625
  %627 = vdwg.mxu0
  %628 = vmatpush.bf16.msra.mxu0 %v437
  %629 = vmatpush.bf16.msra.mxu0 %v434
  %630 = vmatpush.bf16.msra.mxu0 %v431
  %631 = vmatpush.bf16.msra.mxu0 %v428
  %632 = vmatpush.bf16.msra.mxu0 %v425
  %633 = vmatpush.bf16.msra.mxu0 %v422
  %634 = vmatpush.bf16.msra.mxu0 %v419
  %635 = vmatpush.bf16.msra.mxu0 %v416
  %636 = vmatmul.bf16.gmra.mxu0 %v192
  %v637 = vpop.f32.mrf.mxu0
  %v638 = vadd.f32 %v609, %v637
  %v639 = vpop.f32.mrf.mxu0
  %v640 = vadd.f32 %v611, %v639
  %641 = vmatmul.bf16.gmra.mxu0 %v195
  %v642 = vpop.f32.mrf.mxu0
  %v643 = vadd.f32 %v614, %v642
  %v644 = vpop.f32.mrf.mxu0
  %v645 = vadd.f32 %v616, %v644
  %646 = vmatmul.bf16.gmra.mxu0 %v198
  %v647 = vpop.f32.mrf.mxu0
  %v648 = vadd.f32 %v619, %v647
  %v649 = vpop.f32.mrf.mxu0
  %v650 = vadd.f32 %v621, %v649
  %651 = vmatmul.bf16.gmra.mxu0 %v201
  %v652 = vpop.f32.mrf.mxu0
  %v653 = vadd.f32 %v624, %v652
  %v654 = vpop.f32.mrf.mxu0
  %v655 = vadd.f32 %v626, %v654
  %656 = vdwg.mxu0
  %657 = vmatpush.bf16.msra.mxu0 0
  %658 = vmatpush.bf16.msra.mxu0 0
  %659 = vmatpush.bf16.msra.mxu0 0
  %660 = vmatpush.bf16.msra.mxu0 0
  %661 = vmatpush.bf16.msra.mxu0 0
  %662 = vmatpush.bf16.msra.mxu0 0
  %663 = vmatpush.bf16.msra.mxu0 %v443
  %664 = vmatpush.bf16.msra.mxu0 %v440
  %665 = vmatmul.bf16.gmra.mxu0 %v501
  %v666 = vpop.f32.mrf.mxu0
  %v667 = vadd.f32 %v638, %v666
  %v668 = vpop.f32.mrf.mxu0
  %v669 = vadd.f32 %v640, %v668
  %670 = vmatmul.bf16.gmra.mxu0 %v504
  %v671 = vpop.f32.mrf.mxu0
  %v672 = vadd.f32 %v643, %v671
  %v673 = vpop.f32.mrf.mxu0
  %v674 = vadd.f32 %v645, %v673
  %675 = vmatmul.bf16.gmra.mxu0 %v507
  %v676 = vpop.f32.mrf.mxu0
  %v677 = vadd.f32 %v648, %v676
  %v678 = vpop.f32.mrf.mxu0
  %v679 = vadd.f32 %v650, %v678
  %680 = vmatmul.bf16.gmra.mxu0 %v510
  %v681 = vpop.f32.mrf.mxu0
  %v682 = vadd.f32 %v653, %v681
  %v683 = vpop.f32.mrf.mxu0
  %v684 = vadd.f32 %v655, %v683
  %685 = vdwg.mxu0
  %686 = vmatpush.bf16.msra.mxu0 %v414
  %687 = vmatpush.bf16.msra.mxu0 %v411
  %688 = vmatpush.bf16.msra.mxu0 %v408
  %689 = vmatpush.bf16.msra.mxu0 %v405
  %690 = vmatpush.bf16.msra.mxu0 %v402
  %691 = vmatpush.bf16.msra.mxu0 %v399
  %692 = vmatpush.bf16.msra.mxu0 %v396
  %693 = vmatpush.bf16.msra.mxu0 %v393
  %694 = vmatmul.bf16.gmra.mxu0 %v191
  %v695 = vpop.f32.mrf.mxu0
  %v696 = vadd.f32 %v114, %v695
  %v697 = vpop.f32.mrf.mxu0
  %v698 = vadd.f32 %v119, %v697
  %699 = vmatmul.bf16.gmra.mxu0 %v194
  %v700 = vpop.f32.mrf.mxu0
  %v701 = vadd.f32 %v124, %v700
  %v702 = vpop.f32.mrf.mxu0
  %v703 = vadd.f32 %v129, %v702
  %704 = vmatmul.bf16.gmra.mxu0 %v197
  %v705 = vpop.f32.mrf.mxu0
  %v706 = vadd.f32 %v134, %v705
  %v707 = vpop.f32.mrf.mxu0
  %v708 = vadd.f32 %v139, %v707
  %709 = vmatmul.bf16.gmra.mxu0 %v200
  %v710 = vpop.f32.mrf.mxu0
  %v711 = vadd.f32 %v144, %v710
  %v712 = vpop.f32.mrf.mxu0
  %v713 = vadd.f32 %v149, %v712
  %714 = vdwg.mxu0
  %715 = vmatpush.bf16.msra.mxu0 %v438
  %716 = vmatpush.bf16.msra.mxu0 %v435
  %717 = vmatpush.bf16.msra.mxu0 %v432
  %718 = vmatpush.bf16.msra.mxu0 %v429
  %719 = vmatpush.bf16.msra.mxu0 %v426
  %720 = vmatpush.bf16.msra.mxu0 %v423
  %721 = vmatpush.bf16.msra.mxu0 %v420
  %722 = vmatpush.bf16.msra.mxu0 %v417
  %723 = vmatmul.bf16.gmra.mxu0 %v192
  %v724 = vpop.f32.mrf.mxu0
  %v725 = vadd.f32 %v696, %v724
  %v726 = vpop.f32.mrf.mxu0
  %v727 = vadd.f32 %v698, %v726
  %728 = vmatmul.bf16.gmra.mxu0 %v195
  %v729 = vpop.f32.mrf.mxu0
  %v730 = vadd.f32 %v701, %v729
  %v731 = vpop.f32.mrf.mxu0
  %v732 = vadd.f32 %v703, %v731
  %733 = vmatmul.bf16.gmra.mxu0 %v198
  %v734 = vpop.f32.mrf.mxu0
  %v735 = vadd.f32 %v706, %v734
  %v736 = vpop.f32.mrf.mxu0
  %v737 = vadd.f32 %v708, %v736
  %738 = vmatmul.bf16.gmra.mxu0 %v201
  %v739 = vpop.f32.mrf.mxu0
  %v740 = vadd.f32 %v711, %v739
  %v741 = vpop.f32.mrf.mxu0
  %v742 = vadd.f32 %v713, %v741
  %743 = vdwg.mxu0
  %744 = vmatpush.bf16.msra.mxu0 0
  %745 = vmatpush.bf16.msra.mxu0 0
  %746 = vmatpush.bf16.msra.mxu0 0
  %747 = vmatpush.bf16.msra.mxu0 0
  %748 = vmatpush.bf16.msra.mxu0 0
  %749 = vmatpush.bf16.msra.mxu0 0
  %750 = vmatpush.bf16.msra.mxu0 %v444
  %751 = vmatpush.bf16.msra.mxu0 %v441
  %752 = vmatmul.bf16.gmra.mxu0 %v501
  %v753 = vpop.f32.mrf.mxu0
  %v754 = vadd.f32 %v725, %v753
  %v755 = vpop.f32.mrf.mxu0
  %v756 = vadd.f32 %v727, %v755
  %757 = vmatmul.bf16.gmra.mxu0 %v504
  %v758 = vpop.f32.mrf.mxu0
  %v759 = vadd.f32 %v730, %v758
  %v760 = vpop.f32.mrf.mxu0
  %v761 = vadd.f32 %v732, %v760
  %762 = vmatmul.bf16.gmra.mxu0 %v507
  %v763 = vpop.f32.mrf.mxu0
  %v764 = vadd.f32 %v735, %v763
  %v765 = vpop.f32.mrf.mxu0
  %v766 = vadd.f32 %v737, %v765
  %767 = vmatmul.bf16.gmra.mxu0 %v510
  %v768 = vpop.f32.mrf.mxu0
  %v769 = vadd.f32 %v740, %v768
  %v770 = vpop.f32.mrf.mxu0
  %v771 = vadd.f32 %v742, %v770
  %772 = vdwg.mxu0
  %v773 = vmax.f32 %v580, 0.0
  %v774 = vmax.f32 %v667, 0.0
  %v775 = vmax.f32 %v754, 0.0
  %v776 = vmax.f32 %v582, 0.0
  %v777 = vmax.f32 %v669, 0.0
  %v778 = vmax.f32 %v756, 0.0
  %v779 = vmax.f32 %v585, 0.0
  %v780 = vmax.f32 %v672, 0.0
  %v781 = vmax.f32 %v759, 0.0
  %v782 = vmax.f32 %v587, 0.0
  %v783 = vmax.f32 %v674, 0.0
  %v784 = vmax.f32 %v761, 0.0
  %v785 = vmax.f32 %v590, 0.0
  %v786 = vmax.f32 %v677, 0.0
  %v787 = vmax.f32 %v764, 0.0
  %v788 = vmax.f32 %v592, 0.0
  %v789 = vmax.f32 %v679, 0.0
  %v790 = vmax.f32 %v766, 0.0
  %v791 = vmax.f32 %v595, 0.0
  %v792 = vmax.f32 %v682, 0.0
  %v793 = vmax.f32 %v769, 0.0
  %v794 = vmax.f32 %v597, 0.0
  %v795 = vmax.f32 %v684, 0.0
  %v796 = vmax.f32 %v771, 0.0
  %v797 = vpack.c.bf16 %v774, %v773
  %v798 = vpack.c.bf16 %v775, %v775
  %v799 = vpack.c.bf16 %v777, %v776
  %v800 = vpack.c.bf16 %v778, %v778
  %v801 = vpack.c.bf16 %v780, %v779
  %v802 = vpack.c.bf16 %v781, %v781
  %v803 = vpack.c.bf16 %v783, %v782
  %v804 = vpack.c.bf16 %v784, %v784
  %v805 = vpack.c.bf16 %v786, %v785
  %v806 = vpack.c.bf16 %v787, %v787
  %v807 = vpack.c.bf16 %v789, %v788
  %v808 = vpack.c.bf16 %v790, %v790
  %v809 = vpack.c.bf16 %v792, %v791
  %v810 = vpack.c.bf16 %v793, %v793
  %v811 = vpack.c.bf16 %v795, %v794
  %v812 = vpack.c.bf16 %v796, %v796
  %813 = vst [vmem:[%s3] sm:$0xff] %v797
  %814 = vst [vmem:[%s3 + $0x8] sm:$0xf] %v798
  %815 = vst [vmem:[%s3 + $0xc] sm:$0xff] %v799
  %816 = vst [vmem:[%s3 + $0x14] sm:$0xf] %v800
  %817 = vst [vmem:[%s3 + $0x18] sm:$0xff] %v801
  %818 = vst [vmem:[%s3 + $0x20] sm:$0xf] %v802
  %819 = vst [vmem:[%s3 + $0x24] sm:$0xff] %v803
  %820 = vst [vmem:[%s3 + $0x2c] sm:$0xf] %v804
  %821 = vst [vmem:[%s3 + $0x30] sm:$0xff] %v805
  %822 = vst [vmem:[%s3 + $0x38] sm:$0xf] %v806
  %823 = vst [vmem:[%s3 + $0x3c] sm:$0xff] %v807
  %824 = vst [vmem:[%s3 + $0x44] sm:$0xf] %v808
  %825 = vst [vmem:[%s3 + $0x48] sm:$0xff] %v809
  %826 = vst [vmem:[%s3 + $0x50] sm:$0xf] %v810
  %827 = vst [vmem:[%s3 + $0x54] sm:$0xff] %v811
  %828 = vst [vmem:[%s3 + $0x5c] sm:$0xf] %v812
  // Predicated region
  $region14: #{flappy_bird_cnn.5} parent=0 // pred_check
    _
  $region15: #{flappy_bird_cnn.5} parent=0 // pred_check_branch
    %830 = sbr.rel (0) target = $region17
  $region16: #{flappy_bird_cnn.5} parent=0 // pred_region
    _
  $region17: #{flappy_bird_cnn.5} parent=0 // pred_fallthru
    _
  // Predicated region
  $region18: #{flappy_bird_cnn.5} parent=0 // pred_check
    _
  $region19: #{flappy_bird_cnn.5} parent=0 // pred_check_branch
    %832 = sbr.rel (0) target = $region21
  $region20: #{flappy_bird_cnn.5} parent=0 // pred_region
    _
  $region21: #{flappy_bird_cnn.5} parent=0 // pred_fallthru
    _

// kernel: flappy_bird_cnn.6
$region0: #{flappy_bird_cnn.6}
  #allocation0 [shape = 'u32[]', space=smem, size = 0x4, offset = 0x4, fixed_abs, tag = 'smem constant byte address 0x4 - core index']
  #allocation1 [shape = 'u32[72,128]{1,0:T(1,128)}', space=vmem, size = 0x9000, scoped, tag = 'internal scratch']
  %s0 = inlined_call_operand.vmem [shape: bf16[64,576], index: 0, kind: input, shape index: {}]
  %s1 = inlined_call_operand.vmem [shape: bf16[576,128], index: 1, kind: input, shape index: {}]
  %s2 = inlined_call_operand.vmem [shape: f32[64,1], index: 2, kind: input, shape index: {}]
  %s3 = inlined_call_operand.vmem [shape: bf16[64,128], index: 3, kind: output, shape index: {}]
  %s4 = sld [smem:[#allocation0]]
  $region22: #{flappy_bird_cnn.6} parent=0
    _
  %s6 = ssub.s32 1, %s4
  %s7 = scalar_select 0, %s6, %s4
  // Predicated region
  $region2: #{flappy_bird_cnn.6} parent=0 // pred_check
    _
  $region3: #{flappy_bird_cnn.6} parent=0 // pred_check_branch
    %9 = sbr.rel (0) target = $region5
  $region4: #{flappy_bird_cnn.6} parent=0 // pred_region
    _
  $region5: #{flappy_bird_cnn.6} parent=0 // pred_fallthru
    _
  // Predicated region
  $region6: #{flappy_bird_cnn.6} parent=0 // pred_check
    _
  $region7: #{flappy_bird_cnn.6} parent=0 // pred_check_branch
    %11 = sbr.rel (0) target = $region9
  $region8: #{flappy_bird_cnn.6} parent=0 // pred_region
    _
  $region9: #{flappy_bird_cnn.6} parent=0 // pred_fallthru
    _
  // Predicated region
  $region10: #{flappy_bird_cnn.6} parent=0 // pred_check
    _
  $region11: #{flappy_bird_cnn.6} parent=0 // pred_check_branch
    %13 = sbr.rel (0) target = $region13
  $region12: #{flappy_bird_cnn.6} parent=0 // pred_region
    _
  $region13: #{flappy_bird_cnn.6} parent=0 // pred_fallthru
    _
  %v15 = vld [vmem:[%s0] sm:$0xff]
  %v16 = vld [vmem:[%s0 + $0x8] sm:$0xff]
  %v17 = vld [vmem:[%s0 + $0x10] sm:$0xf]
  %v18 = vld [vmem:[%s0 + $0x14] sm:$0xff]
  %v19 = vld [vmem:[%s0 + $0x1c] sm:$0xff]
  %v20 = vld [vmem:[%s0 + $0x24] sm:$0xf]
  %v21 = vld [vmem:[%s0 + $0x28] sm:$0xff]
  %v22 = vld [vmem:[%s0 + $0x30] sm:$0xff]
  %v23 = vld [vmem:[%s0 + $0x38] sm:$0xf]
  %v24 = vld [vmem:[%s0 + $0x3c] sm:$0xff]
  %v25 = vld [vmem:[%s0 + $0x44] sm:$0xff]
  %v26 = vld [vmem:[%s0 + $0x4c] sm:$0xf]
  %v27 = vld [vmem:[%s0 + $0x50] sm:$0xff]
  %v28 = vld [vmem:[%s0 + $0x58] sm:$0xff]
  %v29 = vld [vmem:[%s0 + $0x60] sm:$0xf]
  %v30 = vld [vmem:[%s0 + $0x64] sm:$0xff]
  %v31 = vld [vmem:[%s0 + $0x6c] sm:$0xff]
  %v32 = vld [vmem:[%s0 + $0x74] sm:$0xf]
  %v33 = vld [vmem:[%s0 + $0x78] sm:$0xff]
  %v34 = vld [vmem:[%s0 + $0x80] sm:$0xff]
  %v35 = vld [vmem:[%s0 + $0x88] sm:$0xf]
  %v36 = vld [vmem:[%s0 + $0x8c] sm:$0xff]
  %v37 = vld [vmem:[%s0 + $0x94] sm:$0xff]
  %v38 = vld [vmem:[%s0 + $0x9c] sm:$0xf]
  %v39 = vld [vmem:[%s1] sm:$0xf]
  %v40 = vld [vmem:[%s1 + $0x4] sm:$0xf]
  %v41 = vld [vmem:[%s1 + $0x8] sm:$0xf]
  %v42 = vld [vmem:[%s1 + $0xc] sm:$0xf]
  %v43 = vld [vmem:[%s1 + $0x10] sm:$0xf]
  %v44 = vld [vmem:[%s1 + $0x14] sm:$0xf]
  %v45 = vld [vmem:[%s1 + $0x18] sm:$0xf]
  %v46 = vld [vmem:[%s1 + $0x1c] sm:$0xf]
  %v47 = vld [vmem:[%s1 + $0x20] sm:$0xf]
  %v48 = vld [vmem:[%s1 + $0x24] sm:$0xf]
  %v49 = vld [vmem:[%s1 + $0x28] sm:$0xf]
  %v50 = vld [vmem:[%s1 + $0x2c] sm:$0xf]
  %v51 = vld [vmem:[%s1 + $0x30] sm:$0xf]
  %v52 = vld [vmem:[%s1 + $0x34] sm:$0xf]
  %v53 = vld [vmem:[%s1 + $0x38] sm:$0xf]
  %v54 = vld [vmem:[%s1 + $0x3c] sm:$0xf]
  %v55 = vld [vmem:[%s1 + $0x40] sm:$0xf]
  %v56 = vld [vmem:[%s1 + $0x44] sm:$0xf]
  %v57 = vld [vmem:[%s1 + $0x48] sm:$0xf]
  %v58 = vld [vmem:[%s1 + $0x4c] sm:$0xf]
  %v59 = vld [vmem:[%s1 + $0x50] sm:$0xf]
  %v60 = vld [vmem:[%s1 + $0x54] sm:$0xf]
  %v61 = vld [vmem:[%s1 + $0x58] sm:$0xf]
  %v62 = vld [vmem:[%s1 + $0x5c] sm:$0xf]
  %v63 = vld [vmem:[%s1 + $0x60] sm:$0xf]
  %v64 = vld [vmem:[%s1 + $0x64] sm:$0xf]
  %v65 = vld [vmem:[%s1 + $0x68] sm:$0xf]
  %v66 = vld [vmem:[%s1 + $0x6c] sm:$0xf]
  %v67 = vld [vmem:[%s1 + $0x70] sm:$0xf]
  %v68 = vld [vmem:[%s1 + $0x74] sm:$0xf]
  %v69 = vld [vmem:[%s1 + $0x78] sm:$0xf]
  %v70 = vld [vmem:[%s1 + $0x7c] sm:$0xf]
  %v71 = vld [vmem:[%s1 + $0x80] sm:$0xf]
  %v72 = vld [vmem:[%s1 + $0x84] sm:$0xf]
  %v73 = vld [vmem:[%s1 + $0x88] sm:$0xf]
  %v74 = vld [vmem:[%s1 + $0x8c] sm:$0xf]
  %v75 = vld [vmem:[%s1 + $0x90] sm:$0xf]
  %v76 = vld [vmem:[%s1 + $0x94] sm:$0xf]
  %v77 = vld [vmem:[%s1 + $0x98] sm:$0xf]
  %v78 = vld [vmem:[%s1 + $0x9c] sm:$0xf]
  %v79 = vld [vmem:[%s1 + $0xa0] sm:$0xf]
  %v80 = vld [vmem:[%s1 + $0xa4] sm:$0xf]
  %v81 = vld [vmem:[%s1 + $0xa8] sm:$0xf]
  %v82 = vld [vmem:[%s1 + $0xac] sm:$0xf]
  %v83 = vld [vmem:[%s1 + $0xb0] sm:$0xf]
  %v84 = vld [vmem:[%s1 + $0xb4] sm:$0xf]
  %v85 = vld [vmem:[%s1 + $0xb8] sm:$0xf]
  %v86 = vld [vmem:[%s1 + $0xbc] sm:$0xf]
  %v87 = vld [vmem:[%s1 + $0xc0] sm:$0xf]
  %v88 = vld [vmem:[%s1 + $0xc4] sm:$0xf]
  %v89 = vld [vmem:[%s1 + $0xc8] sm:$0xf]
  %v90 = vld [vmem:[%s1 + $0xcc] sm:$0xf]
  %v91 = vld [vmem:[%s1 + $0xd0] sm:$0xf]
  %v92 = vld [vmem:[%s1 + $0xd4] sm:$0xf]
  %v93 = vld [vmem:[%s1 + $0xd8] sm:$0xf]
  %v94 = vld [vmem:[%s1 + $0xdc] sm:$0xf]
  %v95 = vld [vmem:[%s1 + $0xe0] sm:$0xf]
  %v96 = vld [vmem:[%s1 + $0xe4] sm:$0xf]
  %v97 = vld [vmem:[%s1 + $0xe8] sm:$0xf]
  %v98 = vld [vmem:[%s1 + $0xec] sm:$0xf]
  %v99 = vld [vmem:[%s1 + $0xf0] sm:$0xf]
  %v100 = vld [vmem:[%s1 + $0xf4] sm:$0xf]
  %v101 = vld [vmem:[%s1 + $0xf8] sm:$0xf]
  %v102 = vld [vmem:[%s1 + $0xfc] sm:$0xf]
  %v103 = vld [vmem:[%s1 + $0x100] sm:$0xf]
  %v104 = vld [vmem:[%s1 + $0x104] sm:$0xf]
  %v105 = vld [vmem:[%s1 + $0x108] sm:$0xf]
  %v106 = vld [vmem:[%s1 + $0x10c] sm:$0xf]
  %v107 = vld [vmem:[%s1 + $0x110] sm:$0xf]
  %v108 = vld [vmem:[%s1 + $0x114] sm:$0xf]
  %v109 = vld [vmem:[%s1 + $0x118] sm:$0xf]
  %v110 = vld [vmem:[%s1 + $0x11c] sm:$0xf]
  %v111 = vld [vmem:[%s2] sm:$0xff]
  %v112 = vld [vmem:[%s2 + $0x8] sm:$0xff]
  %v113 = vld [vmem:[%s2 + $0x10] sm:$0xff]
  %v114 = vld [vmem:[%s2 + $0x18] sm:$0xff]
  %v115 = vld [vmem:[%s2 + $0x20] sm:$0xff]
  %v116 = vld [vmem:[%s2 + $0x28] sm:$0xff]
  %v117 = vld [vmem:[%s2 + $0x30] sm:$0xff]
  %v118 = vld [vmem:[%s2 + $0x38] sm:$0xff]
  %120 = vset.pattern.permute.xlu0 0
  %121 = vperm.xlu0 %120, %v111
  %v122 = vpop.permute.xlu0 %121
  %125 = vset.pattern.permute.xlu0 0
  %126 = vperm.xlu0 %125, %v112
  %v127 = vpop.permute.xlu0 %126
  %130 = vset.pattern.permute.xlu0 0
  %131 = vperm.xlu0 %130, %v113
  %v132 = vpop.permute.xlu0 %131
  %135 = vset.pattern.permute.xlu0 0
  %136 = vperm.xlu0 %135, %v114
  %v137 = vpop.permute.xlu0 %136
  %140 = vset.pattern.permute.xlu0 0
  %141 = vperm.xlu0 %140, %v115
  %v142 = vpop.permute.xlu0 %141
  %145 = vset.pattern.permute.xlu0 0
  %146 = vperm.xlu0 %145, %v116
  %v147 = vpop.permute.xlu0 %146
  %150 = vset.pattern.permute.xlu0 0
  %151 = vperm.xlu0 %150, %v117
  %v152 = vpop.permute.xlu0 %151
  %155 = vset.pattern.permute.xlu0 0
  %156 = vperm.xlu0 %155, %v118
  %v157 = vpop.permute.xlu0 %156
  %v183 = vunpack.c.l.b16 %v15
  %v184 = vunpack.c.h.b16 %v15
  %v185 = vunpack.c.l.b16 %v16
  %v186 = vunpack.c.h.b16 %v16
  %v187 = vunpack.c.l.b16 %v17
  %v188 = vunpack.c.l.b16 %v18
  %v189 = vunpack.c.h.b16 %v18
  %v190 = vunpack.c.l.b16 %v19
  %v191 = vunpack.c.h.b16 %v19
  %v192 = vunpack.c.l.b16 %v20
  %v193 = vunpack.c.l.b16 %v21
  %v194 = vunpack.c.h.b16 %v21
  %v195 = vunpack.c.l.b16 %v22
  %v196 = vunpack.c.h.b16 %v22
  %v197 = vunpack.c.l.b16 %v23
  %v198 = vunpack.c.l.b16 %v24
  %v199 = vunpack.c.h.b16 %v24
  %v200 = vunpack.c.l.b16 %v25
  %v201 = vunpack.c.h.b16 %v25
  %v202 = vunpack.c.l.b16 %v26
  %v203 = vunpack.c.l.b16 %v27
  %v204 = vunpack.c.h.b16 %v27
  %v205 = vunpack.c.l.b16 %v28
  %v206 = vunpack.c.h.b16 %v28
  %v207 = vunpack.c.l.b16 %v29
  %v208 = vunpack.c.l.b16 %v30
  %v209 = vunpack.c.h.b16 %v30
  %v210 = vunpack.c.l.b16 %v31
  %v211 = vunpack.c.h.b16 %v31
  %v212 = vunpack.c.l.b16 %v32
  %v213 = vunpack.c.l.b16 %v33
  %v214 = vunpack.c.h.b16 %v33
  %v215 = vunpack.c.l.b16 %v34
  %v216 = vunpack.c.h.b16 %v34
  %v217 = vunpack.c.l.b16 %v35
  %v218 = vunpack.c.l.b16 %v36
  %v219 = vunpack.c.h.b16 %v36
  %v220 = vunpack.c.l.b16 %v37
  %v221 = vunpack.c.h.b16 %v37
  %v222 = vunpack.c.l.b16 %v38
  %v223 = vpack.c.b16 %v188, %v183
  %v224 = vpack.c.b16 %v189, %v184
  %v225 = vpack.c.b16 %v190, %v185
  %v226 = vpack.c.b16 %v191, %v186
  %v227 = vpack.c.b16 %v192, %v187
  %v228 = vpack.c.b16 %v198, %v193
  %v229 = vpack.c.b16 %v199, %v194
  %v230 = vpack.c.b16 %v200, %v195
  %v231 = vpack.c.b16 %v201, %v196
  %v232 = vpack.c.b16 %v202, %v197
  %v233 = vpack.c.b16 %v208, %v203
  %v234 = vpack.c.b16 %v209, %v204
  %v235 = vpack.c.b16 %v210, %v205
  %v236 = vpack.c.b16 %v211, %v206
  %v237 = vpack.c.b16 %v212, %v207
  %v238 = vpack.c.b16 %v218, %v213
  %v239 = vpack.c.b16 %v219, %v214
  %v240 = vpack.c.b16 %v220, %v215
  %v241 = vpack.c.b16 %v221, %v216
  %v242 = vpack.c.b16 %v222, %v217
  %v331 = vunpack.c.l.b16 %v39
  %v332 = vunpack.c.l.b16 %v40
  %v333 = vunpack.c.l.b16 %v41
  %v334 = vunpack.c.l.b16 %v42
  %v335 = vunpack.c.l.b16 %v43
  %v336 = vunpack.c.l.b16 %v44
  %v337 = vunpack.c.l.b16 %v45
  %v338 = vunpack.c.l.b16 %v46
  %v339 = vunpack.c.l.b16 %v47
  %v340 = vunpack.c.l.b16 %v48
  %v341 = vunpack.c.l.b16 %v49
  %v342 = vunpack.c.l.b16 %v50
  %v343 = vunpack.c.l.b16 %v51
  %v344 = vunpack.c.l.b16 %v52
  %v345 = vunpack.c.l.b16 %v53
  %v346 = vunpack.c.l.b16 %v54
  %v347 = vunpack.c.l.b16 %v55
  %v348 = vunpack.c.l.b16 %v56
  %v349 = vunpack.c.l.b16 %v57
  %v350 = vunpack.c.l.b16 %v58
  %v351 = vunpack.c.l.b16 %v59
  %v352 = vunpack.c.l.b16 %v60
  %v353 = vunpack.c.l.b16 %v61
  %v354 = vunpack.c.l.b16 %v62
  %v355 = vunpack.c.l.b16 %v63
  %v356 = vunpack.c.l.b16 %v64
  %v357 = vunpack.c.l.b16 %v65
  %v358 = vunpack.c.l.b16 %v66
  %v359 = vunpack.c.l.b16 %v67
  %v360 = vunpack.c.l.b16 %v68
  %v361 = vunpack.c.l.b16 %v69
  %v362 = vunpack.c.l.b16 %v70
  %v363 = vunpack.c.l.b16 %v71
  %v364 = vunpack.c.l.b16 %v72
  %v365 = vunpack.c.l.b16 %v73
  %v366 = vunpack.c.l.b16 %v74
  %v367 = vunpack.c.l.b16 %v75
  %v368 = vunpack.c.l.b16 %v76
  %v369 = vunpack.c.l.b16 %v77
  %v370 = vunpack.c.l.b16 %v78
  %v371 = vunpack.c.l.b16 %v79
  %v372 = vunpack.c.l.b16 %v80
  %v373 = vunpack.c.l.b16 %v81
  %v374 = vunpack.c.l.b16 %v82
  %v375 = vunpack.c.l.b16 %v83
  %v376 = vunpack.c.l.b16 %v84
  %v377 = vunpack.c.l.b16 %v85
  %v378 = vunpack.c.l.b16 %v86
  %v379 = vunpack.c.l.b16 %v87
  %v380 = vunpack.c.l.b16 %v88
  %v381 = vunpack.c.l.b16 %v89
  %v382 = vunpack.c.l.b16 %v90
  %v383 = vunpack.c.l.b16 %v91
  %v384 = vunpack.c.l.b16 %v92
  %v385 = vunpack.c.l.b16 %v93
  %v386 = vunpack.c.l.b16 %v94
  %v387 = vunpack.c.l.b16 %v95
  %v388 = vunpack.c.l.b16 %v96
  %v389 = vunpack.c.l.b16 %v97
  %v390 = vunpack.c.l.b16 %v98
  %v391 = vunpack.c.l.b16 %v99
  %v392 = vunpack.c.l.b16 %v100
  %v393 = vunpack.c.l.b16 %v101
  %v394 = vunpack.c.l.b16 %v102
  %v395 = vunpack.c.l.b16 %v103
  %v396 = vunpack.c.l.b16 %v104
  %v397 = vunpack.c.l.b16 %v105
  %v398 = vunpack.c.l.b16 %v106
  %v399 = vunpack.c.l.b16 %v107
  %v400 = vunpack.c.l.b16 %v108
  %v401 = vunpack.c.l.b16 %v109
  %v402 = vunpack.c.l.b16 %v110
  %v403 = vpack.c.b16 %v332, %v331
  %v404 = vpack.c.b16 %v334, %v333
  %v405 = vpack.c.b16 %v336, %v335
  %v406 = vpack.c.b16 %v338, %v337
  %v407 = vpack.c.b16 %v340, %v339
  %v408 = vpack.c.b16 %v342, %v341
  %v409 = vpack.c.b16 %v344, %v343
  %v410 = vpack.c.b16 %v346, %v345
  %v411 = vpack.c.b16 %v348, %v347
  %v412 = vpack.c.b16 %v350, %v349
  %v413 = vpack.c.b16 %v352, %v351
  %v414 = vpack.c.b16 %v354, %v353
  %v415 = vpack.c.b16 %v356, %v355
  %v416 = vpack.c.b16 %v358, %v357
  %v417 = vpack.c.b16 %v360, %v359
  %v418 = vpack.c.b16 %v362, %v361
  %v419 = vpack.c.b16 %v364, %v363
  %v420 = vpack.c.b16 %v366, %v365
  %v421 = vpack.c.b16 %v368, %v367
  %v422 = vpack.c.b16 %v370, %v369
  %v423 = vpack.c.b16 %v372, %v371
  %v424 = vpack.c.b16 %v374, %v373
  %v425 = vpack.c.b16 %v376, %v375
  %v426 = vpack.c.b16 %v378, %v377
  %v427 = vpack.c.b16 %v380, %v379
  %v428 = vpack.c.b16 %v382, %v381
  %v429 = vpack.c.b16 %v384, %v383
  %v430 = vpack.c.b16 %v386, %v385
  %v431 = vpack.c.b16 %v388, %v387
  %v432 = vpack.c.b16 %v390, %v389
  %v433 = vpack.c.b16 %v392, %v391
  %v434 = vpack.c.b16 %v394, %v393
  %v435 = vpack.c.b16 %v396, %v395
  %v436 = vpack.c.b16 %v398, %v397
  %v437 = vpack.c.b16 %v400, %v399
  %v438 = vpack.c.b16 %v402, %v401
  %vm475 = vcmask 523264
  %v477 = vsel %vm475, %v227, 0
  %v480 = vsel %vm475, %v232, 0
  %v483 = vsel %vm475, %v237, 0
  %v486 = vsel %vm475, %v242, 0
  %488 = vmatpush.bf16.msra.mxu0 %v410
  %489 = vmatpush.bf16.msra.mxu0 %v409
  %490 = vmatpush.bf16.msra.mxu0 %v408
  %491 = vmatpush.bf16.msra.mxu0 %v407
  %492 = vmatpush.bf16.msra.mxu0 %v406
  %493 = vmatpush.bf16.msra.mxu0 %v405
  %494 = vmatpush.bf16.msra.mxu0 %v404
  %495 = vmatpush.bf16.msra.mxu0 %v403
  %496 = vmatmul.bf16.gmra.mxu0 %v223
  %v497 = vpop.f32.mrf.mxu0
  %v498 = vadd.f32 %v122, %v497
  %v499 = vpop.f32.mrf.mxu0
  %v500 = vadd.f32 %v127, %v499
  %501 = vmatmul.bf16.gmra.mxu0 %v228
  %v502 = vpop.f32.mrf.mxu0
  %v503 = vadd.f32 %v132, %v502
  %v504 = vpop.f32.mrf.mxu0
  %v505 = vadd.f32 %v137, %v504
  %506 = vmatmul.bf16.gmra.mxu0 %v233
  %v507 = vpop.f32.mrf.mxu0
  %v508 = vadd.f32 %v142, %v507
  %v509 = vpop.f32.mrf.mxu0
  %v510 = vadd.f32 %v147, %v509
  %511 = vmatmul.bf16.gmra.mxu0 %v238
  %v512 = vpop.f32.mrf.mxu0
  %v513 = vadd.f32 %v152, %v512
  %v514 = vpop.f32.mrf.mxu0
  %v515 = vadd.f32 %v157, %v514
  %516 = vdwg.mxu0
  %517 = vmatpush.bf16.msra.mxu0 %v418
  %518 = vmatpush.bf16.msra.mxu0 %v417
  %519 = vmatpush.bf16.msra.mxu0 %v416
  %520 = vmatpush.bf16.msra.mxu0 %v415
  %521 = vmatpush.bf16.msra.mxu0 %v414
  %522 = vmatpush.bf16.msra.mxu0 %v413
  %523 = vmatpush.bf16.msra.mxu0 %v412
  %524 = vmatpush.bf16.msra.mxu0 %v411
  %525 = vmatmul.bf16.gmra.mxu0 %v224
  %v526 = vpop.f32.mrf.mxu0
  %v527 = vadd.f32 %v498, %v526
  %v528 = vpop.f32.mrf.mxu0
  %v529 = vadd.f32 %v500, %v528
  %530 = vmatmul.bf16.gmra.mxu0 %v229
  %v531 = vpop.f32.mrf.mxu0
  %v532 = vadd.f32 %v503, %v531
  %v533 = vpop.f32.mrf.mxu0
  %v534 = vadd.f32 %v505, %v533
  %535 = vmatmul.bf16.gmra.mxu0 %v234
  %v536 = vpop.f32.mrf.mxu0
  %v537 = vadd.f32 %v508, %v536
  %v538 = vpop.f32.mrf.mxu0
  %v539 = vadd.f32 %v510, %v538
  %540 = vmatmul.bf16.gmra.mxu0 %v239
  %v541 = vpop.f32.mrf.mxu0
  %v542 = vadd.f32 %v513, %v541
  %v543 = vpop.f32.mrf.mxu0
  %v544 = vadd.f32 %v515, %v543
  %545 = vdwg.mxu0
  %546 = vmatpush.bf16.msra.mxu0 %v426
  %547 = vmatpush.bf16.msra.mxu0 %v425
  %548 = vmatpush.bf16.msra.mxu0 %v424
  %549 = vmatpush.bf16.msra.mxu0 %v423
  %550 = vmatpush.bf16.msra.mxu0 %v422
  %551 = vmatpush.bf16.msra.mxu0 %v421
  %552 = vmatpush.bf16.msra.mxu0 %v420
  %553 = vmatpush.bf16.msra.mxu0 %v419
  %554 = vmatmul.bf16.gmra.mxu0 %v225
  %v555 = vpop.f32.mrf.mxu0
  %v556 = vadd.f32 %v527, %v555
  %v557 = vpop.f32.mrf.mxu0
  %v558 = vadd.f32 %v529, %v557
  %559 = vmatmul.bf16.gmra.mxu0 %v230
  %v560 = vpop.f32.mrf.mxu0
  %v561 = vadd.f32 %v532, %v560
  %v562 = vpop.f32.mrf.mxu0
  %v563 = vadd.f32 %v534, %v562
  %564 = vmatmul.bf16.gmra.mxu0 %v235
  %v565 = vpop.f32.mrf.mxu0
  %v566 = vadd.f32 %v537, %v565
  %v567 = vpop.f32.mrf.mxu0
  %v568 = vadd.f32 %v539, %v567
  %569 = vmatmul.bf16.gmra.mxu0 %v240
  %v570 = vpop.f32.mrf.mxu0
  %v571 = vadd.f32 %v542, %v570
  %v572 = vpop.f32.mrf.mxu0
  %v573 = vadd.f32 %v544, %v572
  %574 = vdwg.mxu0
  %575 = vmatpush.bf16.msra.mxu0 %v434
  %576 = vmatpush.bf16.msra.mxu0 %v433
  %577 = vmatpush.bf16.msra.mxu0 %v432
  %578 = vmatpush.bf16.msra.mxu0 %v431
  %579 = vmatpush.bf16.msra.mxu0 %v430
  %580 = vmatpush.bf16.msra.mxu0 %v429
  %581 = vmatpush.bf16.msra.mxu0 %v428
  %582 = vmatpush.bf16.msra.mxu0 %v427
  %583 = vmatmul.bf16.gmra.mxu0 %v226
  %v584 = vpop.f32.mrf.mxu0
  %v585 = vadd.f32 %v556, %v584
  %v586 = vpop.f32.mrf.mxu0
  %v587 = vadd.f32 %v558, %v586
  %588 = vmatmul.bf16.gmra.mxu0 %v231
  %v589 = vpop.f32.mrf.mxu0
  %v590 = vadd.f32 %v561, %v589
  %v591 = vpop.f32.mrf.mxu0
  %v592 = vadd.f32 %v563, %v591
  %593 = vmatmul.bf16.gmra.mxu0 %v236
  %v594 = vpop.f32.mrf.mxu0
  %v595 = vadd.f32 %v566, %v594
  %v596 = vpop.f32.mrf.mxu0
  %v597 = vadd.f32 %v568, %v596
  %598 = vmatmul.bf16.gmra.mxu0 %v241
  %v599 = vpop.f32.mrf.mxu0
  %v600 = vadd.f32 %v571, %v599
  %v601 = vpop.f32.mrf.mxu0
  %v602 = vadd.f32 %v573, %v601
  %603 = vdwg.mxu0
  %604 = vmatpush.bf16.msra.mxu0 0
  %605 = vmatpush.bf16.msra.mxu0 0
  %606 = vmatpush.bf16.msra.mxu0 0
  %607 = vmatpush.bf16.msra.mxu0 0
  %608 = vmatpush.bf16.msra.mxu0 %v438
  %609 = vmatpush.bf16.msra.mxu0 %v437
  %610 = vmatpush.bf16.msra.mxu0 %v436
  %611 = vmatpush.bf16.msra.mxu0 %v435
  %612 = vmatmul.bf16.gmra.mxu0 %v477
  %v613 = vpop.f32.mrf.mxu0
  %v614 = vadd.f32 %v585, %v613
  %v615 = vpop.f32.mrf.mxu0
  %v616 = vadd.f32 %v587, %v615
  %617 = vmatmul.bf16.gmra.mxu0 %v480
  %v618 = vpop.f32.mrf.mxu0
  %v619 = vadd.f32 %v590, %v618
  %v620 = vpop.f32.mrf.mxu0
  %v621 = vadd.f32 %v592, %v620
  %622 = vmatmul.bf16.gmra.mxu0 %v483
  %v623 = vpop.f32.mrf.mxu0
  %v624 = vadd.f32 %v595, %v623
  %v625 = vpop.f32.mrf.mxu0
  %v626 = vadd.f32 %v597, %v625
  %627 = vmatmul.bf16.gmra.mxu0 %v486
  %v628 = vpop.f32.mrf.mxu0
  %v629 = vadd.f32 %v600, %v628
  %v630 = vpop.f32.mrf.mxu0
  %v631 = vadd.f32 %v602, %v630
  %632 = vdwg.mxu0
  %v633 = vmax.f32 %v614, 0.0
  %v634 = vmax.f32 %v616, 0.0
  %v635 = vmax.f32 %v619, 0.0
  %v636 = vmax.f32 %v621, 0.0
  %v637 = vmax.f32 %v624, 0.0
  %v638 = vmax.f32 %v626, 0.0
  %v639 = vmax.f32 %v629, 0.0
  %v640 = vmax.f32 %v631, 0.0
  %v641 = vpack.c.bf16 %v633, %v633
  %v642 = vpack.c.bf16 %v634, %v634
  %v643 = vpack.c.bf16 %v635, %v635
  %v644 = vpack.c.bf16 %v636, %v636
  %v645 = vpack.c.bf16 %v637, %v637
  %v646 = vpack.c.bf16 %v638, %v638
  %v647 = vpack.c.bf16 %v639, %v639
  %v648 = vpack.c.bf16 %v640, %v640
  %649 = vst [vmem:[%s3] sm:$0xf] %v641
  %650 = vst [vmem:[%s3 + $0x4] sm:$0xf] %v642
  %651 = vst [vmem:[%s3 + $0x8] sm:$0xf] %v643
  %652 = vst [vmem:[%s3 + $0xc] sm:$0xf] %v644
  %653 = vst [vmem:[%s3 + $0x10] sm:$0xf] %v645
  %654 = vst [vmem:[%s3 + $0x14] sm:$0xf] %v646
  %655 = vst [vmem:[%s3 + $0x18] sm:$0xf] %v647
  %656 = vst [vmem:[%s3 + $0x1c] sm:$0xf] %v648
  // Predicated region
  $region14: #{flappy_bird_cnn.6} parent=0 // pred_check
    _
  $region15: #{flappy_bird_cnn.6} parent=0 // pred_check_branch
    %658 = sbr.rel (0) target = $region17
  $region16: #{flappy_bird_cnn.6} parent=0 // pred_region
    _
  $region17: #{flappy_bird_cnn.6} parent=0 // pred_fallthru
    _
  // Predicated region
  $region18: #{flappy_bird_cnn.6} parent=0 // pred_check
    _
  $region19: #{flappy_bird_cnn.6} parent=0 // pred_check_branch
    %660 = sbr.rel (0) target = $region21
  $region20: #{flappy_bird_cnn.6} parent=0 // pred_region
    _
  $region21: #{flappy_bird_cnn.6} parent=0 // pred_fallthru
    _

// kernel: flappy_bird_cnn.7
$region0: #{flappy_bird_cnn.7}
  #allocation0 [shape = 'u32[]', space=smem, size = 0x4, offset = 0x4, fixed_abs, tag = 'smem constant byte address 0x4 - core index']
  #allocation1 [shape = 'u32[72,128]{1,0:T(1,128)}', space=vmem, size = 0x9000, scoped, tag = 'internal scratch']
  %s0 = inlined_call_operand.vmem [shape: bf16[2,2304], index: 0, kind: input, shape index: {}]
  %s1 = inlined_call_operand.vmem [shape: bf16[2304,512], index: 1, kind: input, shape index: {}]
  %s2 = inlined_call_operand.vmem [shape: f32[1,512], index: 2, kind: input, shape index: {}]
  %s3 = inlined_call_operand.vmem [shape: f32[512,128], index: 3, kind: input, shape index: {}]
  %s4 = inlined_call_operand.vmem [shape: f32[1,128], index: 4, kind: input, shape index: {}]
  %s5 = inlined_call_operand.hbm [shape: f32[2,128], index: 5, kind: output, shape index: {}]
  %s6 = sld [smem:[#allocation0]]
  $region30: #{flappy_bird_cnn.7} parent=0
    _
  %s8 = ssub.s32 1, %s6
  %s9 = scalar_select 0, %s8, %s6
  $region1: #{flappy_bird_cnn.7} parent=0
    #allocation2 [shape = 'u8[1024]{0}', space=vmem, size = 0x400, scoped, tag = 'output window, operand 0, single buffered']
    #allocation3 [shape = 's32[1]{0}', space=sflag, size = 0x4, scoped, tag = 'scoped memory for flappy_bird_cnn.7']
    %10 = vsyncpa [#allocation3], 0
    // Predicated region
    $region2: #{flappy_bird_cnn.7} parent=1 // pred_check
      _
    $region3: #{flappy_bird_cnn.7} parent=1 // pred_check_branch
      %12 = sbr.rel (0) target = $region5
    $region4: #{flappy_bird_cnn.7} parent=1 // pred_region
      _
    $region5: #{flappy_bird_cnn.7} parent=1 // pred_fallthru
      _
    // Predicated region
    $region6: #{flappy_bird_cnn.7} parent=1 // pred_check
      _
    $region7: #{flappy_bird_cnn.7} parent=1 // pred_check_branch
      %14 = sbr.rel (0) target = $region9
    $region8: #{flappy_bird_cnn.7} parent=1 // pred_region
      _
    $region9: #{flappy_bird_cnn.7} parent=1 // pred_fallthru
      _
    // Predicated region
    $region10: #{flappy_bird_cnn.7} parent=1 // pred_check
      _
    $region11: #{flappy_bird_cnn.7} parent=1 // pred_check_branch
      %16 = sbr.rel (0) target = $region13
    $region12: #{flappy_bird_cnn.7} parent=1 // pred_region
      _
    $region13: #{flappy_bird_cnn.7} parent=1 // pred_fallthru
      _
    // Predicated region
    $region14: #{flappy_bird_cnn.7} parent=1 // pred_check
      _
    $region15: #{flappy_bird_cnn.7} parent=1 // pred_check_branch
      %18 = sbr.rel (0) target = $region17
    $region16: #{flappy_bird_cnn.7} parent=1 // pred_region
      _
    $region17: #{flappy_bird_cnn.7} parent=1 // pred_fallthru
      _
    // Predicated region
    $region18: #{flappy_bird_cnn.7} parent=1 // pred_check
      _
    $region19: #{flappy_bird_cnn.7} parent=1 // pred_check_branch
      %20 = sbr.rel (0) target = $region21
    $region20: #{flappy_bird_cnn.7} parent=1 // pred_region
      _
    $region21: #{flappy_bird_cnn.7} parent=1 // pred_fallthru
      _
    %v21 = vld [vmem:[%s0] sm:$0xff]
    %v22 = vld [vmem:[%s0 + $0x8] sm:$0xff]
    %v23 = vld [vmem:[%s0 + $0x10] sm:$0x3]
    %v24 = vld [vmem:[%s1] sm:$0xff]
    %v25 = vld [vmem:[%s1 + $0x8] sm:$0xff]
    %v26 = vld [vmem:[%s1 + $0x10] sm:$0xff]
    %v27 = vld [vmem:[%s1 + $0x18] sm:$0xff]
    %v28 = vld [vmem:[%s1 + $0x20] sm:$0xff]
    %v29 = vld [vmem:[%s1 + $0x28] sm:$0xff]
    %v30 = vld [vmem:[%s1 + $0x30] sm:$0xff]
    %v31 = vld [vmem:[%s1 + $0x38] sm:$0xff]
    %v32 = vld [vmem:[%s1 + $0x40] sm:$0xff]
    %v33 = vld [vmem:[%s1 + $0x48] sm:$0xff]
    %v34 = vld [vmem:[%s1 + $0x50] sm:$0xff]
    %v35 = vld [vmem:[%s1 + $0x58] sm:$0xff]
    %v36 = vld [vmem:[%s1 + $0x60] sm:$0xff]
    %v37 = vld [vmem:[%s1 + $0x68] sm:$0xff]
    %v38 = vld [vmem:[%s1 + $0x70] sm:$0xff]
    %v39 = vld [vmem:[%s1 + $0x78] sm:$0xff]
    %v40 = vld [vmem:[%s1 + $0x80] sm:$0xff]
    %v41 = vld [vmem:[%s1 + $0x88] sm:$0xff]
    %v42 = vld [vmem:[%s1 + $0x90] sm:$0xff]
    %v43 = vld [vmem:[%s1 + $0x98] sm:$0xff]
    %v44 = vld [vmem:[%s1 + $0xa0] sm:$0xff]
    %v45 = vld [vmem:[%s1 + $0xa8] sm:$0xff]
    %v46 = vld [vmem:[%s1 + $0xb0] sm:$0xff]
    %v47 = vld [vmem:[%s1 + $0xb8] sm:$0xff]
    %v48 = vld [vmem:[%s1 + $0xc0] sm:$0xff]
    %v49 = vld [vmem:[%s1 + $0xc8] sm:$0xff]
    %v50 = vld [vmem:[%s1 + $0xd0] sm:$0xff]
    %v51 = vld [vmem:[%s1 + $0xd8] sm:$0xff]
    %v52 = vld [vmem:[%s1 + $0xe0] sm:$0xff]
    %v53 = vld [vmem:[%s1 + $0xe8] sm:$0xff]
    %v54 = vld [vmem:[%s1 + $0xf0] sm:$0xff]
    %v55 = vld [vmem:[%s1 + $0xf8] sm:$0xff]
    %v56 = vld [vmem:[%s1 + $0x100] sm:$0xff]
    %v57 = vld [vmem:[%s1 + $0x108] sm:$0xff]
    %v58 = vld [vmem:[%s1 + $0x110] sm:$0xff]
    %v59 = vld [vmem:[%s1 + $0x118] sm:$0xff]
    %v60 = vld [vmem:[%s1 + $0x120] sm:$0xff]
    %v61 = vld [vmem:[%s1 + $0x128] sm:$0xff]
    %v62 = vld [vmem:[%s1 + $0x130] sm:$0xff]
    %v63 = vld [vmem:[%s1 + $0x138] sm:$0xff]
    %v64 = vld [vmem:[%s1 + $0x140] sm:$0xff]
    %v65 = vld [vmem:[%s1 + $0x148] sm:$0xff]
    %v66 = vld [vmem:[%s1 + $0x150] sm:$0xff]
    %v67 = vld [vmem:[%s1 + $0x158] sm:$0xff]
    %v68 = vld [vmem:[%s1 + $0x160] sm:$0xff]
    %v69 = vld [vmem:[%s1 + $0x168] sm:$0xff]
    %v70 = vld [vmem:[%s1 + $0x170] sm:$0xff]
    %v71 = vld [vmem:[%s1 + $0x178] sm:$0xff]
    %v72 = vld [vmem:[%s1 + $0x180] sm:$0xff]
    %v73 = vld [vmem:[%s1 + $0x188] sm:$0xff]
    %v74 = vld [vmem:[%s1 + $0x190] sm:$0xff]
    %v75 = vld [vmem:[%s1 + $0x198] sm:$0xff]
    %v76 = vld [vmem:[%s1 + $0x1a0] sm:$0xff]
    %v77 = vld [vmem:[%s1 + $0x1a8] sm:$0xff]
    %v78 = vld [vmem:[%s1 + $0x1b0] sm:$0xff]
    %v79 = vld [vmem:[%s1 + $0x1b8] sm:$0xff]
    %v80 = vld [vmem:[%s1 + $0x1c0] sm:$0xff]
    %v81 = vld [vmem:[%s1 + $0x1c8] sm:$0xff]
    %v82 = vld [vmem:[%s1 + $0x1d0] sm:$0xff]
    %v83 = vld [vmem:[%s1 + $0x1d8] sm:$0xff]
    %v84 = vld [vmem:[%s1 + $0x1e0] sm:$0xff]
    %v85 = vld [vmem:[%s1 + $0x1e8] sm:$0xff]
    %v86 = vld [vmem:[%s1 + $0x1f0] sm:$0xff]
    %v87 = vld [vmem:[%s1 + $0x1f8] sm:$0xff]
    %v88 = vld [vmem:[%s1 + $0x200] sm:$0xff]
    %v89 = vld [vmem:[%s1 + $0x208] sm:$0xff]
    %v90 = vld [vmem:[%s1 + $0x210] sm:$0xff]
    %v91 = vld [vmem:[%s1 + $0x218] sm:$0xff]
    %v92 = vld [vmem:[%s1 + $0x220] sm:$0xff]
    %v93 = vld [vmem:[%s1 + $0x228] sm:$0xff]
    %v94 = vld [vmem:[%s1 + $0x230] sm:$0xff]
    %v95 = vld [vmem:[%s1 + $0x238] sm:$0xff]
    %v96 = vld [vmem:[%s1 + $0x240] sm:$0xff]
    %v97 = vld [vmem:[%s1 + $0x248] sm:$0xff]
    %v98 = vld [vmem:[%s1 + $0x250] sm:$0xff]
    %v99 = vld [vmem:[%s1 + $0x258] sm:$0xff]
    %v100 = vld [vmem:[%s1 + $0x260] sm:$0xff]
    %v101 = vld [vmem:[%s1 + $0x268] sm:$0xff]
    %v102 = vld [vmem:[%s1 + $0x270] sm:$0xff]
    %v103 = vld [vmem:[%s1 + $0x278] sm:$0xff]
    %v104 = vld [vmem:[%s1 + $0x280] sm:$0xff]
    %v105 = vld [vmem:[%s1 + $0x288] sm:$0xff]
    %v106 = vld [vmem:[%s1 + $0x290] sm:$0xff]
    %v107 = vld [vmem:[%s1 + $0x298] sm:$0xff]
    %v108 = vld [vmem:[%s1 + $0x2a0] sm:$0xff]
    %v109 = vld [vmem:[%s1 + $0x2a8] sm:$0xff]
    %v110 = vld [vmem:[%s1 + $0x2b0] sm:$0xff]
    %v111 = vld [vmem:[%s1 + $0x2b8] sm:$0xff]
    %v112 = vld [vmem:[%s1 + $0x2c0] sm:$0xff]
    %v113 = vld [vmem:[%s1 + $0x2c8] sm:$0xff]
    %v114 = vld [vmem:[%s1 + $0x2d0] sm:$0xff]
    %v115 = vld [vmem:[%s1 + $0x2d8] sm:$0xff]
    %v116 = vld [vmem:[%s1 + $0x2e0] sm:$0xff]
    %v117 = vld [vmem:[%s1 + $0x2e8] sm:$0xff]
    %v118 = vld [vmem:[%s1 + $0x2f0] sm:$0xff]
    %v119 = vld [vmem:[%s1 + $0x2f8] sm:$0xff]
    %v120 = vld [vmem:[%s1 + $0x300] sm:$0xff]
    %v121 = vld [vmem:[%s1 + $0x308] sm:$0xff]
    %v122 = vld [vmem:[%s1 + $0x310] sm:$0xff]
    %v123 = vld [vmem:[%s1 + $0x318] sm:$0xff]
    %v124 = vld [vmem:[%s1 + $0x320] sm:$0xff]
    %v125 = vld [vmem:[%s1 + $0x328] sm:$0xff]
    %v126 = vld [vmem:[%s1 + $0x330] sm:$0xff]
    %v127 = vld [vmem:[%s1 + $0x338] sm:$0xff]
    %v128 = vld [vmem:[%s1 + $0x340] sm:$0xff]
    %v129 = vld [vmem:[%s1 + $0x348] sm:$0xff]
    %v130 = vld [vmem:[%s1 + $0x350] sm:$0xff]
    %v131 = vld [vmem:[%s1 + $0x358] sm:$0xff]
    %v132 = vld [vmem:[%s1 + $0x360] sm:$0xff]
    %v133 = vld [vmem:[%s1 + $0x368] sm:$0xff]
    %v134 = vld [vmem:[%s1 + $0x370] sm:$0xff]
    %v135 = vld [vmem:[%s1 + $0x378] sm:$0xff]
    %v136 = vld [vmem:[%s1 + $0x380] sm:$0xff]
    %v137 = vld [vmem:[%s1 + $0x388] sm:$0xff]
    %v138 = vld [vmem:[%s1 + $0x390] sm:$0xff]
    %v139 = vld [vmem:[%s1 + $0x398] sm:$0xff]
    %v140 = vld [vmem:[%s1 + $0x3a0] sm:$0xff]
    %v141 = vld [vmem:[%s1 + $0x3a8] sm:$0xff]
    %v142 = vld [vmem:[%s1 + $0x3b0] sm:$0xff]
    %v143 = vld [vmem:[%s1 + $0x3b8] sm:$0xff]
    %v144 = vld [vmem:[%s1 + $0x3c0] sm:$0xff]
    %v145 = vld [vmem:[%s1 + $0x3c8] sm:$0xff]
    %v146 = vld [vmem:[%s1 + $0x3d0] sm:$0xff]
    %v147 = vld [vmem:[%s1 + $0x3d8] sm:$0xff]
    %v148 = vld [vmem:[%s1 + $0x3e0] sm:$0xff]
    %v149 = vld [vmem:[%s1 + $0x3e8] sm:$0xff]
    %v150 = vld [vmem:[%s1 + $0x3f0] sm:$0xff]
    %v151 = vld [vmem:[%s1 + $0x3f8] sm:$0xff]
    %v152 = vld [vmem:[%s1 + $0x400] sm:$0xff]
    %v153 = vld [vmem:[%s1 + $0x408] sm:$0xff]
    %v154 = vld [vmem:[%s1 + $0x410] sm:$0xff]
    %v155 = vld [vmem:[%s1 + $0x418] sm:$0xff]
    %v156 = vld [vmem:[%s1 + $0x420] sm:$0xff]
    %v157 = vld [vmem:[%s1 + $0x428] sm:$0xff]
    %v158 = vld [vmem:[%s1 + $0x430] sm:$0xff]
    %v159 = vld [vmem:[%s1 + $0x438] sm:$0xff]
    %v160 = vld [vmem:[%s1 + $0x440] sm:$0xff]
    %v161 = vld [vmem:[%s1 + $0x448] sm:$0xff]
    %v162 = vld [vmem:[%s1 + $0x450] sm:$0xff]
    %v163 = vld [vmem:[%s1 + $0x458] sm:$0xff]
    %v164 = vld [vmem:[%s1 + $0x460] sm:$0xff]
    %v165 = vld [vmem:[%s1 + $0x468] sm:$0xff]
    %v166 = vld [vmem:[%s1 + $0x470] sm:$0xff]
    %v167 = vld [vmem:[%s1 + $0x478] sm:$0xff]
    %v168 = vld [vmem:[%s1 + $0x480] sm:$0xff]
    %v169 = vld [vmem:[%s1 + $0x488] sm:$0xff]
    %v170 = vld [vmem:[%s1 + $0x490] sm:$0xff]
    %v171 = vld [vmem:[%s1 + $0x498] sm:$0xff]
    %v172 = vld [vmem:[%s1 + $0x4a0] sm:$0xff]
    %v173 = vld [vmem:[%s1 + $0x4a8] sm:$0xff]
    %v174 = vld [vmem:[%s1 + $0x4b0] sm:$0xff]
    %v175 = vld [vmem:[%s1 + $0x4b8] sm:$0xff]
    %v176 = vld [vmem:[%s1 + $0x4c0] sm:$0xff]
    %v177 = vld [vmem:[%s1 + $0x4c8] sm:$0xff]
    %v178 = vld [vmem:[%s1 + $0x4d0] sm:$0xff]
    %v179 = vld [vmem:[%s1 + $0x4d8] sm:$0xff]
    %v180 = vld [vmem:[%s1 + $0x4e0] sm:$0xff]
    %v181 = vld [vmem:[%s1 + $0x4e8] sm:$0xff]
    %v182 = vld [vmem:[%s1 + $0x4f0] sm:$0xff]
    %v183 = vld [vmem:[%s1 + $0x4f8] sm:$0xff]
    %v184 = vld [vmem:[%s1 + $0x500] sm:$0xff]
    %v185 = vld [vmem:[%s1 + $0x508] sm:$0xff]
    %v186 = vld [vmem:[%s1 + $0x510] sm:$0xff]
    %v187 = vld [vmem:[%s1 + $0x518] sm:$0xff]
    %v188 = vld [vmem:[%s1 + $0x520] sm:$0xff]
    %v189 = vld [vmem:[%s1 + $0x528] sm:$0xff]
    %v190 = vld [vmem:[%s1 + $0x530] sm:$0xff]
    %v191 = vld [vmem:[%s1 + $0x538] sm:$0xff]
    %v192 = vld [vmem:[%s1 + $0x540] sm:$0xff]
    %v193 = vld [vmem:[%s1 + $0x548] sm:$0xff]
    %v194 = vld [vmem:[%s1 + $0x550] sm:$0xff]
    %v195 = vld [vmem:[%s1 + $0x558] sm:$0xff]
    %v196 = vld [vmem:[%s1 + $0x560] sm:$0xff]
    %v197 = vld [vmem:[%s1 + $0x568] sm:$0xff]
    %v198 = vld [vmem:[%s1 + $0x570] sm:$0xff]
    %v199 = vld [vmem:[%s1 + $0x578] sm:$0xff]
    %v200 = vld [vmem:[%s1 + $0x580] sm:$0xff]
    %v201 = vld [vmem:[%s1 + $0x588] sm:$0xff]
    %v202 = vld [vmem:[%s1 + $0x590] sm:$0xff]
    %v203 = vld [vmem:[%s1 + $0x598] sm:$0xff]
    %v204 = vld [vmem:[%s1 + $0x5a0] sm:$0xff]
    %v205 = vld [vmem:[%s1 + $0x5a8] sm:$0xff]
    %v206 = vld [vmem:[%s1 + $0x5b0] sm:$0xff]
    %v207 = vld [vmem:[%s1 + $0x5b8] sm:$0xff]
    %v208 = vld [vmem:[%s1 + $0x5c0] sm:$0xff]
    %v209 = vld [vmem:[%s1 + $0x5c8] sm:$0xff]
    %v210 = vld [vmem:[%s1 + $0x5d0] sm:$0xff]
    %v211 = vld [vmem:[%s1 + $0x5d8] sm:$0xff]
    %v212 = vld [vmem:[%s1 + $0x5e0] sm:$0xff]
    %v213 = vld [vmem:[%s1 + $0x5e8] sm:$0xff]
    %v214 = vld [vmem:[%s1 + $0x5f0] sm:$0xff]
    %v215 = vld [vmem:[%s1 + $0x5f8] sm:$0xff]
    %v216 = vld [vmem:[%s1 + $0x600] sm:$0xff]
    %v217 = vld [vmem:[%s1 + $0x608] sm:$0xff]
    %v218 = vld [vmem:[%s1 + $0x610] sm:$0xff]
    %v219 = vld [vmem:[%s1 + $0x618] sm:$0xff]
    %v220 = vld [vmem:[%s1 + $0x620] sm:$0xff]
    %v221 = vld [vmem:[%s1 + $0x628] sm:$0xff]
    %v222 = vld [vmem:[%s1 + $0x630] sm:$0xff]
    %v223 = vld [vmem:[%s1 + $0x638] sm:$0xff]
    %v224 = vld [vmem:[%s1 + $0x640] sm:$0xff]
    %v225 = vld [vmem:[%s1 + $0x648] sm:$0xff]
    %v226 = vld [vmem:[%s1 + $0x650] sm:$0xff]
    %v227 = vld [vmem:[%s1 + $0x658] sm:$0xff]
    %v228 = vld [vmem:[%s1 + $0x660] sm:$0xff]
    %v229 = vld [vmem:[%s1 + $0x668] sm:$0xff]
    %v230 = vld [vmem:[%s1 + $0x670] sm:$0xff]
    %v231 = vld [vmem:[%s1 + $0x678] sm:$0xff]
    %v232 = vld [vmem:[%s1 + $0x680] sm:$0xff]
    %v233 = vld [vmem:[%s1 + $0x688] sm:$0xff]
    %v234 = vld [vmem:[%s1 + $0x690] sm:$0xff]
    %v235 = vld [vmem:[%s1 + $0x698] sm:$0xff]
    %v236 = vld [vmem:[%s1 + $0x6a0] sm:$0xff]
    %v237 = vld [vmem:[%s1 + $0x6a8] sm:$0xff]
    %v238 = vld [vmem:[%s1 + $0x6b0] sm:$0xff]
    %v239 = vld [vmem:[%s1 + $0x6b8] sm:$0xff]
    %v240 = vld [vmem:[%s1 + $0x6c0] sm:$0xff]
    %v241 = vld [vmem:[%s1 + $0x6c8] sm:$0xff]
    %v242 = vld [vmem:[%s1 + $0x6d0] sm:$0xff]
    %v243 = vld [vmem:[%s1 + $0x6d8] sm:$0xff]
    %v244 = vld [vmem:[%s1 + $0x6e0] sm:$0xff]
    %v245 = vld [vmem:[%s1 + $0x6e8] sm:$0xff]
    %v246 = vld [vmem:[%s1 + $0x6f0] sm:$0xff]
    %v247 = vld [vmem:[%s1 + $0x6f8] sm:$0xff]
    %v248 = vld [vmem:[%s1 + $0x700] sm:$0xff]
    %v249 = vld [vmem:[%s1 + $0x708] sm:$0xff]
    %v250 = vld [vmem:[%s1 + $0x710] sm:$0xff]
    %v251 = vld [vmem:[%s1 + $0x718] sm:$0xff]
    %v252 = vld [vmem:[%s1 + $0x720] sm:$0xff]
    %v253 = vld [vmem:[%s1 + $0x728] sm:$0xff]
    %v254 = vld [vmem:[%s1 + $0x730] sm:$0xff]
    %v255 = vld [vmem:[%s1 + $0x738] sm:$0xff]
    %v256 = vld [vmem:[%s1 + $0x740] sm:$0xff]
    %v257 = vld [vmem:[%s1 + $0x748] sm:$0xff]
    %v258 = vld [vmem:[%s1 + $0x750] sm:$0xff]
    %v259 = vld [vmem:[%s1 + $0x758] sm:$0xff]
    %v260 = vld [vmem:[%s1 + $0x760] sm:$0xff]
    %v261 = vld [vmem:[%s1 + $0x768] sm:$0xff]
    %v262 = vld [vmem:[%s1 + $0x770] sm:$0xff]
    %v263 = vld [vmem:[%s1 + $0x778] sm:$0xff]
    %v264 = vld [vmem:[%s1 + $0x780] sm:$0xff]
    %v265 = vld [vmem:[%s1 + $0x788] sm:$0xff]
    %v266 = vld [vmem:[%s1 + $0x790] sm:$0xff]
    %v267 = vld [vmem:[%s1 + $0x798] sm:$0xff]
    %v268 = vld [vmem:[%s1 + $0x7a0] sm:$0xff]
    %v269 = vld [vmem:[%s1 + $0x7a8] sm:$0xff]
    %v270 = vld [vmem:[%s1 + $0x7b0] sm:$0xff]
    %v271 = vld [vmem:[%s1 + $0x7b8] sm:$0xff]
    %v272 = vld [vmem:[%s1 + $0x7c0] sm:$0xff]
    %v273 = vld [vmem:[%s1 + $0x7c8] sm:$0xff]
    %v274 = vld [vmem:[%s1 + $0x7d0] sm:$0xff]
    %v275 = vld [vmem:[%s1 + $0x7d8] sm:$0xff]
    %v276 = vld [vmem:[%s1 + $0x7e0] sm:$0xff]
    %v277 = vld [vmem:[%s1 + $0x7e8] sm:$0xff]
    %v278 = vld [vmem:[%s1 + $0x7f0] sm:$0xff]
    %v279 = vld [vmem:[%s1 + $0x7f8] sm:$0xff]
    %v280 = vld [vmem:[%s1 + $0x800] sm:$0xff]
    %v281 = vld [vmem:[%s1 + $0x808] sm:$0xff]
    %v282 = vld [vmem:[%s1 + $0x810] sm:$0xff]
    %v283 = vld [vmem:[%s1 + $0x818] sm:$0xff]
    %v284 = vld [vmem:[%s1 + $0x820] sm:$0xff]
    %v285 = vld [vmem:[%s1 + $0x828] sm:$0xff]
    %v286 = vld [vmem:[%s1 + $0x830] sm:$0xff]
    %v287 = vld [vmem:[%s1 + $0x838] sm:$0xff]
    %v288 = vld [vmem:[%s1 + $0x840] sm:$0xff]
    %v289 = vld [vmem:[%s1 + $0x848] sm:$0xff]
    %v290 = vld [vmem:[%s1 + $0x850] sm:$0xff]
    %v291 = vld [vmem:[%s1 + $0x858] sm:$0xff]
    %v292 = vld [vmem:[%s1 + $0x860] sm:$0xff]
    %v293 = vld [vmem:[%s1 + $0x868] sm:$0xff]
    %v294 = vld [vmem:[%s1 + $0x870] sm:$0xff]
    %v295 = vld [vmem:[%s1 + $0x878] sm:$0xff]
    %v296 = vld [vmem:[%s1 + $0x880] sm:$0xff]
    %v297 = vld [vmem:[%s1 + $0x888] sm:$0xff]
    %v298 = vld [vmem:[%s1 + $0x890] sm:$0xff]
    %v299 = vld [vmem:[%s1 + $0x898] sm:$0xff]
    %v300 = vld [vmem:[%s1 + $0x8a0] sm:$0xff]
    %v301 = vld [vmem:[%s1 + $0x8a8] sm:$0xff]
    %v302 = vld [vmem:[%s1 + $0x8b0] sm:$0xff]
    %v303 = vld [vmem:[%s1 + $0x8b8] sm:$0xff]
    %v304 = vld [vmem:[%s1 + $0x8c0] sm:$0xff]
    %v305 = vld [vmem:[%s1 + $0x8c8] sm:$0xff]
    %v306 = vld [vmem:[%s1 + $0x8d0] sm:$0xff]
    %v307 = vld [vmem:[%s1 + $0x8d8] sm:$0xff]
    %v308 = vld [vmem:[%s1 + $0x8e0] sm:$0xff]
    %v309 = vld [vmem:[%s1 + $0x8e8] sm:$0xff]
    %v310 = vld [vmem:[%s1 + $0x8f0] sm:$0xff]
    %v311 = vld [vmem:[%s1 + $0x8f8] sm:$0xff]
    %v312 = vld [vmem:[%s1 + $0x900] sm:$0xff]
    %v313 = vld [vmem:[%s1 + $0x908] sm:$0xff]
    %v314 = vld [vmem:[%s1 + $0x910] sm:$0xff]
    %v315 = vld [vmem:[%s1 + $0x918] sm:$0xff]
    %v316 = vld [vmem:[%s1 + $0x920] sm:$0xff]
    %v317 = vld [vmem:[%s1 + $0x928] sm:$0xff]
    %v318 = vld [vmem:[%s1 + $0x930] sm:$0xff]
    %v319 = vld [vmem:[%s1 + $0x938] sm:$0xff]
    %v320 = vld [vmem:[%s1 + $0x940] sm:$0xff]
    %v321 = vld [vmem:[%s1 + $0x948] sm:$0xff]
    %v322 = vld [vmem:[%s1 + $0x950] sm:$0xff]
    %v323 = vld [vmem:[%s1 + $0x958] sm:$0xff]
    %v324 = vld [vmem:[%s1 + $0x960] sm:$0xff]
    %v325 = vld [vmem:[%s1 + $0x968] sm:$0xff]
    %v326 = vld [vmem:[%s1 + $0x970] sm:$0xff]
    %v327 = vld [vmem:[%s1 + $0x978] sm:$0xff]
    %v328 = vld [vmem:[%s1 + $0x980] sm:$0xff]
    %v329 = vld [vmem:[%s1 + $0x988] sm:$0xff]
    %v330 = vld [vmem:[%s1 + $0x990] sm:$0xff]
    %v331 = vld [vmem:[%s1 + $0x998] sm:$0xff]
    %v332 = vld [vmem:[%s1 + $0x9a0] sm:$0xff]
    %v333 = vld [vmem:[%s1 + $0x9a8] sm:$0xff]
    %v334 = vld [vmem:[%s1 + $0x9b0] sm:$0xff]
    %v335 = vld [vmem:[%s1 + $0x9b8] sm:$0xff]
    %v336 = vld [vmem:[%s1 + $0x9c0] sm:$0xff]
    %v337 = vld [vmem:[%s1 + $0x9c8] sm:$0xff]
    %v338 = vld [vmem:[%s1 + $0x9d0] sm:$0xff]
    %v339 = vld [vmem:[%s1 + $0x9d8] sm:$0xff]
    %v340 = vld [vmem:[%s1 + $0x9e0] sm:$0xff]
    %v341 = vld [vmem:[%s1 + $0x9e8] sm:$0xff]
    %v342 = vld [vmem:[%s1 + $0x9f0] sm:$0xff]
    %v343 = vld [vmem:[%s1 + $0x9f8] sm:$0xff]
    %v344 = vld [vmem:[%s1 + $0xa00] sm:$0xff]
    %v345 = vld [vmem:[%s1 + $0xa08] sm:$0xff]
    %v346 = vld [vmem:[%s1 + $0xa10] sm:$0xff]
    %v347 = vld [vmem:[%s1 + $0xa18] sm:$0xff]
    %v348 = vld [vmem:[%s1 + $0xa20] sm:$0xff]
    %v349 = vld [vmem:[%s1 + $0xa28] sm:$0xff]
    %v350 = vld [vmem:[%s1 + $0xa30] sm:$0xff]
    %v351 = vld [vmem:[%s1 + $0xa38] sm:$0xff]
    %v352 = vld [vmem:[%s1 + $0xa40] sm:$0xff]
    %v353 = vld [vmem:[%s1 + $0xa48] sm:$0xff]
    %v354 = vld [vmem:[%s1 + $0xa50] sm:$0xff]
    %v355 = vld [vmem:[%s1 + $0xa58] sm:$0xff]
    %v356 = vld [vmem:[%s1 + $0xa60] sm:$0xff]
    %v357 = vld [vmem:[%s1 + $0xa68] sm:$0xff]
    %v358 = vld [vmem:[%s1 + $0xa70] sm:$0xff]
    %v359 = vld [vmem:[%s1 + $0xa78] sm:$0xff]
    %v360 = vld [vmem:[%s1 + $0xa80] sm:$0xff]
    %v361 = vld [vmem:[%s1 + $0xa88] sm:$0xff]
    %v362 = vld [vmem:[%s1 + $0xa90] sm:$0xff]
    %v363 = vld [vmem:[%s1 + $0xa98] sm:$0xff]
    %v364 = vld [vmem:[%s1 + $0xaa0] sm:$0xff]
    %v365 = vld [vmem:[%s1 + $0xaa8] sm:$0xff]
    %v366 = vld [vmem:[%s1 + $0xab0] sm:$0xff]
    %v367 = vld [vmem:[%s1 + $0xab8] sm:$0xff]
    %v368 = vld [vmem:[%s1 + $0xac0] sm:$0xff]
    %v369 = vld [vmem:[%s1 + $0xac8] sm:$0xff]
    %v370 = vld [vmem:[%s1 + $0xad0] sm:$0xff]
    %v371 = vld [vmem:[%s1 + $0xad8] sm:$0xff]
    %v372 = vld [vmem:[%s1 + $0xae0] sm:$0xff]
    %v373 = vld [vmem:[%s1 + $0xae8] sm:$0xff]
    %v374 = vld [vmem:[%s1 + $0xaf0] sm:$0xff]
    %v375 = vld [vmem:[%s1 + $0xaf8] sm:$0xff]
    %v376 = vld [vmem:[%s1 + $0xb00] sm:$0xff]
    %v377 = vld [vmem:[%s1 + $0xb08] sm:$0xff]
    %v378 = vld [vmem:[%s1 + $0xb10] sm:$0xff]
    %v379 = vld [vmem:[%s1 + $0xb18] sm:$0xff]
    %v380 = vld [vmem:[%s1 + $0xb20] sm:$0xff]
    %v381 = vld [vmem:[%s1 + $0xb28] sm:$0xff]
    %v382 = vld [vmem:[%s1 + $0xb30] sm:$0xff]
    %v383 = vld [vmem:[%s1 + $0xb38] sm:$0xff]
    %v384 = vld [vmem:[%s1 + $0xb40] sm:$0xff]
    %v385 = vld [vmem:[%s1 + $0xb48] sm:$0xff]
    %v386 = vld [vmem:[%s1 + $0xb50] sm:$0xff]
    %v387 = vld [vmem:[%s1 + $0xb58] sm:$0xff]
    %v388 = vld [vmem:[%s1 + $0xb60] sm:$0xff]
    %v389 = vld [vmem:[%s1 + $0xb68] sm:$0xff]
    %v390 = vld [vmem:[%s1 + $0xb70] sm:$0xff]
    %v391 = vld [vmem:[%s1 + $0xb78] sm:$0xff]
    %v392 = vld [vmem:[%s1 + $0xb80] sm:$0xff]
    %v393 = vld [vmem:[%s1 + $0xb88] sm:$0xff]
    %v394 = vld [vmem:[%s1 + $0xb90] sm:$0xff]
    %v395 = vld [vmem:[%s1 + $0xb98] sm:$0xff]
    %v396 = vld [vmem:[%s1 + $0xba0] sm:$0xff]
    %v397 = vld [vmem:[%s1 + $0xba8] sm:$0xff]
    %v398 = vld [vmem:[%s1 + $0xbb0] sm:$0xff]
    %v399 = vld [vmem:[%s1 + $0xbb8] sm:$0xff]
    %v400 = vld [vmem:[%s1 + $0xbc0] sm:$0xff]
    %v401 = vld [vmem:[%s1 + $0xbc8] sm:$0xff]
    %v402 = vld [vmem:[%s1 + $0xbd0] sm:$0xff]
    %v403 = vld [vmem:[%s1 + $0xbd8] sm:$0xff]
    %v404 = vld [vmem:[%s1 + $0xbe0] sm:$0xff]
    %v405 = vld [vmem:[%s1 + $0xbe8] sm:$0xff]
    %v406 = vld [vmem:[%s1 + $0xbf0] sm:$0xff]
    %v407 = vld [vmem:[%s1 + $0xbf8] sm:$0xff]
    %v408 = vld [vmem:[%s1 + $0xc00] sm:$0xff]
    %v409 = vld [vmem:[%s1 + $0xc08] sm:$0xff]
    %v410 = vld [vmem:[%s1 + $0xc10] sm:$0xff]
    %v411 = vld [vmem:[%s1 + $0xc18] sm:$0xff]
    %v412 = vld [vmem:[%s1 + $0xc20] sm:$0xff]
    %v413 = vld [vmem:[%s1 + $0xc28] sm:$0xff]
    %v414 = vld [vmem:[%s1 + $0xc30] sm:$0xff]
    %v415 = vld [vmem:[%s1 + $0xc38] sm:$0xff]
    %v416 = vld [vmem:[%s1 + $0xc40] sm:$0xff]
    %v417 = vld [vmem:[%s1 + $0xc48] sm:$0xff]
    %v418 = vld [vmem:[%s1 + $0xc50] sm:$0xff]
    %v419 = vld [vmem:[%s1 + $0xc58] sm:$0xff]
    %v420 = vld [vmem:[%s1 + $0xc60] sm:$0xff]
    %v421 = vld [vmem:[%s1 + $0xc68] sm:$0xff]
    %v422 = vld [vmem:[%s1 + $0xc70] sm:$0xff]
    %v423 = vld [vmem:[%s1 + $0xc78] sm:$0xff]
    %v424 = vld [vmem:[%s1 + $0xc80] sm:$0xff]
    %v425 = vld [vmem:[%s1 + $0xc88] sm:$0xff]
    %v426 = vld [vmem:[%s1 + $0xc90] sm:$0xff]
    %v427 = vld [vmem:[%s1 + $0xc98] sm:$0xff]
    %v428 = vld [vmem:[%s1 + $0xca0] sm:$0xff]
    %v429 = vld [vmem:[%s1 + $0xca8] sm:$0xff]
    %v430 = vld [vmem:[%s1 + $0xcb0] sm:$0xff]
    %v431 = vld [vmem:[%s1 + $0xcb8] sm:$0xff]
    %v432 = vld [vmem:[%s1 + $0xcc0] sm:$0xff]
    %v433 = vld [vmem:[%s1 + $0xcc8] sm:$0xff]
    %v434 = vld [vmem:[%s1 + $0xcd0] sm:$0xff]
    %v435 = vld [vmem:[%s1 + $0xcd8] sm:$0xff]
    %v436 = vld [vmem:[%s1 + $0xce0] sm:$0xff]
    %v437 = vld [vmem:[%s1 + $0xce8] sm:$0xff]
    %v438 = vld [vmem:[%s1 + $0xcf0] sm:$0xff]
    %v439 = vld [vmem:[%s1 + $0xcf8] sm:$0xff]
    %v440 = vld [vmem:[%s1 + $0xd00] sm:$0xff]
    %v441 = vld [vmem:[%s1 + $0xd08] sm:$0xff]
    %v442 = vld [vmem:[%s1 + $0xd10] sm:$0xff]
    %v443 = vld [vmem:[%s1 + $0xd18] sm:$0xff]
    %v444 = vld [vmem:[%s1 + $0xd20] sm:$0xff]
    %v445 = vld [vmem:[%s1 + $0xd28] sm:$0xff]
    %v446 = vld [vmem:[%s1 + $0xd30] sm:$0xff]
    %v447 = vld [vmem:[%s1 + $0xd38] sm:$0xff]
    %v448 = vld [vmem:[%s1 + $0xd40] sm:$0xff]
    %v449 = vld [vmem:[%s1 + $0xd48] sm:$0xff]
    %v450 = vld [vmem:[%s1 + $0xd50] sm:$0xff]
    %v451 = vld [vmem:[%s1 + $0xd58] sm:$0xff]
    %v452 = vld [vmem:[%s1 + $0xd60] sm:$0xff]
    %v453 = vld [vmem:[%s1 + $0xd68] sm:$0xff]
    %v454 = vld [vmem:[%s1 + $0xd70] sm:$0xff]
    %v455 = vld [vmem:[%s1 + $0xd78] sm:$0xff]
    %v456 = vld [vmem:[%s1 + $0xd80] sm:$0xff]
    %v457 = vld [vmem:[%s1 + $0xd88] sm:$0xff]
    %v458 = vld [vmem:[%s1 + $0xd90] sm:$0xff]
    %v459 = vld [vmem:[%s1 + $0xd98] sm:$0xff]
    %v460 = vld [vmem:[%s1 + $0xda0] sm:$0xff]
    %v461 = vld [vmem:[%s1 + $0xda8] sm:$0xff]
    %v462 = vld [vmem:[%s1 + $0xdb0] sm:$0xff]
    %v463 = vld [vmem:[%s1 + $0xdb8] sm:$0xff]
    %v464 = vld [vmem:[%s1 + $0xdc0] sm:$0xff]
    %v465 = vld [vmem:[%s1 + $0xdc8] sm:$0xff]
    %v466 = vld [vmem:[%s1 + $0xdd0] sm:$0xff]
    %v467 = vld [vmem:[%s1 + $0xdd8] sm:$0xff]
    %v468 = vld [vmem:[%s1 + $0xde0] sm:$0xff]
    %v469 = vld [vmem:[%s1 + $0xde8] sm:$0xff]
    %v470 = vld [vmem:[%s1 + $0xdf0] sm:$0xff]
    %v471 = vld [vmem:[%s1 + $0xdf8] sm:$0xff]
    %v472 = vld [vmem:[%s1 + $0xe00] sm:$0xff]
    %v473 = vld [vmem:[%s1 + $0xe08] sm:$0xff]
    %v474 = vld [vmem:[%s1 + $0xe10] sm:$0xff]
    %v475 = vld [vmem:[%s1 + $0xe18] sm:$0xff]
    %v476 = vld [vmem:[%s1 + $0xe20] sm:$0xff]
    %v477 = vld [vmem:[%s1 + $0xe28] sm:$0xff]
    %v478 = vld [vmem:[%s1 + $0xe30] sm:$0xff]
    %v479 = vld [vmem:[%s1 + $0xe38] sm:$0xff]
    %v480 = vld [vmem:[%s1 + $0xe40] sm:$0xff]
    %v481 = vld [vmem:[%s1 + $0xe48] sm:$0xff]
    %v482 = vld [vmem:[%s1 + $0xe50] sm:$0xff]
    %v483 = vld [vmem:[%s1 + $0xe58] sm:$0xff]
    %v484 = vld [vmem:[%s1 + $0xe60] sm:$0xff]
    %v485 = vld [vmem:[%s1 + $0xe68] sm:$0xff]
    %v486 = vld [vmem:[%s1 + $0xe70] sm:$0xff]
    %v487 = vld [vmem:[%s1 + $0xe78] sm:$0xff]
    %v488 = vld [vmem:[%s1 + $0xe80] sm:$0xff]
    %v489 = vld [vmem:[%s1 + $0xe88] sm:$0xff]
    %v490 = vld [vmem:[%s1 + $0xe90] sm:$0xff]
    %v491 = vld [vmem:[%s1 + $0xe98] sm:$0xff]
    %v492 = vld [vmem:[%s1 + $0xea0] sm:$0xff]
    %v493 = vld [vmem:[%s1 + $0xea8] sm:$0xff]
    %v494 = vld [vmem:[%s1 + $0xeb0] sm:$0xff]
    %v495 = vld [vmem:[%s1 + $0xeb8] sm:$0xff]
    %v496 = vld [vmem:[%s1 + $0xec0] sm:$0xff]
    %v497 = vld [vmem:[%s1 + $0xec8] sm:$0xff]
    %v498 = vld [vmem:[%s1 + $0xed0] sm:$0xff]
    %v499 = vld [vmem:[%s1 + $0xed8] sm:$0xff]
    %v500 = vld [vmem:[%s1 + $0xee0] sm:$0xff]
    %v501 = vld [vmem:[%s1 + $0xee8] sm:$0xff]
    %v502 = vld [vmem:[%s1 + $0xef0] sm:$0xff]
    %v503 = vld [vmem:[%s1 + $0xef8] sm:$0xff]
    %v504 = vld [vmem:[%s1 + $0xf00] sm:$0xff]
    %v505 = vld [vmem:[%s1 + $0xf08] sm:$0xff]
    %v506 = vld [vmem:[%s1 + $0xf10] sm:$0xff]
    %v507 = vld [vmem:[%s1 + $0xf18] sm:$0xff]
    %v508 = vld [vmem:[%s1 + $0xf20] sm:$0xff]
    %v509 = vld [vmem:[%s1 + $0xf28] sm:$0xff]
    %v510 = vld [vmem:[%s1 + $0xf30] sm:$0xff]
    %v511 = vld [vmem:[%s1 + $0xf38] sm:$0xff]
    %v512 = vld [vmem:[%s1 + $0xf40] sm:$0xff]
    %v513 = vld [vmem:[%s1 + $0xf48] sm:$0xff]
    %v514 = vld [vmem:[%s1 + $0xf50] sm:$0xff]
    %v515 = vld [vmem:[%s1 + $0xf58] sm:$0xff]
    %v516 = vld [vmem:[%s1 + $0xf60] sm:$0xff]
    %v517 = vld [vmem:[%s1 + $0xf68] sm:$0xff]
    %v518 = vld [vmem:[%s1 + $0xf70] sm:$0xff]
    %v519 = vld [vmem:[%s1 + $0xf78] sm:$0xff]
    %v520 = vld [vmem:[%s1 + $0xf80] sm:$0xff]
    %v521 = vld [vmem:[%s1 + $0xf88] sm:$0xff]
    %v522 = vld [vmem:[%s1 + $0xf90] sm:$0xff]
    %v523 = vld [vmem:[%s1 + $0xf98] sm:$0xff]
    %v524 = vld [vmem:[%s1 + $0xfa0] sm:$0xff]
    %v525 = vld [vmem:[%s1 + $0xfa8] sm:$0xff]
    %v526 = vld [vmem:[%s1 + $0xfb0] sm:$0xff]
    %v527 = vld [vmem:[%s1 + $0xfb8] sm:$0xff]
    %v528 = vld [vmem:[%s1 + $0xfc0] sm:$0xff]
    %v529 = vld [vmem:[%s1 + $0xfc8] sm:$0xff]
    %v530 = vld [vmem:[%s1 + $0xfd0] sm:$0xff]
    %v531 = vld [vmem:[%s1 + $0xfd8] sm:$0xff]
    %v532 = vld [vmem:[%s1 + $0xfe0] sm:$0xff]
    %v533 = vld [vmem:[%s1 + $0xfe8] sm:$0xff]
    %v534 = vld [vmem:[%s1 + $0xff0] sm:$0xff]
    %v535 = vld [vmem:[%s1 + $0xff8] sm:$0xff]
    %v536 = vld [vmem:[%s1 + $0x1000] sm:$0xff]
    %v537 = vld [vmem:[%s1 + $0x1008] sm:$0xff]
    %v538 = vld [vmem:[%s1 + $0x1010] sm:$0xff]
    %v539 = vld [vmem:[%s1 + $0x1018] sm:$0xff]
    %v540 = vld [vmem:[%s1 + $0x1020] sm:$0xff]
    %v541 = vld [vmem:[%s1 + $0x1028] sm:$0xff]
    %v542 = vld [vmem:[%s1 + $0x1030] sm:$0xff]
    %v543 = vld [vmem:[%s1 + $0x1038] sm:$0xff]
    %v544 = vld [vmem:[%s1 + $0x1040] sm:$0xff]
    %v545 = vld [vmem:[%s1 + $0x1048] sm:$0xff]
    %v546 = vld [vmem:[%s1 + $0x1050] sm:$0xff]
    %v547 = vld [vmem:[%s1 + $0x1058] sm:$0xff]
    %v548 = vld [vmem:[%s1 + $0x1060] sm:$0xff]
    %v549 = vld [vmem:[%s1 + $0x1068] sm:$0xff]
    %v550 = vld [vmem:[%s1 + $0x1070] sm:$0xff]
    %v551 = vld [vmem:[%s1 + $0x1078] sm:$0xff]
    %v552 = vld [vmem:[%s1 + $0x1080] sm:$0xff]
    %v553 = vld [vmem:[%s1 + $0x1088] sm:$0xff]
    %v554 = vld [vmem:[%s1 + $0x1090] sm:$0xff]
    %v555 = vld [vmem:[%s1 + $0x1098] sm:$0xff]
    %v556 = vld [vmem:[%s1 + $0x10a0] sm:$0xff]
    %v557 = vld [vmem:[%s1 + $0x10a8] sm:$0xff]
    %v558 = vld [vmem:[%s1 + $0x10b0] sm:$0xff]
    %v559 = vld [vmem:[%s1 + $0x10b8] sm:$0xff]
    %v560 = vld [vmem:[%s1 + $0x10c0] sm:$0xff]
    %v561 = vld [vmem:[%s1 + $0x10c8] sm:$0xff]
    %v562 = vld [vmem:[%s1 + $0x10d0] sm:$0xff]
    %v563 = vld [vmem:[%s1 + $0x10d8] sm:$0xff]
    %v564 = vld [vmem:[%s1 + $0x10e0] sm:$0xff]
    %v565 = vld [vmem:[%s1 + $0x10e8] sm:$0xff]
    %v566 = vld [vmem:[%s1 + $0x10f0] sm:$0xff]
    %v567 = vld [vmem:[%s1 + $0x10f8] sm:$0xff]
    %v568 = vld [vmem:[%s1 + $0x1100] sm:$0xff]
    %v569 = vld [vmem:[%s1 + $0x1108] sm:$0xff]
    %v570 = vld [vmem:[%s1 + $0x1110] sm:$0xff]
    %v571 = vld [vmem:[%s1 + $0x1118] sm:$0xff]
    %v572 = vld [vmem:[%s1 + $0x1120] sm:$0xff]
    %v573 = vld [vmem:[%s1 + $0x1128] sm:$0xff]
    %v574 = vld [vmem:[%s1 + $0x1130] sm:$0xff]
    %v575 = vld [vmem:[%s1 + $0x1138] sm:$0xff]
    %v576 = vld [vmem:[%s1 + $0x1140] sm:$0xff]
    %v577 = vld [vmem:[%s1 + $0x1148] sm:$0xff]
    %v578 = vld [vmem:[%s1 + $0x1150] sm:$0xff]
    %v579 = vld [vmem:[%s1 + $0x1158] sm:$0xff]
    %v580 = vld [vmem:[%s1 + $0x1160] sm:$0xff]
    %v581 = vld [vmem:[%s1 + $0x1168] sm:$0xff]
    %v582 = vld [vmem:[%s1 + $0x1170] sm:$0xff]
    %v583 = vld [vmem:[%s1 + $0x1178] sm:$0xff]
    %v584 = vld [vmem:[%s1 + $0x1180] sm:$0xff]
    %v585 = vld [vmem:[%s1 + $0x1188] sm:$0xff]
    %v586 = vld [vmem:[%s1 + $0x1190] sm:$0xff]
    %v587 = vld [vmem:[%s1 + $0x1198] sm:$0xff]
    %v588 = vld [vmem:[%s1 + $0x11a0] sm:$0xff]
    %v589 = vld [vmem:[%s1 + $0x11a8] sm:$0xff]
    %v590 = vld [vmem:[%s1 + $0x11b0] sm:$0xff]
    %v591 = vld [vmem:[%s1 + $0x11b8] sm:$0xff]
    %v592 = vld [vmem:[%s1 + $0x11c0] sm:$0xff]
    %v593 = vld [vmem:[%s1 + $0x11c8] sm:$0xff]
    %v594 = vld [vmem:[%s1 + $0x11d0] sm:$0xff]
    %v595 = vld [vmem:[%s1 + $0x11d8] sm:$0xff]
    %v596 = vld [vmem:[%s1 + $0x11e0] sm:$0xff]
    %v597 = vld [vmem:[%s1 + $0x11e8] sm:$0xff]
    %v598 = vld [vmem:[%s1 + $0x11f0] sm:$0xff]
    %v599 = vld [vmem:[%s1 + $0x11f8] sm:$0xff]
    %v600 = vld [vmem:[%s2] sm:$0xf]
    %v602 = vperm.slane %v600, 0
    %v603 = vperm.slane %v600, 1
    %v604 = vperm.slane %v600, 2
    %v605 = vperm.slane %v600, 3
    %611 = vst [vmem:[#allocation1] ss:$9 sm:$0xff] %v21
    %v612 = vld [vmem:[#allocation1] sm:$0xff]
    %v613 = vld [vmem:[#allocation1 + $0x9] sm:$0xff]
    %v614 = vld [vmem:[#allocation1 + $0x12] sm:$0xff]
    %v615 = vld [vmem:[#allocation1 + $0x1b] sm:$0xff]
    %v616 = vld [vmem:[#allocation1 + $0x24] sm:$0xff]
    %v617 = vld [vmem:[#allocation1 + $0x2d] sm:$0xff]
    %v618 = vld [vmem:[#allocation1 + $0x36] sm:$0xff]
    %v619 = vld [vmem:[#allocation1 + $0x3f] sm:$0xff]
    %621 = vst [vmem:[#allocation1] ss:$9 sm:$0xff] %v22
    %v622 = vld [vmem:[#allocation1] sm:$0xff]
    %v623 = vld [vmem:[#allocation1 + $0x9] sm:$0xff]
    %v624 = vld [vmem:[#allocation1 + $0x12] sm:$0xff]
    %v625 = vld [vmem:[#allocation1 + $0x1b] sm:$0xff]
    %v626 = vld [vmem:[#allocation1 + $0x24] sm:$0xff]
    %v627 = vld [vmem:[#allocation1 + $0x2d] sm:$0xff]
    %v628 = vld [vmem:[#allocation1 + $0x36] sm:$0xff]
    %v629 = vld [vmem:[#allocation1 + $0x3f] sm:$0xff]
    %631 = vst [vmem:[#allocation1] ss:$9 sm:$0xff] %v23
    %v632 = vld [vmem:[#allocation1] sm:$0xff]
    %v633 = vld [vmem:[#allocation1 + $0x9] sm:$0xff]
    %v1228 = vunpack.c.l.b16 %v24
    %v1229 = vunpack.c.h.b16 %v24
    %v1230 = vunpack.c.l.b16 %v25
    %v1231 = vunpack.c.h.b16 %v25
    %v1232 = vunpack.c.l.b16 %v26
    %v1233 = vunpack.c.h.b16 %v26
    %v1234 = vunpack.c.l.b16 %v27
    %v1235 = vunpack.c.h.b16 %v27
    %v1236 = vunpack.c.l.b16 %v28
    %v1237 = vunpack.c.h.b16 %v28
    %v1238 = vunpack.c.l.b16 %v29
    %v1239 = vunpack.c.h.b16 %v29
    %v1240 = vunpack.c.l.b16 %v30
    %v1241 = vunpack.c.h.b16 %v30
    %v1242 = vunpack.c.l.b16 %v31
    %v1243 = vunpack.c.h.b16 %v31
    %v1244 = vunpack.c.l.b16 %v32
    %v1245 = vunpack.c.h.b16 %v32
    %v1246 = vunpack.c.l.b16 %v33
    %v1247 = vunpack.c.h.b16 %v33
    %v1248 = vunpack.c.l.b16 %v34
    %v1249 = vunpack.c.h.b16 %v34
    %v1250 = vunpack.c.l.b16 %v35
    %v1251 = vunpack.c.h.b16 %v35
    %v1252 = vunpack.c.l.b16 %v36
    %v1253 = vunpack.c.h.b16 %v36
    %v1254 = vunpack.c.l.b16 %v37
    %v1255 = vunpack.c.h.b16 %v37
    %v1256 = vunpack.c.l.b16 %v38
    %v1257 = vunpack.c.h.b16 %v38
    %v1258 = vunpack.c.l.b16 %v39
    %v1259 = vunpack.c.h.b16 %v39
    %v1260 = vunpack.c.l.b16 %v40
    %v1261 = vunpack.c.h.b16 %v40
    %v1262 = vunpack.c.l.b16 %v41
    %v1263 = vunpack.c.h.b16 %v41
    %v1264 = vunpack.c.l.b16 %v42
    %v1265 = vunpack.c.h.b16 %v42
    %v1266 = vunpack.c.l.b16 %v43
    %v1267 = vunpack.c.h.b16 %v43
    %v1268 = vunpack.c.l.b16 %v44
    %v1269 = vunpack.c.h.b16 %v44
    %v1270 = vunpack.c.l.b16 %v45
    %v1271 = vunpack.c.h.b16 %v45
    %v1272 = vunpack.c.l.b16 %v46
    %v1273 = vunpack.c.h.b16 %v46
    %v1274 = vunpack.c.l.b16 %v47
    %v1275 = vunpack.c.h.b16 %v47
    %v1276 = vunpack.c.l.b16 %v48
    %v1277 = vunpack.c.h.b16 %v48
    %v1278 = vunpack.c.l.b16 %v49
    %v1279 = vunpack.c.h.b16 %v49
    %v1280 = vunpack.c.l.b16 %v50
    %v1281 = vunpack.c.h.b16 %v50
    %v1282 = vunpack.c.l.b16 %v51
    %v1283 = vunpack.c.h.b16 %v51
    %v1284 = vunpack.c.l.b16 %v52
    %v1285 = vunpack.c.h.b16 %v52
    %v1286 = vunpack.c.l.b16 %v53
    %v1287 = vunpack.c.h.b16 %v53
    %v1288 = vunpack.c.l.b16 %v54
    %v1289 = vunpack.c.h.b16 %v54
    %v1290 = vunpack.c.l.b16 %v55
    %v1291 = vunpack.c.h.b16 %v55
    %v1292 = vunpack.c.l.b16 %v56
    %v1293 = vunpack.c.h.b16 %v56
    %v1294 = vunpack.c.l.b16 %v57
    %v1295 = vunpack.c.h.b16 %v57
    %v1296 = vunpack.c.l.b16 %v58
    %v1297 = vunpack.c.h.b16 %v58
    %v1298 = vunpack.c.l.b16 %v59
    %v1299 = vunpack.c.h.b16 %v59
    %v1300 = vunpack.c.l.b16 %v60
    %v1301 = vunpack.c.h.b16 %v60
    %v1302 = vunpack.c.l.b16 %v61
    %v1303 = vunpack.c.h.b16 %v61
    %v1304 = vunpack.c.l.b16 %v62
    %v1305 = vunpack.c.h.b16 %v62
    %v1306 = vunpack.c.l.b16 %v63
    %v1307 = vunpack.c.h.b16 %v63
    %v1308 = vunpack.c.l.b16 %v64
    %v1309 = vunpack.c.h.b16 %v64
    %v1310 = vunpack.c.l.b16 %v65
    %v1311 = vunpack.c.h.b16 %v65
    %v1312 = vunpack.c.l.b16 %v66
    %v1313 = vunpack.c.h.b16 %v66
    %v1314 = vunpack.c.l.b16 %v67
    %v1315 = vunpack.c.h.b16 %v67
    %v1316 = vunpack.c.l.b16 %v68
    %v1317 = vunpack.c.h.b16 %v68
    %v1318 = vunpack.c.l.b16 %v69
    %v1319 = vunpack.c.h.b16 %v69
    %v1320 = vunpack.c.l.b16 %v70
    %v1321 = vunpack.c.h.b16 %v70
    %v1322 = vunpack.c.l.b16 %v71
    %v1323 = vunpack.c.h.b16 %v71
    %v1324 = vunpack.c.l.b16 %v72
    %v1325 = vunpack.c.h.b16 %v72
    %v1326 = vunpack.c.l.b16 %v73
    %v1327 = vunpack.c.h.b16 %v73
    %v1328 = vunpack.c.l.b16 %v74
    %v1329 = vunpack.c.h.b16 %v74
    %v1330 = vunpack.c.l.b16 %v75
    %v1331 = vunpack.c.h.b16 %v75
    %v1332 = vunpack.c.l.b16 %v76
    %v1333 = vunpack.c.h.b16 %v76
    %v1334 = vunpack.c.l.b16 %v77
    %v1335 = vunpack.c.h.b16 %v77
    %v1336 = vunpack.c.l.b16 %v78
    %v1337 = vunpack.c.h.b16 %v78
    %v1338 = vunpack.c.l.b16 %v79
    %v1339 = vunpack.c.h.b16 %v79
    %v1340 = vunpack.c.l.b16 %v80
    %v1341 = vunpack.c.h.b16 %v80
    %v1342 = vunpack.c.l.b16 %v81
    %v1343 = vunpack.c.h.b16 %v81
    %v1344 = vunpack.c.l.b16 %v82
    %v1345 = vunpack.c.h.b16 %v82
    %v1346 = vunpack.c.l.b16 %v83
    %v1347 = vunpack.c.h.b16 %v83
    %v1348 = vunpack.c.l.b16 %v84
    %v1349 = vunpack.c.h.b16 %v84
    %v1350 = vunpack.c.l.b16 %v85
    %v1351 = vunpack.c.h.b16 %v85
    %v1352 = vunpack.c.l.b16 %v86
    %v1353 = vunpack.c.h.b16 %v86
    %v1354 = vunpack.c.l.b16 %v87
    %v1355 = vunpack.c.h.b16 %v87
    %v1356 = vunpack.c.l.b16 %v88
    %v1357 = vunpack.c.h.b16 %v88
    %v1358 = vunpack.c.l.b16 %v89
    %v1359 = vunpack.c.h.b16 %v89
    %v1360 = vunpack.c.l.b16 %v90
    %v1361 = vunpack.c.h.b16 %v90
    %v1362 = vunpack.c.l.b16 %v91
    %v1363 = vunpack.c.h.b16 %v91
    %v1364 = vunpack.c.l.b16 %v92
    %v1365 = vunpack.c.h.b16 %v92
    %v1366 = vunpack.c.l.b16 %v93
    %v1367 = vunpack.c.h.b16 %v93
    %v1368 = vunpack.c.l.b16 %v94
    %v1369 = vunpack.c.h.b16 %v94
    %v1370 = vunpack.c.l.b16 %v95
    %v1371 = vunpack.c.h.b16 %v95
    %v1372 = vunpack.c.l.b16 %v96
    %v1373 = vunpack.c.h.b16 %v96
    %v1374 = vunpack.c.l.b16 %v97
    %v1375 = vunpack.c.h.b16 %v97
    %v1376 = vunpack.c.l.b16 %v98
    %v1377 = vunpack.c.h.b16 %v98
    %v1378 = vunpack.c.l.b16 %v99
    %v1379 = vunpack.c.h.b16 %v99
    %v1380 = vunpack.c.l.b16 %v100
    %v1381 = vunpack.c.h.b16 %v100
    %v1382 = vunpack.c.l.b16 %v101
    %v1383 = vunpack.c.h.b16 %v101
    %v1384 = vunpack.c.l.b16 %v102
    %v1385 = vunpack.c.h.b16 %v102
    %v1386 = vunpack.c.l.b16 %v103
    %v1387 = vunpack.c.h.b16 %v103
    %v1388 = vunpack.c.l.b16 %v104
    %v1389 = vunpack.c.h.b16 %v104
    %v1390 = vunpack.c.l.b16 %v105
    %v1391 = vunpack.c.h.b16 %v105
    %v1392 = vunpack.c.l.b16 %v106
    %v1393 = vunpack.c.h.b16 %v106
    %v1394 = vunpack.c.l.b16 %v107
    %v1395 = vunpack.c.h.b16 %v107
    %v1396 = vunpack.c.l.b16 %v108
    %v1397 = vunpack.c.h.b16 %v108
    %v1398 = vunpack.c.l.b16 %v109
    %v1399 = vunpack.c.h.b16 %v109
    %v1400 = vunpack.c.l.b16 %v110
    %v1401 = vunpack.c.h.b16 %v110
    %v1402 = vunpack.c.l.b16 %v111
    %v1403 = vunpack.c.h.b16 %v111
    %v1404 = vunpack.c.l.b16 %v112
    %v1405 = vunpack.c.h.b16 %v112
    %v1406 = vunpack.c.l.b16 %v113
    %v1407 = vunpack.c.h.b16 %v113
    %v1408 = vunpack.c.l.b16 %v114
    %v1409 = vunpack.c.h.b16 %v114
    %v1410 = vunpack.c.l.b16 %v115
    %v1411 = vunpack.c.h.b16 %v115
    %v1412 = vunpack.c.l.b16 %v116
    %v1413 = vunpack.c.h.b16 %v116
    %v1414 = vunpack.c.l.b16 %v117
    %v1415 = vunpack.c.h.b16 %v117
    %v1416 = vunpack.c.l.b16 %v118
    %v1417 = vunpack.c.h.b16 %v118
    %v1418 = vunpack.c.l.b16 %v119
    %v1419 = vunpack.c.h.b16 %v119
    %v1420 = vunpack.c.l.b16 %v120
    %v1421 = vunpack.c.h.b16 %v120
    %v1422 = vunpack.c.l.b16 %v121
    %v1423 = vunpack.c.h.b16 %v121
    %v1424 = vunpack.c.l.b16 %v122
    %v1425 = vunpack.c.h.b16 %v122
    %v1426 = vunpack.c.l.b16 %v123
    %v1427 = vunpack.c.h.b16 %v123
    %v1428 = vunpack.c.l.b16 %v124
    %v1429 = vunpack.c.h.b16 %v124
    %v1430 = vunpack.c.l.b16 %v125
    %v1431 = vunpack.c.h.b16 %v125
    %v1432 = vunpack.c.l.b16 %v126
    %v1433 = vunpack.c.h.b16 %v126
    %v1434 = vunpack.c.l.b16 %v127
    %v1435 = vunpack.c.h.b16 %v127
    %v1436 = vunpack.c.l.b16 %v128
    %v1437 = vunpack.c.h.b16 %v128
    %v1438 = vunpack.c.l.b16 %v129
    %v1439 = vunpack.c.h.b16 %v129
    %v1440 = vunpack.c.l.b16 %v130
    %v1441 = vunpack.c.h.b16 %v130
    %v1442 = vunpack.c.l.b16 %v131
    %v1443 = vunpack.c.h.b16 %v131
    %v1444 = vunpack.c.l.b16 %v132
    %v1445 = vunpack.c.h.b16 %v132
    %v1446 = vunpack.c.l.b16 %v133
    %v1447 = vunpack.c.h.b16 %v133
    %v1448 = vunpack.c.l.b16 %v134
    %v1449 = vunpack.c.h.b16 %v134
    %v1450 = vunpack.c.l.b16 %v135
    %v1451 = vunpack.c.h.b16 %v135
    %v1452 = vunpack.c.l.b16 %v136
    %v1453 = vunpack.c.h.b16 %v136
    %v1454 = vunpack.c.l.b16 %v137
    %v1455 = vunpack.c.h.b16 %v137
    %v1456 = vunpack.c.l.b16 %v138
    %v1457 = vunpack.c.h.b16 %v138
    %v1458 = vunpack.c.l.b16 %v139
    %v1459 = vunpack.c.h.b16 %v139
    %v1460 = vunpack.c.l.b16 %v140
    %v1461 = vunpack.c.h.b16 %v140
    %v1462 = vunpack.c.l.b16 %v141
    %v1463 = vunpack.c.h.b16 %v141
    %v1464 = vunpack.c.l.b16 %v142
    %v1465 = vunpack.c.h.b16 %v142
    %v1466 = vunpack.c.l.b16 %v143
    %v1467 = vunpack.c.h.b16 %v143
    %v1468 = vunpack.c.l.b16 %v144
    %v1469 = vunpack.c.h.b16 %v144
    %v1470 = vunpack.c.l.b16 %v145
    %v1471 = vunpack.c.h.b16 %v145
    %v1472 = vunpack.c.l.b16 %v146
    %v1473 = vunpack.c.h.b16 %v146
    %v1474 = vunpack.c.l.b16 %v147
    %v1475 = vunpack.c.h.b16 %v147
    %v1476 = vunpack.c.l.b16 %v148
    %v1477 = vunpack.c.h.b16 %v148
    %v1478 = vunpack.c.l.b16 %v149
    %v1479 = vunpack.c.h.b16 %v149
    %v1480 = vunpack.c.l.b16 %v150
    %v1481 = vunpack.c.h.b16 %v150
    %v1482 = vunpack.c.l.b16 %v151
    %v1483 = vunpack.c.h.b16 %v151
    %v1484 = vunpack.c.l.b16 %v152
    %v1485 = vunpack.c.h.b16 %v152
    %v1486 = vunpack.c.l.b16 %v153
    %v1487 = vunpack.c.h.b16 %v153
    %v1488 = vunpack.c.l.b16 %v154
    %v1489 = vunpack.c.h.b16 %v154
    %v1490 = vunpack.c.l.b16 %v155
    %v1491 = vunpack.c.h.b16 %v155
    %v1492 = vunpack.c.l.b16 %v156
    %v1493 = vunpack.c.h.b16 %v156
    %v1494 = vunpack.c.l.b16 %v157
    %v1495 = vunpack.c.h.b16 %v157
    %v1496 = vunpack.c.l.b16 %v158
    %v1497 = vunpack.c.h.b16 %v158
    %v1498 = vunpack.c.l.b16 %v159
    %v1499 = vunpack.c.h.b16 %v159
    %v1500 = vunpack.c.l.b16 %v160
    %v1501 = vunpack.c.h.b16 %v160
    %v1502 = vunpack.c.l.b16 %v161
    %v1503 = vunpack.c.h.b16 %v161
    %v1504 = vunpack.c.l.b16 %v162
    %v1505 = vunpack.c.h.b16 %v162
    %v1506 = vunpack.c.l.b16 %v163
    %v1507 = vunpack.c.h.b16 %v163
    %v1508 = vunpack.c.l.b16 %v164
    %v1509 = vunpack.c.h.b16 %v164
    %v1510 = vunpack.c.l.b16 %v165
    %v1511 = vunpack.c.h.b16 %v165
    %v1512 = vunpack.c.l.b16 %v166
    %v1513 = vunpack.c.h.b16 %v166
    %v1514 = vunpack.c.l.b16 %v167
    %v1515 = vunpack.c.h.b16 %v167
    %v1516 = vunpack.c.l.b16 %v168
    %v1517 = vunpack.c.h.b16 %v168
    %v1518 = vunpack.c.l.b16 %v169
    %v1519 = vunpack.c.h.b16 %v169
    %v1520 = vunpack.c.l.b16 %v170
    %v1521 = vunpack.c.h.b16 %v170
    %v1522 = vunpack.c.l.b16 %v171
    %v1523 = vunpack.c.h.b16 %v171
    %v1524 = vunpack.c.l.b16 %v172
    %v1525 = vunpack.c.h.b16 %v172
    %v1526 = vunpack.c.l.b16 %v173
    %v1527 = vunpack.c.h.b16 %v173
    %v1528 = vunpack.c.l.b16 %v174
    %v1529 = vunpack.c.h.b16 %v174
    %v1530 = vunpack.c.l.b16 %v175
    %v1531 = vunpack.c.h.b16 %v175
    %v1532 = vunpack.c.l.b16 %v176
    %v1533 = vunpack.c.h.b16 %v176
    %v1534 = vunpack.c.l.b16 %v177
    %v1535 = vunpack.c.h.b16 %v177
    %v1536 = vunpack.c.l.b16 %v178
    %v1537 = vunpack.c.h.b16 %v178
    %v1538 = vunpack.c.l.b16 %v179
    %v1539 = vunpack.c.h.b16 %v179
    %v1540 = vunpack.c.l.b16 %v180
    %v1541 = vunpack.c.h.b16 %v180
    %v1542 = vunpack.c.l.b16 %v181
    %v1543 = vunpack.c.h.b16 %v181
    %v1544 = vunpack.c.l.b16 %v182
    %v1545 = vunpack.c.h.b16 %v182
    %v1546 = vunpack.c.l.b16 %v183
    %v1547 = vunpack.c.h.b16 %v183
    %v1548 = vunpack.c.l.b16 %v184
    %v1549 = vunpack.c.h.b16 %v184
    %v1550 = vunpack.c.l.b16 %v185
    %v1551 = vunpack.c.h.b16 %v185
    %v1552 = vunpack.c.l.b16 %v186
    %v1553 = vunpack.c.h.b16 %v186
    %v1554 = vunpack.c.l.b16 %v187
    %v1555 = vunpack.c.h.b16 %v187
    %v1556 = vunpack.c.l.b16 %v188
    %v1557 = vunpack.c.h.b16 %v188
    %v1558 = vunpack.c.l.b16 %v189
    %v1559 = vunpack.c.h.b16 %v189
    %v1560 = vunpack.c.l.b16 %v190
    %v1561 = vunpack.c.h.b16 %v190
    %v1562 = vunpack.c.l.b16 %v191
    %v1563 = vunpack.c.h.b16 %v191
    %v1564 = vunpack.c.l.b16 %v192
    %v1565 = vunpack.c.h.b16 %v192
    %v1566 = vunpack.c.l.b16 %v193
    %v1567 = vunpack.c.h.b16 %v193
    %v1568 = vunpack.c.l.b16 %v194
    %v1569 = vunpack.c.h.b16 %v194
    %v1570 = vunpack.c.l.b16 %v195
    %v1571 = vunpack.c.h.b16 %v195
    %v1572 = vunpack.c.l.b16 %v196
    %v1573 = vunpack.c.h.b16 %v196
    %v1574 = vunpack.c.l.b16 %v197
    %v1575 = vunpack.c.h.b16 %v197
    %v1576 = vunpack.c.l.b16 %v198
    %v1577 = vunpack.c.h.b16 %v198
    %v1578 = vunpack.c.l.b16 %v199
    %v1579 = vunpack.c.h.b16 %v199
    %v1580 = vunpack.c.l.b16 %v200
    %v1581 = vunpack.c.h.b16 %v200
    %v1582 = vunpack.c.l.b16 %v201
    %v1583 = vunpack.c.h.b16 %v201
    %v1584 = vunpack.c.l.b16 %v202
    %v1585 = vunpack.c.h.b16 %v202
    %v1586 = vunpack.c.l.b16 %v203
    %v1587 = vunpack.c.h.b16 %v203
    %v1588 = vunpack.c.l.b16 %v204
    %v1589 = vunpack.c.h.b16 %v204
    %v1590 = vunpack.c.l.b16 %v205
    %v1591 = vunpack.c.h.b16 %v205
    %v1592 = vunpack.c.l.b16 %v206
    %v1593 = vunpack.c.h.b16 %v206
    %v1594 = vunpack.c.l.b16 %v207
    %v1595 = vunpack.c.h.b16 %v207
    %v1596 = vunpack.c.l.b16 %v208
    %v1597 = vunpack.c.h.b16 %v208
    %v1598 = vunpack.c.l.b16 %v209
    %v1599 = vunpack.c.h.b16 %v209
    %v1600 = vunpack.c.l.b16 %v210
    %v1601 = vunpack.c.h.b16 %v210
    %v1602 = vunpack.c.l.b16 %v211
    %v1603 = vunpack.c.h.b16 %v211
    %v1604 = vunpack.c.l.b16 %v212
    %v1605 = vunpack.c.h.b16 %v212
    %v1606 = vunpack.c.l.b16 %v213
    %v1607 = vunpack.c.h.b16 %v213
    %v1608 = vunpack.c.l.b16 %v214
    %v1609 = vunpack.c.h.b16 %v214
    %v1610 = vunpack.c.l.b16 %v215
    %v1611 = vunpack.c.h.b16 %v215
    %v1612 = vunpack.c.l.b16 %v216
    %v1613 = vunpack.c.h.b16 %v216
    %v1614 = vunpack.c.l.b16 %v217
    %v1615 = vunpack.c.h.b16 %v217
    %v1616 = vunpack.c.l.b16 %v218
    %v1617 = vunpack.c.h.b16 %v218
    %v1618 = vunpack.c.l.b16 %v219
    %v1619 = vunpack.c.h.b16 %v219
    %v1620 = vunpack.c.l.b16 %v220
    %v1621 = vunpack.c.h.b16 %v220
    %v1622 = vunpack.c.l.b16 %v221
    %v1623 = vunpack.c.h.b16 %v221
    %v1624 = vunpack.c.l.b16 %v222
    %v1625 = vunpack.c.h.b16 %v222
    %v1626 = vunpack.c.l.b16 %v223
    %v1627 = vunpack.c.h.b16 %v223
    %v1628 = vunpack.c.l.b16 %v224
    %v1629 = vunpack.c.h.b16 %v224
    %v1630 = vunpack.c.l.b16 %v225
    %v1631 = vunpack.c.h.b16 %v225
    %v1632 = vunpack.c.l.b16 %v226
    %v1633 = vunpack.c.h.b16 %v226
    %v1634 = vunpack.c.l.b16 %v227
    %v1635 = vunpack.c.h.b16 %v227
    %v1636 = vunpack.c.l.b16 %v228
    %v1637 = vunpack.c.h.b16 %v228
    %v1638 = vunpack.c.l.b16 %v229
    %v1639 = vunpack.c.h.b16 %v229
    %v1640 = vunpack.c.l.b16 %v230
    %v1641 = vunpack.c.h.b16 %v230
    %v1642 = vunpack.c.l.b16 %v231
    %v1643 = vunpack.c.h.b16 %v231
    %v1644 = vunpack.c.l.b16 %v232
    %v1645 = vunpack.c.h.b16 %v232
    %v1646 = vunpack.c.l.b16 %v233
    %v1647 = vunpack.c.h.b16 %v233
    %v1648 = vunpack.c.l.b16 %v234
    %v1649 = vunpack.c.h.b16 %v234
    %v1650 = vunpack.c.l.b16 %v235
    %v1651 = vunpack.c.h.b16 %v235
    %v1652 = vunpack.c.l.b16 %v236
    %v1653 = vunpack.c.h.b16 %v236
    %v1654 = vunpack.c.l.b16 %v237
    %v1655 = vunpack.c.h.b16 %v237
    %v1656 = vunpack.c.l.b16 %v238
    %v1657 = vunpack.c.h.b16 %v238
    %v1658 = vunpack.c.l.b16 %v239
    %v1659 = vunpack.c.h.b16 %v239
    %v1660 = vunpack.c.l.b16 %v240
    %v1661 = vunpack.c.h.b16 %v240
    %v1662 = vunpack.c.l.b16 %v241
    %v1663 = vunpack.c.h.b16 %v241
    %v1664 = vunpack.c.l.b16 %v242
    %v1665 = vunpack.c.h.b16 %v242
    %v1666 = vunpack.c.l.b16 %v243
    %v1667 = vunpack.c.h.b16 %v243
    %v1668 = vunpack.c.l.b16 %v244
    %v1669 = vunpack.c.h.b16 %v244
    %v1670 = vunpack.c.l.b16 %v245
    %v1671 = vunpack.c.h.b16 %v245
    %v1672 = vunpack.c.l.b16 %v246
    %v1673 = vunpack.c.h.b16 %v246
    %v1674 = vunpack.c.l.b16 %v247
    %v1675 = vunpack.c.h.b16 %v247
    %v1676 = vunpack.c.l.b16 %v248
    %v1677 = vunpack.c.h.b16 %v248
    %v1678 = vunpack.c.l.b16 %v249
    %v1679 = vunpack.c.h.b16 %v249
    %v1680 = vunpack.c.l.b16 %v250
    %v1681 = vunpack.c.h.b16 %v250
    %v1682 = vunpack.c.l.b16 %v251
    %v1683 = vunpack.c.h.b16 %v251
    %v1684 = vunpack.c.l.b16 %v252
    %v1685 = vunpack.c.h.b16 %v252
    %v1686 = vunpack.c.l.b16 %v253
    %v1687 = vunpack.c.h.b16 %v253
    %v1688 = vunpack.c.l.b16 %v254
    %v1689 = vunpack.c.h.b16 %v254
    %v1690 = vunpack.c.l.b16 %v255
    %v1691 = vunpack.c.h.b16 %v255
    %v1692 = vunpack.c.l.b16 %v256
    %v1693 = vunpack.c.h.b16 %v256
    %v1694 = vunpack.c.l.b16 %v257
    %v1695 = vunpack.c.h.b16 %v257
    %v1696 = vunpack.c.l.b16 %v258
    %v1697 = vunpack.c.h.b16 %v258
    %v1698 = vunpack.c.l.b16 %v259
    %v1699 = vunpack.c.h.b16 %v259
    %v1700 = vunpack.c.l.b16 %v260
    %v1701 = vunpack.c.h.b16 %v260
    %v1702 = vunpack.c.l.b16 %v261
    %v1703 = vunpack.c.h.b16 %v261
    %v1704 = vunpack.c.l.b16 %v262
    %v1705 = vunpack.c.h.b16 %v262
    %v1706 = vunpack.c.l.b16 %v263
    %v1707 = vunpack.c.h.b16 %v263
    %v1708 = vunpack.c.l.b16 %v264
    %v1709 = vunpack.c.h.b16 %v264
    %v1710 = vunpack.c.l.b16 %v265
    %v1711 = vunpack.c.h.b16 %v265
    %v1712 = vunpack.c.l.b16 %v266
    %v1713 = vunpack.c.h.b16 %v266
    %v1714 = vunpack.c.l.b16 %v267
    %v1715 = vunpack.c.h.b16 %v267
    %v1716 = vunpack.c.l.b16 %v268
    %v1717 = vunpack.c.h.b16 %v268
    %v1718 = vunpack.c.l.b16 %v269
    %v1719 = vunpack.c.h.b16 %v269
    %v1720 = vunpack.c.l.b16 %v270
    %v1721 = vunpack.c.h.b16 %v270
    %v1722 = vunpack.c.l.b16 %v271
    %v1723 = vunpack.c.h.b16 %v271
    %v1724 = vunpack.c.l.b16 %v272
    %v1725 = vunpack.c.h.b16 %v272
    %v1726 = vunpack.c.l.b16 %v273
    %v1727 = vunpack.c.h.b16 %v273
    %v1728 = vunpack.c.l.b16 %v274
    %v1729 = vunpack.c.h.b16 %v274
    %v1730 = vunpack.c.l.b16 %v275
    %v1731 = vunpack.c.h.b16 %v275
    %v1732 = vunpack.c.l.b16 %v276
    %v1733 = vunpack.c.h.b16 %v276
    %v1734 = vunpack.c.l.b16 %v277
    %v1735 = vunpack.c.h.b16 %v277
    %v1736 = vunpack.c.l.b16 %v278
    %v1737 = vunpack.c.h.b16 %v278
    %v1738 = vunpack.c.l.b16 %v279
    %v1739 = vunpack.c.h.b16 %v279
    %v1740 = vunpack.c.l.b16 %v280
    %v1741 = vunpack.c.h.b16 %v280
    %v1742 = vunpack.c.l.b16 %v281
    %v1743 = vunpack.c.h.b16 %v281
    %v1744 = vunpack.c.l.b16 %v282
    %v1745 = vunpack.c.h.b16 %v282
    %v1746 = vunpack.c.l.b16 %v283
    %v1747 = vunpack.c.h.b16 %v283
    %v1748 = vunpack.c.l.b16 %v284
    %v1749 = vunpack.c.h.b16 %v284
    %v1750 = vunpack.c.l.b16 %v285
    %v1751 = vunpack.c.h.b16 %v285
    %v1752 = vunpack.c.l.b16 %v286
    %v1753 = vunpack.c.h.b16 %v286
    %v1754 = vunpack.c.l.b16 %v287
    %v1755 = vunpack.c.h.b16 %v287
    %v1756 = vunpack.c.l.b16 %v288
    %v1757 = vunpack.c.h.b16 %v288
    %v1758 = vunpack.c.l.b16 %v289
    %v1759 = vunpack.c.h.b16 %v289
    %v1760 = vunpack.c.l.b16 %v290
    %v1761 = vunpack.c.h.b16 %v290
    %v1762 = vunpack.c.l.b16 %v291
    %v1763 = vunpack.c.h.b16 %v291
    %v1764 = vunpack.c.l.b16 %v292
    %v1765 = vunpack.c.h.b16 %v292
    %v1766 = vunpack.c.l.b16 %v293
    %v1767 = vunpack.c.h.b16 %v293
    %v1768 = vunpack.c.l.b16 %v294
    %v1769 = vunpack.c.h.b16 %v294
    %v1770 = vunpack.c.l.b16 %v295
    %v1771 = vunpack.c.h.b16 %v295
    %v1772 = vunpack.c.l.b16 %v296
    %v1773 = vunpack.c.h.b16 %v296
    %v1774 = vunpack.c.l.b16 %v297
    %v1775 = vunpack.c.h.b16 %v297
    %v1776 = vunpack.c.l.b16 %v298
    %v1777 = vunpack.c.h.b16 %v298
    %v1778 = vunpack.c.l.b16 %v299
    %v1779 = vunpack.c.h.b16 %v299
    %v1780 = vunpack.c.l.b16 %v300
    %v1781 = vunpack.c.h.b16 %v300
    %v1782 = vunpack.c.l.b16 %v301
    %v1783 = vunpack.c.h.b16 %v301
    %v1784 = vunpack.c.l.b16 %v302
    %v1785 = vunpack.c.h.b16 %v302
    %v1786 = vunpack.c.l.b16 %v303
    %v1787 = vunpack.c.h.b16 %v303
    %v1788 = vunpack.c.l.b16 %v304
    %v1789 = vunpack.c.h.b16 %v304
    %v1790 = vunpack.c.l.b16 %v305
    %v1791 = vunpack.c.h.b16 %v305
    %v1792 = vunpack.c.l.b16 %v306
    %v1793 = vunpack.c.h.b16 %v306
    %v1794 = vunpack.c.l.b16 %v307
    %v1795 = vunpack.c.h.b16 %v307
    %v1796 = vunpack.c.l.b16 %v308
    %v1797 = vunpack.c.h.b16 %v308
    %v1798 = vunpack.c.l.b16 %v309
    %v1799 = vunpack.c.h.b16 %v309
    %v1800 = vunpack.c.l.b16 %v310
    %v1801 = vunpack.c.h.b16 %v310
    %v1802 = vunpack.c.l.b16 %v311
    %v1803 = vunpack.c.h.b16 %v311
    %v1804 = vunpack.c.l.b16 %v312
    %v1805 = vunpack.c.h.b16 %v312
    %v1806 = vunpack.c.l.b16 %v313
    %v1807 = vunpack.c.h.b16 %v313
    %v1808 = vunpack.c.l.b16 %v314
    %v1809 = vunpack.c.h.b16 %v314
    %v1810 = vunpack.c.l.b16 %v315
    %v1811 = vunpack.c.h.b16 %v315
    %v1812 = vunpack.c.l.b16 %v316
    %v1813 = vunpack.c.h.b16 %v316
    %v1814 = vunpack.c.l.b16 %v317
    %v1815 = vunpack.c.h.b16 %v317
    %v1816 = vunpack.c.l.b16 %v318
    %v1817 = vunpack.c.h.b16 %v318
    %v1818 = vunpack.c.l.b16 %v319
    %v1819 = vunpack.c.h.b16 %v319
    %v1820 = vunpack.c.l.b16 %v320
    %v1821 = vunpack.c.h.b16 %v320
    %v1822 = vunpack.c.l.b16 %v321
    %v1823 = vunpack.c.h.b16 %v321
    %v1824 = vunpack.c.l.b16 %v322
    %v1825 = vunpack.c.h.b16 %v322
    %v1826 = vunpack.c.l.b16 %v323
    %v1827 = vunpack.c.h.b16 %v323
    %v1828 = vunpack.c.l.b16 %v324
    %v1829 = vunpack.c.h.b16 %v324
    %v1830 = vunpack.c.l.b16 %v325
    %v1831 = vunpack.c.h.b16 %v325
    %v1832 = vunpack.c.l.b16 %v326
    %v1833 = vunpack.c.h.b16 %v326
    %v1834 = vunpack.c.l.b16 %v327
    %v1835 = vunpack.c.h.b16 %v327
    %v1836 = vunpack.c.l.b16 %v328
    %v1837 = vunpack.c.h.b16 %v328
    %v1838 = vunpack.c.l.b16 %v329
    %v1839 = vunpack.c.h.b16 %v329
    %v1840 = vunpack.c.l.b16 %v330
    %v1841 = vunpack.c.h.b16 %v330
    %v1842 = vunpack.c.l.b16 %v331
    %v1843 = vunpack.c.h.b16 %v331
    %v1844 = vunpack.c.l.b16 %v332
    %v1845 = vunpack.c.h.b16 %v332
    %v1846 = vunpack.c.l.b16 %v333
    %v1847 = vunpack.c.h.b16 %v333
    %v1848 = vunpack.c.l.b16 %v334
    %v1849 = vunpack.c.h.b16 %v334
    %v1850 = vunpack.c.l.b16 %v335
    %v1851 = vunpack.c.h.b16 %v335
    %v1852 = vunpack.c.l.b16 %v336
    %v1853 = vunpack.c.h.b16 %v336
    %v1854 = vunpack.c.l.b16 %v337
    %v1855 = vunpack.c.h.b16 %v337
    %v1856 = vunpack.c.l.b16 %v338
    %v1857 = vunpack.c.h.b16 %v338
    %v1858 = vunpack.c.l.b16 %v339
    %v1859 = vunpack.c.h.b16 %v339
    %v1860 = vunpack.c.l.b16 %v340
    %v1861 = vunpack.c.h.b16 %v340
    %v1862 = vunpack.c.l.b16 %v341
    %v1863 = vunpack.c.h.b16 %v341
    %v1864 = vunpack.c.l.b16 %v342
    %v1865 = vunpack.c.h.b16 %v342
    %v1866 = vunpack.c.l.b16 %v343
    %v1867 = vunpack.c.h.b16 %v343
    %v1868 = vunpack.c.l.b16 %v344
    %v1869 = vunpack.c.h.b16 %v344
    %v1870 = vunpack.c.l.b16 %v345
    %v1871 = vunpack.c.h.b16 %v345
    %v1872 = vunpack.c.l.b16 %v346
    %v1873 = vunpack.c.h.b16 %v346
    %v1874 = vunpack.c.l.b16 %v347
    %v1875 = vunpack.c.h.b16 %v347
    %v1876 = vunpack.c.l.b16 %v348
    %v1877 = vunpack.c.h.b16 %v348
    %v1878 = vunpack.c.l.b16 %v349
    %v1879 = vunpack.c.h.b16 %v349
    %v1880 = vunpack.c.l.b16 %v350
    %v1881 = vunpack.c.h.b16 %v350
    %v1882 = vunpack.c.l.b16 %v351
    %v1883 = vunpack.c.h.b16 %v351
    %v1884 = vunpack.c.l.b16 %v352
    %v1885 = vunpack.c.h.b16 %v352
    %v1886 = vunpack.c.l.b16 %v353
    %v1887 = vunpack.c.h.b16 %v353
    %v1888 = vunpack.c.l.b16 %v354
    %v1889 = vunpack.c.h.b16 %v354
    %v1890 = vunpack.c.l.b16 %v355
    %v1891 = vunpack.c.h.b16 %v355
    %v1892 = vunpack.c.l.b16 %v356
    %v1893 = vunpack.c.h.b16 %v356
    %v1894 = vunpack.c.l.b16 %v357
    %v1895 = vunpack.c.h.b16 %v357
    %v1896 = vunpack.c.l.b16 %v358
    %v1897 = vunpack.c.h.b16 %v358
    %v1898 = vunpack.c.l.b16 %v359
    %v1899 = vunpack.c.h.b16 %v359
    %v1900 = vunpack.c.l.b16 %v360
    %v1901 = vunpack.c.h.b16 %v360
    %v1902 = vunpack.c.l.b16 %v361
    %v1903 = vunpack.c.h.b16 %v361
    %v1904 = vunpack.c.l.b16 %v362
    %v1905 = vunpack.c.h.b16 %v362
    %v1906 = vunpack.c.l.b16 %v363
    %v1907 = vunpack.c.h.b16 %v363
    %v1908 = vunpack.c.l.b16 %v364
    %v1909 = vunpack.c.h.b16 %v364
    %v1910 = vunpack.c.l.b16 %v365
    %v1911 = vunpack.c.h.b16 %v365
    %v1912 = vunpack.c.l.b16 %v366
    %v1913 = vunpack.c.h.b16 %v366
    %v1914 = vunpack.c.l.b16 %v367
    %v1915 = vunpack.c.h.b16 %v367
    %v1916 = vunpack.c.l.b16 %v368
    %v1917 = vunpack.c.h.b16 %v368
    %v1918 = vunpack.c.l.b16 %v369
    %v1919 = vunpack.c.h.b16 %v369
    %v1920 = vunpack.c.l.b16 %v370
    %v1921 = vunpack.c.h.b16 %v370
    %v1922 = vunpack.c.l.b16 %v371
    %v1923 = vunpack.c.h.b16 %v371
    %v1924 = vunpack.c.l.b16 %v372
    %v1925 = vunpack.c.h.b16 %v372
    %v1926 = vunpack.c.l.b16 %v373
    %v1927 = vunpack.c.h.b16 %v373
    %v1928 = vunpack.c.l.b16 %v374
    %v1929 = vunpack.c.h.b16 %v374
    %v1930 = vunpack.c.l.b16 %v375
    %v1931 = vunpack.c.h.b16 %v375
    %v1932 = vunpack.c.l.b16 %v376
    %v1933 = vunpack.c.h.b16 %v376
    %v1934 = vunpack.c.l.b16 %v377
    %v1935 = vunpack.c.h.b16 %v377
    %v1936 = vunpack.c.l.b16 %v378
    %v1937 = vunpack.c.h.b16 %v378
    %v1938 = vunpack.c.l.b16 %v379
    %v1939 = vunpack.c.h.b16 %v379
    %v1940 = vunpack.c.l.b16 %v380
    %v1941 = vunpack.c.h.b16 %v380
    %v1942 = vunpack.c.l.b16 %v381
    %v1943 = vunpack.c.h.b16 %v381
    %v1944 = vunpack.c.l.b16 %v382
    %v1945 = vunpack.c.h.b16 %v382
    %v1946 = vunpack.c.l.b16 %v383
    %v1947 = vunpack.c.h.b16 %v383
    %v1948 = vunpack.c.l.b16 %v384
    %v1949 = vunpack.c.h.b16 %v384
    %v1950 = vunpack.c.l.b16 %v385
    %v1951 = vunpack.c.h.b16 %v385
    %v1952 = vunpack.c.l.b16 %v386
    %v1953 = vunpack.c.h.b16 %v386
    %v1954 = vunpack.c.l.b16 %v387
    %v1955 = vunpack.c.h.b16 %v387
    %v1956 = vunpack.c.l.b16 %v388
    %v1957 = vunpack.c.h.b16 %v388
    %v1958 = vunpack.c.l.b16 %v389
    %v1959 = vunpack.c.h.b16 %v389
    %v1960 = vunpack.c.l.b16 %v390
    %v1961 = vunpack.c.h.b16 %v390
    %v1962 = vunpack.c.l.b16 %v391
    %v1963 = vunpack.c.h.b16 %v391
    %v1964 = vunpack.c.l.b16 %v392
    %v1965 = vunpack.c.h.b16 %v392
    %v1966 = vunpack.c.l.b16 %v393
    %v1967 = vunpack.c.h.b16 %v393
    %v1968 = vunpack.c.l.b16 %v394
    %v1969 = vunpack.c.h.b16 %v394
    %v1970 = vunpack.c.l.b16 %v395
    %v1971 = vunpack.c.h.b16 %v395
    %v1972 = vunpack.c.l.b16 %v396
    %v1973 = vunpack.c.h.b16 %v396
    %v1974 = vunpack.c.l.b16 %v397
    %v1975 = vunpack.c.h.b16 %v397
    %v1976 = vunpack.c.l.b16 %v398
    %v1977 = vunpack.c.h.b16 %v398
    %v1978 = vunpack.c.l.b16 %v399
    %v1979 = vunpack.c.h.b16 %v399
    %v1980 = vunpack.c.l.b16 %v400
    %v1981 = vunpack.c.h.b16 %v400
    %v1982 = vunpack.c.l.b16 %v401
    %v1983 = vunpack.c.h.b16 %v401
    %v1984 = vunpack.c.l.b16 %v402
    %v1985 = vunpack.c.h.b16 %v402
    %v1986 = vunpack.c.l.b16 %v403
    %v1987 = vunpack.c.h.b16 %v403
    %v1988 = vunpack.c.l.b16 %v404
    %v1989 = vunpack.c.h.b16 %v404
    %v1990 = vunpack.c.l.b16 %v405
    %v1991 = vunpack.c.h.b16 %v405
    %v1992 = vunpack.c.l.b16 %v406
    %v1993 = vunpack.c.h.b16 %v406
    %v1994 = vunpack.c.l.b16 %v407
    %v1995 = vunpack.c.h.b16 %v407
    %v1996 = vunpack.c.l.b16 %v408
    %v1997 = vunpack.c.h.b16 %v408
    %v1998 = vunpack.c.l.b16 %v409
    %v1999 = vunpack.c.h.b16 %v409
    %v2000 = vunpack.c.l.b16 %v410
    %v2001 = vunpack.c.h.b16 %v410
    %v2002 = vunpack.c.l.b16 %v411
    %v2003 = vunpack.c.h.b16 %v411
    %v2004 = vunpack.c.l.b16 %v412
    %v2005 = vunpack.c.h.b16 %v412
    %v2006 = vunpack.c.l.b16 %v413
    %v2007 = vunpack.c.h.b16 %v413
    %v2008 = vunpack.c.l.b16 %v414
    %v2009 = vunpack.c.h.b16 %v414
    %v2010 = vunpack.c.l.b16 %v415
    %v2011 = vunpack.c.h.b16 %v415
    %v2012 = vunpack.c.l.b16 %v416
    %v2013 = vunpack.c.h.b16 %v416
    %v2014 = vunpack.c.l.b16 %v417
    %v2015 = vunpack.c.h.b16 %v417
    %v2016 = vunpack.c.l.b16 %v418
    %v2017 = vunpack.c.h.b16 %v418
    %v2018 = vunpack.c.l.b16 %v419
    %v2019 = vunpack.c.h.b16 %v419
    %v2020 = vunpack.c.l.b16 %v420
    %v2021 = vunpack.c.h.b16 %v420
    %v2022 = vunpack.c.l.b16 %v421
    %v2023 = vunpack.c.h.b16 %v421
    %v2024 = vunpack.c.l.b16 %v422
    %v2025 = vunpack.c.h.b16 %v422
    %v2026 = vunpack.c.l.b16 %v423
    %v2027 = vunpack.c.h.b16 %v423
    %v2028 = vunpack.c.l.b16 %v424
    %v2029 = vunpack.c.h.b16 %v424
    %v2030 = vunpack.c.l.b16 %v425
    %v2031 = vunpack.c.h.b16 %v425
    %v2032 = vunpack.c.l.b16 %v426
    %v2033 = vunpack.c.h.b16 %v426
    %v2034 = vunpack.c.l.b16 %v427
    %v2035 = vunpack.c.h.b16 %v427
    %v2036 = vunpack.c.l.b16 %v428
    %v2037 = vunpack.c.h.b16 %v428
    %v2038 = vunpack.c.l.b16 %v429
    %v2039 = vunpack.c.h.b16 %v429
    %v2040 = vunpack.c.l.b16 %v430
    %v2041 = vunpack.c.h.b16 %v430
    %v2042 = vunpack.c.l.b16 %v431
    %v2043 = vunpack.c.h.b16 %v431
    %v2044 = vunpack.c.l.b16 %v432
    %v2045 = vunpack.c.h.b16 %v432
    %v2046 = vunpack.c.l.b16 %v433
    %v2047 = vunpack.c.h.b16 %v433
    %v2048 = vunpack.c.l.b16 %v434
    %v2049 = vunpack.c.h.b16 %v434
    %v2050 = vunpack.c.l.b16 %v435
    %v2051 = vunpack.c.h.b16 %v435
    %v2052 = vunpack.c.l.b16 %v436
    %v2053 = vunpack.c.h.b16 %v436
    %v2054 = vunpack.c.l.b16 %v437
    %v2055 = vunpack.c.h.b16 %v437
    %v2056 = vunpack.c.l.b16 %v438
    %v2057 = vunpack.c.h.b16 %v438
    %v2058 = vunpack.c.l.b16 %v439
    %v2059 = vunpack.c.h.b16 %v439
    %v2060 = vunpack.c.l.b16 %v440
    %v2061 = vunpack.c.h.b16 %v440
    %v2062 = vunpack.c.l.b16 %v441
    %v2063 = vunpack.c.h.b16 %v441
    %v2064 = vunpack.c.l.b16 %v442
    %v2065 = vunpack.c.h.b16 %v442
    %v2066 = vunpack.c.l.b16 %v443
    %v2067 = vunpack.c.h.b16 %v443
    %v2068 = vunpack.c.l.b16 %v444
    %v2069 = vunpack.c.h.b16 %v444
    %v2070 = vunpack.c.l.b16 %v445
    %v2071 = vunpack.c.h.b16 %v445
    %v2072 = vunpack.c.l.b16 %v446
    %v2073 = vunpack.c.h.b16 %v446
    %v2074 = vunpack.c.l.b16 %v447
    %v2075 = vunpack.c.h.b16 %v447
    %v2076 = vunpack.c.l.b16 %v448
    %v2077 = vunpack.c.h.b16 %v448
    %v2078 = vunpack.c.l.b16 %v449
    %v2079 = vunpack.c.h.b16 %v449
    %v2080 = vunpack.c.l.b16 %v450
    %v2081 = vunpack.c.h.b16 %v450
    %v2082 = vunpack.c.l.b16 %v451
    %v2083 = vunpack.c.h.b16 %v451
    %v2084 = vunpack.c.l.b16 %v452
    %v2085 = vunpack.c.h.b16 %v452
    %v2086 = vunpack.c.l.b16 %v453
    %v2087 = vunpack.c.h.b16 %v453
    %v2088 = vunpack.c.l.b16 %v454
    %v2089 = vunpack.c.h.b16 %v454
    %v2090 = vunpack.c.l.b16 %v455
    %v2091 = vunpack.c.h.b16 %v455
    %v2092 = vunpack.c.l.b16 %v456
    %v2093 = vunpack.c.h.b16 %v456
    %v2094 = vunpack.c.l.b16 %v457
    %v2095 = vunpack.c.h.b16 %v457
    %v2096 = vunpack.c.l.b16 %v458
    %v2097 = vunpack.c.h.b16 %v458
    %v2098 = vunpack.c.l.b16 %v459
    %v2099 = vunpack.c.h.b16 %v459
    %v2100 = vunpack.c.l.b16 %v460
    %v2101 = vunpack.c.h.b16 %v460
    %v2102 = vunpack.c.l.b16 %v461
    %v2103 = vunpack.c.h.b16 %v461
    %v2104 = vunpack.c.l.b16 %v462
    %v2105 = vunpack.c.h.b16 %v462
    %v2106 = vunpack.c.l.b16 %v463
    %v2107 = vunpack.c.h.b16 %v463
    %v2108 = vunpack.c.l.b16 %v464
    %v2109 = vunpack.c.h.b16 %v464
    %v2110 = vunpack.c.l.b16 %v465
    %v2111 = vunpack.c.h.b16 %v465
    %v2112 = vunpack.c.l.b16 %v466
    %v2113 = vunpack.c.h.b16 %v466
    %v2114 = vunpack.c.l.b16 %v467
    %v2115 = vunpack.c.h.b16 %v467
    %v2116 = vunpack.c.l.b16 %v468
    %v2117 = vunpack.c.h.b16 %v468
    %v2118 = vunpack.c.l.b16 %v469
    %v2119 = vunpack.c.h.b16 %v469
    %v2120 = vunpack.c.l.b16 %v470
    %v2121 = vunpack.c.h.b16 %v470
    %v2122 = vunpack.c.l.b16 %v471
    %v2123 = vunpack.c.h.b16 %v471
    %v2124 = vunpack.c.l.b16 %v472
    %v2125 = vunpack.c.h.b16 %v472
    %v2126 = vunpack.c.l.b16 %v473
    %v2127 = vunpack.c.h.b16 %v473
    %v2128 = vunpack.c.l.b16 %v474
    %v2129 = vunpack.c.h.b16 %v474
    %v2130 = vunpack.c.l.b16 %v475
    %v2131 = vunpack.c.h.b16 %v475
    %v2132 = vunpack.c.l.b16 %v476
    %v2133 = vunpack.c.h.b16 %v476
    %v2134 = vunpack.c.l.b16 %v477
    %v2135 = vunpack.c.h.b16 %v477
    %v2136 = vunpack.c.l.b16 %v478
    %v2137 = vunpack.c.h.b16 %v478
    %v2138 = vunpack.c.l.b16 %v479
    %v2139 = vunpack.c.h.b16 %v479
    %v2140 = vunpack.c.l.b16 %v480
    %v2141 = vunpack.c.h.b16 %v480
    %v2142 = vunpack.c.l.b16 %v481
    %v2143 = vunpack.c.h.b16 %v481
    %v2144 = vunpack.c.l.b16 %v482
    %v2145 = vunpack.c.h.b16 %v482
    %v2146 = vunpack.c.l.b16 %v483
    %v2147 = vunpack.c.h.b16 %v483
    %v2148 = vunpack.c.l.b16 %v484
    %v2149 = vunpack.c.h.b16 %v484
    %v2150 = vunpack.c.l.b16 %v485
    %v2151 = vunpack.c.h.b16 %v485
    %v2152 = vunpack.c.l.b16 %v486
    %v2153 = vunpack.c.h.b16 %v486
    %v2154 = vunpack.c.l.b16 %v487
    %v2155 = vunpack.c.h.b16 %v487
    %v2156 = vunpack.c.l.b16 %v488
    %v2157 = vunpack.c.h.b16 %v488
    %v2158 = vunpack.c.l.b16 %v489
    %v2159 = vunpack.c.h.b16 %v489
    %v2160 = vunpack.c.l.b16 %v490
    %v2161 = vunpack.c.h.b16 %v490
    %v2162 = vunpack.c.l.b16 %v491
    %v2163 = vunpack.c.h.b16 %v491
    %v2164 = vunpack.c.l.b16 %v492
    %v2165 = vunpack.c.h.b16 %v492
    %v2166 = vunpack.c.l.b16 %v493
    %v2167 = vunpack.c.h.b16 %v493
    %v2168 = vunpack.c.l.b16 %v494
    %v2169 = vunpack.c.h.b16 %v494
    %v2170 = vunpack.c.l.b16 %v495
    %v2171 = vunpack.c.h.b16 %v495
    %v2172 = vunpack.c.l.b16 %v496
    %v2173 = vunpack.c.h.b16 %v496
    %v2174 = vunpack.c.l.b16 %v497
    %v2175 = vunpack.c.h.b16 %v497
    %v2176 = vunpack.c.l.b16 %v498
    %v2177 = vunpack.c.h.b16 %v498
    %v2178 = vunpack.c.l.b16 %v499
    %v2179 = vunpack.c.h.b16 %v499
    %v2180 = vunpack.c.l.b16 %v500
    %v2181 = vunpack.c.h.b16 %v500
    %v2182 = vunpack.c.l.b16 %v501
    %v2183 = vunpack.c.h.b16 %v501
    %v2184 = vunpack.c.l.b16 %v502
    %v2185 = vunpack.c.h.b16 %v502
    %v2186 = vunpack.c.l.b16 %v503
    %v2187 = vunpack.c.h.b16 %v503
    %v2188 = vunpack.c.l.b16 %v504
    %v2189 = vunpack.c.h.b16 %v504
    %v2190 = vunpack.c.l.b16 %v505
    %v2191 = vunpack.c.h.b16 %v505
    %v2192 = vunpack.c.l.b16 %v506
    %v2193 = vunpack.c.h.b16 %v506
    %v2194 = vunpack.c.l.b16 %v507
    %v2195 = vunpack.c.h.b16 %v507
    %v2196 = vunpack.c.l.b16 %v508
    %v2197 = vunpack.c.h.b16 %v508
    %v2198 = vunpack.c.l.b16 %v509
    %v2199 = vunpack.c.h.b16 %v509
    %v2200 = vunpack.c.l.b16 %v510
    %v2201 = vunpack.c.h.b16 %v510
    %v2202 = vunpack.c.l.b16 %v511
    %v2203 = vunpack.c.h.b16 %v511
    %v2204 = vunpack.c.l.b16 %v512
    %v2205 = vunpack.c.h.b16 %v512
    %v2206 = vunpack.c.l.b16 %v513
    %v2207 = vunpack.c.h.b16 %v513
    %v2208 = vunpack.c.l.b16 %v514
    %v2209 = vunpack.c.h.b16 %v514
    %v2210 = vunpack.c.l.b16 %v515
    %v2211 = vunpack.c.h.b16 %v515
    %v2212 = vunpack.c.l.b16 %v516
    %v2213 = vunpack.c.h.b16 %v516
    %v2214 = vunpack.c.l.b16 %v517
    %v2215 = vunpack.c.h.b16 %v517
    %v2216 = vunpack.c.l.b16 %v518
    %v2217 = vunpack.c.h.b16 %v518
    %v2218 = vunpack.c.l.b16 %v519
    %v2219 = vunpack.c.h.b16 %v519
    %v2220 = vunpack.c.l.b16 %v520
    %v2221 = vunpack.c.h.b16 %v520
    %v2222 = vunpack.c.l.b16 %v521
    %v2223 = vunpack.c.h.b16 %v521
    %v2224 = vunpack.c.l.b16 %v522
    %v2225 = vunpack.c.h.b16 %v522
    %v2226 = vunpack.c.l.b16 %v523
    %v2227 = vunpack.c.h.b16 %v523
    %v2228 = vunpack.c.l.b16 %v524
    %v2229 = vunpack.c.h.b16 %v524
    %v2230 = vunpack.c.l.b16 %v525
    %v2231 = vunpack.c.h.b16 %v525
    %v2232 = vunpack.c.l.b16 %v526
    %v2233 = vunpack.c.h.b16 %v526
    %v2234 = vunpack.c.l.b16 %v527
    %v2235 = vunpack.c.h.b16 %v527
    %v2236 = vunpack.c.l.b16 %v528
    %v2237 = vunpack.c.h.b16 %v528
    %v2238 = vunpack.c.l.b16 %v529
    %v2239 = vunpack.c.h.b16 %v529
    %v2240 = vunpack.c.l.b16 %v530
    %v2241 = vunpack.c.h.b16 %v530
    %v2242 = vunpack.c.l.b16 %v531
    %v2243 = vunpack.c.h.b16 %v531
    %v2244 = vunpack.c.l.b16 %v532
    %v2245 = vunpack.c.h.b16 %v532
    %v2246 = vunpack.c.l.b16 %v533
    %v2247 = vunpack.c.h.b16 %v533
    %v2248 = vunpack.c.l.b16 %v534
    %v2249 = vunpack.c.h.b16 %v534
    %v2250 = vunpack.c.l.b16 %v535
    %v2251 = vunpack.c.h.b16 %v535
    %v2252 = vunpack.c.l.b16 %v536
    %v2253 = vunpack.c.h.b16 %v536
    %v2254 = vunpack.c.l.b16 %v537
    %v2255 = vunpack.c.h.b16 %v537
    %v2256 = vunpack.c.l.b16 %v538
    %v2257 = vunpack.c.h.b16 %v538
    %v2258 = vunpack.c.l.b16 %v539
    %v2259 = vunpack.c.h.b16 %v539
    %v2260 = vunpack.c.l.b16 %v540
    %v2261 = vunpack.c.h.b16 %v540
    %v2262 = vunpack.c.l.b16 %v541
    %v2263 = vunpack.c.h.b16 %v541
    %v2264 = vunpack.c.l.b16 %v542
    %v2265 = vunpack.c.h.b16 %v542
    %v2266 = vunpack.c.l.b16 %v543
    %v2267 = vunpack.c.h.b16 %v543
    %v2268 = vunpack.c.l.b16 %v544
    %v2269 = vunpack.c.h.b16 %v544
    %v2270 = vunpack.c.l.b16 %v545
    %v2271 = vunpack.c.h.b16 %v545
    %v2272 = vunpack.c.l.b16 %v546
    %v2273 = vunpack.c.h.b16 %v546
    %v2274 = vunpack.c.l.b16 %v547
    %v2275 = vunpack.c.h.b16 %v547
    %v2276 = vunpack.c.l.b16 %v548
    %v2277 = vunpack.c.h.b16 %v548
    %v2278 = vunpack.c.l.b16 %v549
    %v2279 = vunpack.c.h.b16 %v549
    %v2280 = vunpack.c.l.b16 %v550
    %v2281 = vunpack.c.h.b16 %v550
    %v2282 = vunpack.c.l.b16 %v551
    %v2283 = vunpack.c.h.b16 %v551
    %v2284 = vunpack.c.l.b16 %v552
    %v2285 = vunpack.c.h.b16 %v552
    %v2286 = vunpack.c.l.b16 %v553
    %v2287 = vunpack.c.h.b16 %v553
    %v2288 = vunpack.c.l.b16 %v554
    %v2289 = vunpack.c.h.b16 %v554
    %v2290 = vunpack.c.l.b16 %v555
    %v2291 = vunpack.c.h.b16 %v555
    %v2292 = vunpack.c.l.b16 %v556
    %v2293 = vunpack.c.h.b16 %v556
    %v2294 = vunpack.c.l.b16 %v557
    %v2295 = vunpack.c.h.b16 %v557
    %v2296 = vunpack.c.l.b16 %v558
    %v2297 = vunpack.c.h.b16 %v558
    %v2298 = vunpack.c.l.b16 %v559
    %v2299 = vunpack.c.h.b16 %v559
    %v2300 = vunpack.c.l.b16 %v560
    %v2301 = vunpack.c.h.b16 %v560
    %v2302 = vunpack.c.l.b16 %v561
    %v2303 = vunpack.c.h.b16 %v561
    %v2304 = vunpack.c.l.b16 %v562
    %v2305 = vunpack.c.h.b16 %v562
    %v2306 = vunpack.c.l.b16 %v563
    %v2307 = vunpack.c.h.b16 %v563
    %v2308 = vunpack.c.l.b16 %v564
    %v2309 = vunpack.c.h.b16 %v564
    %v2310 = vunpack.c.l.b16 %v565
    %v2311 = vunpack.c.h.b16 %v565
    %v2312 = vunpack.c.l.b16 %v566
    %v2313 = vunpack.c.h.b16 %v566
    %v2314 = vunpack.c.l.b16 %v567
    %v2315 = vunpack.c.h.b16 %v567
    %v2316 = vunpack.c.l.b16 %v568
    %v2317 = vunpack.c.h.b16 %v568
    %v2318 = vunpack.c.l.b16 %v569
    %v2319 = vunpack.c.h.b16 %v569
    %v2320 = vunpack.c.l.b16 %v570
    %v2321 = vunpack.c.h.b16 %v570
    %v2322 = vunpack.c.l.b16 %v571
    %v2323 = vunpack.c.h.b16 %v571
    %v2324 = vunpack.c.l.b16 %v572
    %v2325 = vunpack.c.h.b16 %v572
    %v2326 = vunpack.c.l.b16 %v573
    %v2327 = vunpack.c.h.b16 %v573
    %v2328 = vunpack.c.l.b16 %v574
    %v2329 = vunpack.c.h.b16 %v574
    %v2330 = vunpack.c.l.b16 %v575
    %v2331 = vunpack.c.h.b16 %v575
    %v2332 = vunpack.c.l.b16 %v576
    %v2333 = vunpack.c.h.b16 %v576
    %v2334 = vunpack.c.l.b16 %v577
    %v2335 = vunpack.c.h.b16 %v577
    %v2336 = vunpack.c.l.b16 %v578
    %v2337 = vunpack.c.h.b16 %v578
    %v2338 = vunpack.c.l.b16 %v579
    %v2339 = vunpack.c.h.b16 %v579
    %v2340 = vunpack.c.l.b16 %v580
    %v2341 = vunpack.c.h.b16 %v580
    %v2342 = vunpack.c.l.b16 %v581
    %v2343 = vunpack.c.h.b16 %v581
    %v2344 = vunpack.c.l.b16 %v582
    %v2345 = vunpack.c.h.b16 %v582
    %v2346 = vunpack.c.l.b16 %v583
    %v2347 = vunpack.c.h.b16 %v583
    %v2348 = vunpack.c.l.b16 %v584
    %v2349 = vunpack.c.h.b16 %v584
    %v2350 = vunpack.c.l.b16 %v585
    %v2351 = vunpack.c.h.b16 %v585
    %v2352 = vunpack.c.l.b16 %v586
    %v2353 = vunpack.c.h.b16 %v586
    %v2354 = vunpack.c.l.b16 %v587
    %v2355 = vunpack.c.h.b16 %v587
    %v2356 = vunpack.c.l.b16 %v588
    %v2357 = vunpack.c.h.b16 %v588
    %v2358 = vunpack.c.l.b16 %v589
    %v2359 = vunpack.c.h.b16 %v589
    %v2360 = vunpack.c.l.b16 %v590
    %v2361 = vunpack.c.h.b16 %v590
    %v2362 = vunpack.c.l.b16 %v591
    %v2363 = vunpack.c.h.b16 %v591
    %v2364 = vunpack.c.l.b16 %v592
    %v2365 = vunpack.c.h.b16 %v592
    %v2366 = vunpack.c.l.b16 %v593
    %v2367 = vunpack.c.h.b16 %v593
    %v2368 = vunpack.c.l.b16 %v594
    %v2369 = vunpack.c.h.b16 %v594
    %v2370 = vunpack.c.l.b16 %v595
    %v2371 = vunpack.c.h.b16 %v595
    %v2372 = vunpack.c.l.b16 %v596
    %v2373 = vunpack.c.h.b16 %v596
    %v2374 = vunpack.c.l.b16 %v597
    %v2375 = vunpack.c.h.b16 %v597
    %v2376 = vunpack.c.l.b16 %v598
    %v2377 = vunpack.c.h.b16 %v598
    %v2378 = vunpack.c.l.b16 %v599
    %v2379 = vunpack.c.h.b16 %v599
    %v2380 = vpack.c.b16 %v1232, %v1228
    %v2381 = vpack.c.b16 %v1233, %v1229
    %v2382 = vpack.c.b16 %v1234, %v1230
    %v2383 = vpack.c.b16 %v1235, %v1231
    %v2384 = vpack.c.b16 %v1240, %v1236
    %v2385 = vpack.c.b16 %v1241, %v1237
    %v2386 = vpack.c.b16 %v1242, %v1238
    %v2387 = vpack.c.b16 %v1243, %v1239
    %v2388 = vpack.c.b16 %v1248, %v1244
    %v2389 = vpack.c.b16 %v1249, %v1245
    %v2390 = vpack.c.b16 %v1250, %v1246
    %v2391 = vpack.c.b16 %v1251, %v1247
    %v2392 = vpack.c.b16 %v1256, %v1252
    %v2393 = vpack.c.b16 %v1257, %v1253
    %v2394 = vpack.c.b16 %v1258, %v1254
    %v2395 = vpack.c.b16 %v1259, %v1255
    %v2396 = vpack.c.b16 %v1264, %v1260
    %v2397 = vpack.c.b16 %v1265, %v1261
    %v2398 = vpack.c.b16 %v1266, %v1262
    %v2399 = vpack.c.b16 %v1267, %v1263
    %v2400 = vpack.c.b16 %v1272, %v1268
    %v2401 = vpack.c.b16 %v1273, %v1269
    %v2402 = vpack.c.b16 %v1274, %v1270
    %v2403 = vpack.c.b16 %v1275, %v1271
    %v2404 = vpack.c.b16 %v1280, %v1276
    %v2405 = vpack.c.b16 %v1281, %v1277
    %v2406 = vpack.c.b16 %v1282, %v1278
    %v2407 = vpack.c.b16 %v1283, %v1279
    %v2408 = vpack.c.b16 %v1288, %v1284
    %v2409 = vpack.c.b16 %v1289, %v1285
    %v2410 = vpack.c.b16 %v1290, %v1286
    %v2411 = vpack.c.b16 %v1291, %v1287
    %v2412 = vpack.c.b16 %v1296, %v1292
    %v2413 = vpack.c.b16 %v1297, %v1293
    %v2414 = vpack.c.b16 %v1298, %v1294
    %v2415 = vpack.c.b16 %v1299, %v1295
    %v2416 = vpack.c.b16 %v1304, %v1300
    %v2417 = vpack.c.b16 %v1305, %v1301
    %v2418 = vpack.c.b16 %v1306, %v1302
    %v2419 = vpack.c.b16 %v1307, %v1303
    %v2420 = vpack.c.b16 %v1312, %v1308
    %v2421 = vpack.c.b16 %v1313, %v1309
    %v2422 = vpack.c.b16 %v1314, %v1310
    %v2423 = vpack.c.b16 %v1315, %v1311
    %v2424 = vpack.c.b16 %v1320, %v1316
    %v2425 = vpack.c.b16 %v1321, %v1317
    %v2426 = vpack.c.b16 %v1322, %v1318
    %v2427 = vpack.c.b16 %v1323, %v1319
    %v2428 = vpack.c.b16 %v1328, %v1324
    %v2429 = vpack.c.b16 %v1329, %v1325
    %v2430 = vpack.c.b16 %v1330, %v1326
    %v2431 = vpack.c.b16 %v1331, %v1327
    %v2432 = vpack.c.b16 %v1336, %v1332
    %v2433 = vpack.c.b16 %v1337, %v1333
    %v2434 = vpack.c.b16 %v1338, %v1334
    %v2435 = vpack.c.b16 %v1339, %v1335
    %v2436 = vpack.c.b16 %v1344, %v1340
    %v2437 = vpack.c.b16 %v1345, %v1341
    %v2438 = vpack.c.b16 %v1346, %v1342
    %v2439 = vpack.c.b16 %v1347, %v1343
    %v2440 = vpack.c.b16 %v1352, %v1348
    %v2441 = vpack.c.b16 %v1353, %v1349
    %v2442 = vpack.c.b16 %v1354, %v1350
    %v2443 = vpack.c.b16 %v1355, %v1351
    %v2444 = vpack.c.b16 %v1360, %v1356
    %v2445 = vpack.c.b16 %v1361, %v1357
    %v2446 = vpack.c.b16 %v1362, %v1358
    %v2447 = vpack.c.b16 %v1363, %v1359
    %v2448 = vpack.c.b16 %v1368, %v1364
    %v2449 = vpack.c.b16 %v1369, %v1365
    %v2450 = vpack.c.b16 %v1370, %v1366
    %v2451 = vpack.c.b16 %v1371, %v1367
    %v2452 = vpack.c.b16 %v1376, %v1372
    %v2453 = vpack.c.b16 %v1377, %v1373
    %v2454 = vpack.c.b16 %v1378, %v1374
    %v2455 = vpack.c.b16 %v1379, %v1375
    %v2456 = vpack.c.b16 %v1384, %v1380
    %v2457 = vpack.c.b16 %v1385, %v1381
    %v2458 = vpack.c.b16 %v1386, %v1382
    %v2459 = vpack.c.b16 %v1387, %v1383
    %v2460 = vpack.c.b16 %v1392, %v1388
    %v2461 = vpack.c.b16 %v1393, %v1389
    %v2462 = vpack.c.b16 %v1394, %v1390
    %v2463 = vpack.c.b16 %v1395, %v1391
    %v2464 = vpack.c.b16 %v1400, %v1396
    %v2465 = vpack.c.b16 %v1401, %v1397
    %v2466 = vpack.c.b16 %v1402, %v1398
    %v2467 = vpack.c.b16 %v1403, %v1399
    %v2468 = vpack.c.b16 %v1408, %v1404
    %v2469 = vpack.c.b16 %v1409, %v1405
    %v2470 = vpack.c.b16 %v1410, %v1406
    %v2471 = vpack.c.b16 %v1411, %v1407
    %v2472 = vpack.c.b16 %v1416, %v1412
    %v2473 = vpack.c.b16 %v1417, %v1413
    %v2474 = vpack.c.b16 %v1418, %v1414
    %v2475 = vpack.c.b16 %v1419, %v1415
    %v2476 = vpack.c.b16 %v1424, %v1420
    %v2477 = vpack.c.b16 %v1425, %v1421
    %v2478 = vpack.c.b16 %v1426, %v1422
    %v2479 = vpack.c.b16 %v1427, %v1423
    %v2480 = vpack.c.b16 %v1432, %v1428
    %v2481 = vpack.c.b16 %v1433, %v1429
    %v2482 = vpack.c.b16 %v1434, %v1430
    %v2483 = vpack.c.b16 %v1435, %v1431
    %v2484 = vpack.c.b16 %v1440, %v1436
    %v2485 = vpack.c.b16 %v1441, %v1437
    %v2486 = vpack.c.b16 %v1442, %v1438
    %v2487 = vpack.c.b16 %v1443, %v1439
    %v2488 = vpack.c.b16 %v1448, %v1444
    %v2489 = vpack.c.b16 %v1449, %v1445
    %v2490 = vpack.c.b16 %v1450, %v1446
    %v2491 = vpack.c.b16 %v1451, %v1447
    %v2492 = vpack.c.b16 %v1456, %v1452
    %v2493 = vpack.c.b16 %v1457, %v1453
    %v2494 = vpack.c.b16 %v1458, %v1454
    %v2495 = vpack.c.b16 %v1459, %v1455
    %v2496 = vpack.c.b16 %v1464, %v1460
    %v2497 = vpack.c.b16 %v1465, %v1461
    %v2498 = vpack.c.b16 %v1466, %v1462
    %v2499 = vpack.c.b16 %v1467, %v1463
    %v2500 = vpack.c.b16 %v1472, %v1468
    %v2501 = vpack.c.b16 %v1473, %v1469
    %v2502 = vpack.c.b16 %v1474, %v1470
    %v2503 = vpack.c.b16 %v1475, %v1471
    %v2504 = vpack.c.b16 %v1480, %v1476
    %v2505 = vpack.c.b16 %v1481, %v1477
    %v2506 = vpack.c.b16 %v1482, %v1478
    %v2507 = vpack.c.b16 %v1483, %v1479
    %v2508 = vpack.c.b16 %v1488, %v1484
    %v2509 = vpack.c.b16 %v1489, %v1485
    %v2510 = vpack.c.b16 %v1490, %v1486
    %v2511 = vpack.c.b16 %v1491, %v1487
    %v2512 = vpack.c.b16 %v1496, %v1492
    %v2513 = vpack.c.b16 %v1497, %v1493
    %v2514 = vpack.c.b16 %v1498, %v1494
    %v2515 = vpack.c.b16 %v1499, %v1495
    %v2516 = vpack.c.b16 %v1504, %v1500
    %v2517 = vpack.c.b16 %v1505, %v1501
    %v2518 = vpack.c.b16 %v1506, %v1502
    %v2519 = vpack.c.b16 %v1507, %v1503
    %v2520 = vpack.c.b16 %v1512, %v1508
    %v2521 = vpack.c.b16 %v1513, %v1509
    %v2522 = vpack.c.b16 %v1514, %v1510
    %v2523 = vpack.c.b16 %v1515, %v1511
    %v2524 = vpack.c.b16 %v1520, %v1516
    %v2525 = vpack.c.b16 %v1521, %v1517
    %v2526 = vpack.c.b16 %v1522, %v1518
    %v2527 = vpack.c.b16 %v1523, %v1519
    %v2528 = vpack.c.b16 %v1528, %v1524
    %v2529 = vpack.c.b16 %v1529, %v1525
    %v2530 = vpack.c.b16 %v1530, %v1526
    %v2531 = vpack.c.b16 %v1531, %v1527
    %v2532 = vpack.c.b16 %v1536, %v1532
    %v2533 = vpack.c.b16 %v1537, %v1533
    %v2534 = vpack.c.b16 %v1538, %v1534
    %v2535 = vpack.c.b16 %v1539, %v1535
    %v2536 = vpack.c.b16 %v1544, %v1540
    %v2537 = vpack.c.b16 %v1545, %v1541
    %v2538 = vpack.c.b16 %v1546, %v1542
    %v2539 = vpack.c.b16 %v1547, %v1543
    %v2540 = vpack.c.b16 %v1552, %v1548
    %v2541 = vpack.c.b16 %v1553, %v1549
    %v2542 = vpack.c.b16 %v1554, %v1550
    %v2543 = vpack.c.b16 %v1555, %v1551
    %v2544 = vpack.c.b16 %v1560, %v1556
    %v2545 = vpack.c.b16 %v1561, %v1557
    %v2546 = vpack.c.b16 %v1562, %v1558
    %v2547 = vpack.c.b16 %v1563, %v1559
    %v2548 = vpack.c.b16 %v1568, %v1564
    %v2549 = vpack.c.b16 %v1569, %v1565
    %v2550 = vpack.c.b16 %v1570, %v1566
    %v2551 = vpack.c.b16 %v1571, %v1567
    %v2552 = vpack.c.b16 %v1576, %v1572
    %v2553 = vpack.c.b16 %v1577, %v1573
    %v2554 = vpack.c.b16 %v1578, %v1574
    %v2555 = vpack.c.b16 %v1579, %v1575
    %v2556 = vpack.c.b16 %v1584, %v1580
    %v2557 = vpack.c.b16 %v1585, %v1581
    %v2558 = vpack.c.b16 %v1586, %v1582
    %v2559 = vpack.c.b16 %v1587, %v1583
    %v2560 = vpack.c.b16 %v1592, %v1588
    %v2561 = vpack.c.b16 %v1593, %v1589
    %v2562 = vpack.c.b16 %v1594, %v1590
    %v2563 = vpack.c.b16 %v1595, %v1591
    %v2564 = vpack.c.b16 %v1600, %v1596
    %v2565 = vpack.c.b16 %v1601, %v1597
    %v2566 = vpack.c.b16 %v1602, %v1598
    %v2567 = vpack.c.b16 %v1603, %v1599
    %v2568 = vpack.c.b16 %v1608, %v1604
    %v2569 = vpack.c.b16 %v1609, %v1605
    %v2570 = vpack.c.b16 %v1610, %v1606
    %v2571 = vpack.c.b16 %v1611, %v1607
    %v2572 = vpack.c.b16 %v1616, %v1612
    %v2573 = vpack.c.b16 %v1617, %v1613
    %v2574 = vpack.c.b16 %v1618, %v1614
    %v2575 = vpack.c.b16 %v1619, %v1615
    %v2576 = vpack.c.b16 %v1624, %v1620
    %v2577 = vpack.c.b16 %v1625, %v1621
    %v2578 = vpack.c.b16 %v1626, %v1622
    %v2579 = vpack.c.b16 %v1627, %v1623
    %v2580 = vpack.c.b16 %v1632, %v1628
    %v2581 = vpack.c.b16 %v1633, %v1629
    %v2582 = vpack.c.b16 %v1634, %v1630
    %v2583 = vpack.c.b16 %v1635, %v1631
    %v2584 = vpack.c.b16 %v1640, %v1636
    %v2585 = vpack.c.b16 %v1641, %v1637
    %v2586 = vpack.c.b16 %v1642, %v1638
    %v2587 = vpack.c.b16 %v1643, %v1639
    %v2588 = vpack.c.b16 %v1648, %v1644
    %v2589 = vpack.c.b16 %v1649, %v1645
    %v2590 = vpack.c.b16 %v1650, %v1646
    %v2591 = vpack.c.b16 %v1651, %v1647
    %v2592 = vpack.c.b16 %v1656, %v1652
    %v2593 = vpack.c.b16 %v1657, %v1653
    %v2594 = vpack.c.b16 %v1658, %v1654
    %v2595 = vpack.c.b16 %v1659, %v1655
    %v2596 = vpack.c.b16 %v1664, %v1660
    %v2597 = vpack.c.b16 %v1665, %v1661
    %v2598 = vpack.c.b16 %v1666, %v1662
    %v2599 = vpack.c.b16 %v1667, %v1663
    %v2600 = vpack.c.b16 %v1672, %v1668
    %v2601 = vpack.c.b16 %v1673, %v1669
    %v2602 = vpack.c.b16 %v1674, %v1670
    %v2603 = vpack.c.b16 %v1675, %v1671
    %v2604 = vpack.c.b16 %v1680, %v1676
    %v2605 = vpack.c.b16 %v1681, %v1677
    %v2606 = vpack.c.b16 %v1682, %v1678
    %v2607 = vpack.c.b16 %v1683, %v1679
    %v2608 = vpack.c.b16 %v1688, %v1684
    %v2609 = vpack.c.b16 %v1689, %v1685
    %v2610 = vpack.c.b16 %v1690, %v1686
    %v2611 = vpack.c.b16 %v1691, %v1687
    %v2612 = vpack.c.b16 %v1696, %v1692
    %v2613 = vpack.c.b16 %v1697, %v1693
    %v2614 = vpack.c.b16 %v1698, %v1694
    %v2615 = vpack.c.b16 %v1699, %v1695
    %v2616 = vpack.c.b16 %v1704, %v1700
    %v2617 = vpack.c.b16 %v1705, %v1701
    %v2618 = vpack.c.b16 %v1706, %v1702
    %v2619 = vpack.c.b16 %v1707, %v1703
    %v2620 = vpack.c.b16 %v1712, %v1708
    %v2621 = vpack.c.b16 %v1713, %v1709
    %v2622 = vpack.c.b16 %v1714, %v1710
    %v2623 = vpack.c.b16 %v1715, %v1711
    %v2624 = vpack.c.b16 %v1720, %v1716
    %v2625 = vpack.c.b16 %v1721, %v1717
    %v2626 = vpack.c.b16 %v1722, %v1718
    %v2627 = vpack.c.b16 %v1723, %v1719
    %v2628 = vpack.c.b16 %v1728, %v1724
    %v2629 = vpack.c.b16 %v1729, %v1725
    %v2630 = vpack.c.b16 %v1730, %v1726
    %v2631 = vpack.c.b16 %v1731, %v1727
    %v2632 = vpack.c.b16 %v1736, %v1732
    %v2633 = vpack.c.b16 %v1737, %v1733
    %v2634 = vpack.c.b16 %v1738, %v1734
    %v2635 = vpack.c.b16 %v1739, %v1735
    %v2636 = vpack.c.b16 %v1744, %v1740
    %v2637 = vpack.c.b16 %v1745, %v1741
    %v2638 = vpack.c.b16 %v1746, %v1742
    %v2639 = vpack.c.b16 %v1747, %v1743
    %v2640 = vpack.c.b16 %v1752, %v1748
    %v2641 = vpack.c.b16 %v1753, %v1749
    %v2642 = vpack.c.b16 %v1754, %v1750
    %v2643 = vpack.c.b16 %v1755, %v1751
    %v2644 = vpack.c.b16 %v1760, %v1756
    %v2645 = vpack.c.b16 %v1761, %v1757
    %v2646 = vpack.c.b16 %v1762, %v1758
    %v2647 = vpack.c.b16 %v1763, %v1759
    %v2648 = vpack.c.b16 %v1768, %v1764
    %v2649 = vpack.c.b16 %v1769, %v1765
    %v2650 = vpack.c.b16 %v1770, %v1766
    %v2651 = vpack.c.b16 %v1771, %v1767
    %v2652 = vpack.c.b16 %v1776, %v1772
    %v2653 = vpack.c.b16 %v1777, %v1773
    %v2654 = vpack.c.b16 %v1778, %v1774
    %v2655 = vpack.c.b16 %v1779, %v1775
    %v2656 = vpack.c.b16 %v1784, %v1780
    %v2657 = vpack.c.b16 %v1785, %v1781
    %v2658 = vpack.c.b16 %v1786, %v1782
    %v2659 = vpack.c.b16 %v1787, %v1783
    %v2660 = vpack.c.b16 %v1792, %v1788
    %v2661 = vpack.c.b16 %v1793, %v1789
    %v2662 = vpack.c.b16 %v1794, %v1790
    %v2663 = vpack.c.b16 %v1795, %v1791
    %v2664 = vpack.c.b16 %v1800, %v1796
    %v2665 = vpack.c.b16 %v1801, %v1797
    %v2666 = vpack.c.b16 %v1802, %v1798
    %v2667 = vpack.c.b16 %v1803, %v1799
    %v2668 = vpack.c.b16 %v1808, %v1804
    %v2669 = vpack.c.b16 %v1809, %v1805
    %v2670 = vpack.c.b16 %v1810, %v1806
    %v2671 = vpack.c.b16 %v1811, %v1807
    %v2672 = vpack.c.b16 %v1816, %v1812
    %v2673 = vpack.c.b16 %v1817, %v1813
    %v2674 = vpack.c.b16 %v1818, %v1814
    %v2675 = vpack.c.b16 %v1819, %v1815
    %v2676 = vpack.c.b16 %v1824, %v1820
    %v2677 = vpack.c.b16 %v1825, %v1821
    %v2678 = vpack.c.b16 %v1826, %v1822
    %v2679 = vpack.c.b16 %v1827, %v1823
    %v2680 = vpack.c.b16 %v1832, %v1828
    %v2681 = vpack.c.b16 %v1833, %v1829
    %v2682 = vpack.c.b16 %v1834, %v1830
    %v2683 = vpack.c.b16 %v1835, %v1831
    %v2684 = vpack.c.b16 %v1840, %v1836
    %v2685 = vpack.c.b16 %v1841, %v1837
    %v2686 = vpack.c.b16 %v1842, %v1838
    %v2687 = vpack.c.b16 %v1843, %v1839
    %v2688 = vpack.c.b16 %v1848, %v1844
    %v2689 = vpack.c.b16 %v1849, %v1845
    %v2690 = vpack.c.b16 %v1850, %v1846
    %v2691 = vpack.c.b16 %v1851, %v1847
    %v2692 = vpack.c.b16 %v1856, %v1852
    %v2693 = vpack.c.b16 %v1857, %v1853
    %v2694 = vpack.c.b16 %v1858, %v1854
    %v2695 = vpack.c.b16 %v1859, %v1855
    %v2696 = vpack.c.b16 %v1864, %v1860
    %v2697 = vpack.c.b16 %v1865, %v1861
    %v2698 = vpack.c.b16 %v1866, %v1862
    %v2699 = vpack.c.b16 %v1867, %v1863
    %v2700 = vpack.c.b16 %v1872, %v1868
    %v2701 = vpack.c.b16 %v1873, %v1869
    %v2702 = vpack.c.b16 %v1874, %v1870
    %v2703 = vpack.c.b16 %v1875, %v1871
    %v2704 = vpack.c.b16 %v1880, %v1876
    %v2705 = vpack.c.b16 %v1881, %v1877
    %v2706 = vpack.c.b16 %v1882, %v1878
    %v2707 = vpack.c.b16 %v1883, %v1879
    %v2708 = vpack.c.b16 %v1888, %v1884
    %v2709 = vpack.c.b16 %v1889, %v1885
    %v2710 = vpack.c.b16 %v1890, %v1886
    %v2711 = vpack.c.b16 %v1891, %v1887
    %v2712 = vpack.c.b16 %v1896, %v1892
    %v2713 = vpack.c.b16 %v1897, %v1893
    %v2714 = vpack.c.b16 %v1898, %v1894
    %v2715 = vpack.c.b16 %v1899, %v1895
    %v2716 = vpack.c.b16 %v1904, %v1900
    %v2717 = vpack.c.b16 %v1905, %v1901
    %v2718 = vpack.c.b16 %v1906, %v1902
    %v2719 = vpack.c.b16 %v1907, %v1903
    %v2720 = vpack.c.b16 %v1912, %v1908
    %v2721 = vpack.c.b16 %v1913, %v1909
    %v2722 = vpack.c.b16 %v1914, %v1910
    %v2723 = vpack.c.b16 %v1915, %v1911
    %v2724 = vpack.c.b16 %v1920, %v1916
    %v2725 = vpack.c.b16 %v1921, %v1917
    %v2726 = vpack.c.b16 %v1922, %v1918
    %v2727 = vpack.c.b16 %v1923, %v1919
    %v2728 = vpack.c.b16 %v1928, %v1924
    %v2729 = vpack.c.b16 %v1929, %v1925
    %v2730 = vpack.c.b16 %v1930, %v1926
    %v2731 = vpack.c.b16 %v1931, %v1927
    %v2732 = vpack.c.b16 %v1936, %v1932
    %v2733 = vpack.c.b16 %v1937, %v1933
    %v2734 = vpack.c.b16 %v1938, %v1934
    %v2735 = vpack.c.b16 %v1939, %v1935
    %v2736 = vpack.c.b16 %v1944, %v1940
    %v2737 = vpack.c.b16 %v1945, %v1941
    %v2738 = vpack.c.b16 %v1946, %v1942
    %v2739 = vpack.c.b16 %v1947, %v1943
    %v2740 = vpack.c.b16 %v1952, %v1948
    %v2741 = vpack.c.b16 %v1953, %v1949
    %v2742 = vpack.c.b16 %v1954, %v1950
    %v2743 = vpack.c.b16 %v1955, %v1951
    %v2744 = vpack.c.b16 %v1960, %v1956
    %v2745 = vpack.c.b16 %v1961, %v1957
    %v2746 = vpack.c.b16 %v1962, %v1958
    %v2747 = vpack.c.b16 %v1963, %v1959
    %v2748 = vpack.c.b16 %v1968, %v1964
    %v2749 = vpack.c.b16 %v1969, %v1965
    %v2750 = vpack.c.b16 %v1970, %v1966
    %v2751 = vpack.c.b16 %v1971, %v1967
    %v2752 = vpack.c.b16 %v1976, %v1972
    %v2753 = vpack.c.b16 %v1977, %v1973
    %v2754 = vpack.c.b16 %v1978, %v1974
    %v2755 = vpack.c.b16 %v1979, %v1975
    %v2756 = vpack.c.b16 %v1984, %v1980
    %v2757 = vpack.c.b16 %v1985, %v1981
    %v2758 = vpack.c.b16 %v1986, %v1982
    %v2759 = vpack.c.b16 %v1987, %v1983
    %v2760 = vpack.c.b16 %v1992, %v1988
    %v2761 = vpack.c.b16 %v1993, %v1989
    %v2762 = vpack.c.b16 %v1994, %v1990
    %v2763 = vpack.c.b16 %v1995, %v1991
    %v2764 = vpack.c.b16 %v2000, %v1996
    %v2765 = vpack.c.b16 %v2001, %v1997
    %v2766 = vpack.c.b16 %v2002, %v1998
    %v2767 = vpack.c.b16 %v2003, %v1999
    %v2768 = vpack.c.b16 %v2008, %v2004
    %v2769 = vpack.c.b16 %v2009, %v2005
    %v2770 = vpack.c.b16 %v2010, %v2006
    %v2771 = vpack.c.b16 %v2011, %v2007
    %v2772 = vpack.c.b16 %v2016, %v2012
    %v2773 = vpack.c.b16 %v2017, %v2013
    %v2774 = vpack.c.b16 %v2018, %v2014
    %v2775 = vpack.c.b16 %v2019, %v2015
    %v2776 = vpack.c.b16 %v2024, %v2020
    %v2777 = vpack.c.b16 %v2025, %v2021
    %v2778 = vpack.c.b16 %v2026, %v2022
    %v2779 = vpack.c.b16 %v2027, %v2023
    %v2780 = vpack.c.b16 %v2032, %v2028
    %v2781 = vpack.c.b16 %v2033, %v2029
    %v2782 = vpack.c.b16 %v2034, %v2030
    %v2783 = vpack.c.b16 %v2035, %v2031
    %v2784 = vpack.c.b16 %v2040, %v2036
    %v2785 = vpack.c.b16 %v2041, %v2037
    %v2786 = vpack.c.b16 %v2042, %v2038
    %v2787 = vpack.c.b16 %v2043, %v2039
    %v2788 = vpack.c.b16 %v2048, %v2044
    %v2789 = vpack.c.b16 %v2049, %v2045
    %v2790 = vpack.c.b16 %v2050, %v2046
    %v2791 = vpack.c.b16 %v2051, %v2047
    %v2792 = vpack.c.b16 %v2056, %v2052
    %v2793 = vpack.c.b16 %v2057, %v2053
    %v2794 = vpack.c.b16 %v2058, %v2054
    %v2795 = vpack.c.b16 %v2059, %v2055
    %v2796 = vpack.c.b16 %v2064, %v2060
    %v2797 = vpack.c.b16 %v2065, %v2061
    %v2798 = vpack.c.b16 %v2066, %v2062
    %v2799 = vpack.c.b16 %v2067, %v2063
    %v2800 = vpack.c.b16 %v2072, %v2068
    %v2801 = vpack.c.b16 %v2073, %v2069
    %v2802 = vpack.c.b16 %v2074, %v2070
    %v2803 = vpack.c.b16 %v2075, %v2071
    %v2804 = vpack.c.b16 %v2080, %v2076
    %v2805 = vpack.c.b16 %v2081, %v2077
    %v2806 = vpack.c.b16 %v2082, %v2078
    %v2807 = vpack.c.b16 %v2083, %v2079
    %v2808 = vpack.c.b16 %v2088, %v2084
    %v2809 = vpack.c.b16 %v2089, %v2085
    %v2810 = vpack.c.b16 %v2090, %v2086
    %v2811 = vpack.c.b16 %v2091, %v2087
    %v2812 = vpack.c.b16 %v2096, %v2092
    %v2813 = vpack.c.b16 %v2097, %v2093
    %v2814 = vpack.c.b16 %v2098, %v2094
    %v2815 = vpack.c.b16 %v2099, %v2095
    %v2816 = vpack.c.b16 %v2104, %v2100
    %v2817 = vpack.c.b16 %v2105, %v2101
    %v2818 = vpack.c.b16 %v2106, %v2102
    %v2819 = vpack.c.b16 %v2107, %v2103
    %v2820 = vpack.c.b16 %v2112, %v2108
    %v2821 = vpack.c.b16 %v2113, %v2109
    %v2822 = vpack.c.b16 %v2114, %v2110
    %v2823 = vpack.c.b16 %v2115, %v2111
    %v2824 = vpack.c.b16 %v2120, %v2116
    %v2825 = vpack.c.b16 %v2121, %v2117
    %v2826 = vpack.c.b16 %v2122, %v2118
    %v2827 = vpack.c.b16 %v2123, %v2119
    %v2828 = vpack.c.b16 %v2128, %v2124
    %v2829 = vpack.c.b16 %v2129, %v2125
    %v2830 = vpack.c.b16 %v2130, %v2126
    %v2831 = vpack.c.b16 %v2131, %v2127
    %v2832 = vpack.c.b16 %v2136, %v2132
    %v2833 = vpack.c.b16 %v2137, %v2133
    %v2834 = vpack.c.b16 %v2138, %v2134
    %v2835 = vpack.c.b16 %v2139, %v2135
    %v2836 = vpack.c.b16 %v2144, %v2140
    %v2837 = vpack.c.b16 %v2145, %v2141
    %v2838 = vpack.c.b16 %v2146, %v2142
    %v2839 = vpack.c.b16 %v2147, %v2143
    %v2840 = vpack.c.b16 %v2152, %v2148
    %v2841 = vpack.c.b16 %v2153, %v2149
    %v2842 = vpack.c.b16 %v2154, %v2150
    %v2843 = vpack.c.b16 %v2155, %v2151
    %v2844 = vpack.c.b16 %v2160, %v2156
    %v2845 = vpack.c.b16 %v2161, %v2157
    %v2846 = vpack.c.b16 %v2162, %v2158
    %v2847 = vpack.c.b16 %v2163, %v2159
    %v2848 = vpack.c.b16 %v2168, %v2164
    %v2849 = vpack.c.b16 %v2169, %v2165
    %v2850 = vpack.c.b16 %v2170, %v2166
    %v2851 = vpack.c.b16 %v2171, %v2167
    %v2852 = vpack.c.b16 %v2176, %v2172
    %v2853 = vpack.c.b16 %v2177, %v2173
    %v2854 = vpack.c.b16 %v2178, %v2174
    %v2855 = vpack.c.b16 %v2179, %v2175
    %v2856 = vpack.c.b16 %v2184, %v2180
    %v2857 = vpack.c.b16 %v2185, %v2181
    %v2858 = vpack.c.b16 %v2186, %v2182
    %v2859 = vpack.c.b16 %v2187, %v2183
    %v2860 = vpack.c.b16 %v2192, %v2188
    %v2861 = vpack.c.b16 %v2193, %v2189
    %v2862 = vpack.c.b16 %v2194, %v2190
    %v2863 = vpack.c.b16 %v2195, %v2191
    %v2864 = vpack.c.b16 %v2200, %v2196
    %v2865 = vpack.c.b16 %v2201, %v2197
    %v2866 = vpack.c.b16 %v2202, %v2198
    %v2867 = vpack.c.b16 %v2203, %v2199
    %v2868 = vpack.c.b16 %v2208, %v2204
    %v2869 = vpack.c.b16 %v2209, %v2205
    %v2870 = vpack.c.b16 %v2210, %v2206
    %v2871 = vpack.c.b16 %v2211, %v2207
    %v2872 = vpack.c.b16 %v2216, %v2212
    %v2873 = vpack.c.b16 %v2217, %v2213
    %v2874 = vpack.c.b16 %v2218, %v2214
    %v2875 = vpack.c.b16 %v2219, %v2215
    %v2876 = vpack.c.b16 %v2224, %v2220
    %v2877 = vpack.c.b16 %v2225, %v2221
    %v2878 = vpack.c.b16 %v2226, %v2222
    %v2879 = vpack.c.b16 %v2227, %v2223
    %v2880 = vpack.c.b16 %v2232, %v2228
    %v2881 = vpack.c.b16 %v2233, %v2229
    %v2882 = vpack.c.b16 %v2234, %v2230
    %v2883 = vpack.c.b16 %v2235, %v2231
    %v2884 = vpack.c.b16 %v2240, %v2236
    %v2885 = vpack.c.b16 %v2241, %v2237
    %v2886 = vpack.c.b16 %v2242, %v2238
    %v2887 = vpack.c.b16 %v2243, %v2239
    %v2888 = vpack.c.b16 %v2248, %v2244
    %v2889 = vpack.c.b16 %v2249, %v2245
    %v2890 = vpack.c.b16 %v2250, %v2246
    %v2891 = vpack.c.b16 %v2251, %v2247
    %v2892 = vpack.c.b16 %v2256, %v2252
    %v2893 = vpack.c.b16 %v2257, %v2253
    %v2894 = vpack.c.b16 %v2258, %v2254
    %v2895 = vpack.c.b16 %v2259, %v2255
    %v2896 = vpack.c.b16 %v2264, %v2260
    %v2897 = vpack.c.b16 %v2265, %v2261
    %v2898 = vpack.c.b16 %v2266, %v2262
    %v2899 = vpack.c.b16 %v2267, %v2263
    %v2900 = vpack.c.b16 %v2272, %v2268
    %v2901 = vpack.c.b16 %v2273, %v2269
    %v2902 = vpack.c.b16 %v2274, %v2270
    %v2903 = vpack.c.b16 %v2275, %v2271
    %v2904 = vpack.c.b16 %v2280, %v2276
    %v2905 = vpack.c.b16 %v2281, %v2277
    %v2906 = vpack.c.b16 %v2282, %v2278
    %v2907 = vpack.c.b16 %v2283, %v2279
    %v2908 = vpack.c.b16 %v2288, %v2284
    %v2909 = vpack.c.b16 %v2289, %v2285
    %v2910 = vpack.c.b16 %v2290, %v2286
    %v2911 = vpack.c.b16 %v2291, %v2287
    %v2912 = vpack.c.b16 %v2296, %v2292
    %v2913 = vpack.c.b16 %v2297, %v2293
    %v2914 = vpack.c.b16 %v2298, %v2294
    %v2915 = vpack.c.b16 %v2299, %v2295
    %v2916 = vpack.c.b16 %v2304, %v2300
    %v2917 = vpack.c.b16 %v2305, %v2301
    %v2918 = vpack.c.b16 %v2306, %v2302
    %v2919 = vpack.c.b16 %v2307, %v2303
    %v2920 = vpack.c.b16 %v2312, %v2308
    %v2921 = vpack.c.b16 %v2313, %v2309
    %v2922 = vpack.c.b16 %v2314, %v2310
    %v2923 = vpack.c.b16 %v2315, %v2311
    %v2924 = vpack.c.b16 %v2320, %v2316
    %v2925 = vpack.c.b16 %v2321, %v2317
    %v2926 = vpack.c.b16 %v2322, %v2318
    %v2927 = vpack.c.b16 %v2323, %v2319
    %v2928 = vpack.c.b16 %v2328, %v2324
    %v2929 = vpack.c.b16 %v2329, %v2325
    %v2930 = vpack.c.b16 %v2330, %v2326
    %v2931 = vpack.c.b16 %v2331, %v2327
    %v2932 = vpack.c.b16 %v2336, %v2332
    %v2933 = vpack.c.b16 %v2337, %v2333
    %v2934 = vpack.c.b16 %v2338, %v2334
    %v2935 = vpack.c.b16 %v2339, %v2335
    %v2936 = vpack.c.b16 %v2344, %v2340
    %v2937 = vpack.c.b16 %v2345, %v2341
    %v2938 = vpack.c.b16 %v2346, %v2342
    %v2939 = vpack.c.b16 %v2347, %v2343
    %v2940 = vpack.c.b16 %v2352, %v2348
    %v2941 = vpack.c.b16 %v2353, %v2349
    %v2942 = vpack.c.b16 %v2354, %v2350
    %v2943 = vpack.c.b16 %v2355, %v2351
    %v2944 = vpack.c.b16 %v2360, %v2356
    %v2945 = vpack.c.b16 %v2361, %v2357
    %v2946 = vpack.c.b16 %v2362, %v2358
    %v2947 = vpack.c.b16 %v2363, %v2359
    %v2948 = vpack.c.b16 %v2368, %v2364
    %v2949 = vpack.c.b16 %v2369, %v2365
    %v2950 = vpack.c.b16 %v2370, %v2366
    %v2951 = vpack.c.b16 %v2371, %v2367
    %v2952 = vpack.c.b16 %v2376, %v2372
    %v2953 = vpack.c.b16 %v2377, %v2373
    %v2954 = vpack.c.b16 %v2378, %v2374
    %v2955 = vpack.c.b16 %v2379, %v2375
    %3532 = vmatpush.bf16.msra.mxu0 %v2408
    %3533 = vmatpush.bf16.msra.mxu0 %v2404
    %3534 = vmatpush.bf16.msra.mxu0 %v2400
    %3535 = vmatpush.bf16.msra.mxu0 %v2396
    %3536 = vmatpush.bf16.msra.mxu0 %v2392
    %3537 = vmatpush.bf16.msra.mxu0 %v2388
    %3538 = vmatpush.bf16.msra.mxu0 %v2384
    %3539 = vmatpush.bf16.msra.mxu0 %v2380
    %3540 = vmatmul.bf16.gmra.mxu0 %v612
    %v3541 = vpop.f32.mrf.mxu0
    %v3542 = vadd.f32 %v602, %v3541
    %v3543 = vpop.f32.mrf.mxu0
    %3544 = vdwg.mxu0
    %3545 = vmatpush.bf16.msra.mxu0 %v2440
    %3546 = vmatpush.bf16.msra.mxu0 %v2436
    %3547 = vmatpush.bf16.msra.mxu0 %v2432
    %3548 = vmatpush.bf16.msra.mxu0 %v2428
    %3549 = vmatpush.bf16.msra.mxu0 %v2424
    %3550 = vmatpush.bf16.msra.mxu0 %v2420
    %3551 = vmatpush.bf16.msra.mxu0 %v2416
    %3552 = vmatpush.bf16.msra.mxu0 %v2412
    %3553 = vmatmul.bf16.gmra.mxu0 %v613
    %v3554 = vpop.f32.mrf.mxu0
    %v3555 = vadd.f32 %v3542, %v3554
    %v3556 = vpop.f32.mrf.mxu0
    %3557 = vdwg.mxu0
    %3558 = vmatpush.bf16.msra.mxu0 %v2472
    %3559 = vmatpush.bf16.msra.mxu0 %v2468
    %3560 = vmatpush.bf16.msra.mxu0 %v2464
    %3561 = vmatpush.bf16.msra.mxu0 %v2460
    %3562 = vmatpush.bf16.msra.mxu0 %v2456
    %3563 = vmatpush.bf16.msra.mxu0 %v2452
    %3564 = vmatpush.bf16.msra.mxu0 %v2448
    %3565 = vmatpush.bf16.msra.mxu0 %v2444
    %3566 = vmatmul.bf16.gmra.mxu0 %v614
    %v3567 = vpop.f32.mrf.mxu0
    %v3568 = vadd.f32 %v3555, %v3567
    %v3569 = vpop.f32.mrf.mxu0
    %3570 = vdwg.mxu0
    %3571 = vmatpush.bf16.msra.mxu0 %v2504
    %3572 = vmatpush.bf16.msra.mxu0 %v2500
    %3573 = vmatpush.bf16.msra.mxu0 %v2496
    %3574 = vmatpush.bf16.msra.mxu0 %v2492
    %3575 = vmatpush.bf16.msra.mxu0 %v2488
    %3576 = vmatpush.bf16.msra.mxu0 %v2484
    %3577 = vmatpush.bf16.msra.mxu0 %v2480
    %3578 = vmatpush.bf16.msra.mxu0 %v2476
    %3579 = vmatmul.bf16.gmra.mxu0 %v615
    %v3580 = vpop.f32.mrf.mxu0
    %v3581 = vadd.f32 %v3568, %v3580
    %v3582 = vpop.f32.mrf.mxu0
    %3583 = vdwg.mxu0
    %3584 = vmatpush.bf16.msra.mxu0 %v2536
    %3585 = vmatpush.bf16.msra.mxu0 %v2532
    %3586 = vmatpush.bf16.msra.mxu0 %v2528
    %3587 = vmatpush.bf16.msra.mxu0 %v2524
    %3588 = vmatpush.bf16.msra.mxu0 %v2520
    %3589 = vmatpush.bf16.msra.mxu0 %v2516
    %3590 = vmatpush.bf16.msra.mxu0 %v2512
    %3591 = vmatpush.bf16.msra.mxu0 %v2508
    %3592 = vmatmul.bf16.gmra.mxu0 %v616
    %v3593 = vpop.f32.mrf.mxu0
    %v3594 = vadd.f32 %v3581, %v3593
    %v3595 = vpop.f32.mrf.mxu0
    %3596 = vdwg.mxu0
    %3597 = vmatpush.bf16.msra.mxu0 %v2568
    %3598 = vmatpush.bf16.msra.mxu0 %v2564
    %3599 = vmatpush.bf16.msra.mxu0 %v2560
    %3600 = vmatpush.bf16.msra.mxu0 %v2556
    %3601 = vmatpush.bf16.msra.mxu0 %v2552
    %3602 = vmatpush.bf16.msra.mxu0 %v2548
    %3603 = vmatpush.bf16.msra.mxu0 %v2544
    %3604 = vmatpush.bf16.msra.mxu0 %v2540
    %3605 = vmatmul.bf16.gmra.mxu0 %v617
    %v3606 = vpop.f32.mrf.mxu0
    %v3607 = vadd.f32 %v3594, %v3606
    %v3608 = vpop.f32.mrf.mxu0
    %3609 = vdwg.mxu0
    %3610 = vmatpush.bf16.msra.mxu0 %v2600
    %3611 = vmatpush.bf16.msra.mxu0 %v2596
    %3612 = vmatpush.bf16.msra.mxu0 %v2592
    %3613 = vmatpush.bf16.msra.mxu0 %v2588
    %3614 = vmatpush.bf16.msra.mxu0 %v2584
    %3615 = vmatpush.bf16.msra.mxu0 %v2580
    %3616 = vmatpush.bf16.msra.mxu0 %v2576
    %3617 = vmatpush.bf16.msra.mxu0 %v2572
    %3618 = vmatmul.bf16.gmra.mxu0 %v618
    %v3619 = vpop.f32.mrf.mxu0
    %v3620 = vadd.f32 %v3607, %v3619
    %v3621 = vpop.f32.mrf.mxu0
    %3622 = vdwg.mxu0
    %3623 = vmatpush.bf16.msra.mxu0 %v2632
    %3624 = vmatpush.bf16.msra.mxu0 %v2628
    %3625 = vmatpush.bf16.msra.mxu0 %v2624
    %3626 = vmatpush.bf16.msra.mxu0 %v2620
    %3627 = vmatpush.bf16.msra.mxu0 %v2616
    %3628 = vmatpush.bf16.msra.mxu0 %v2612
    %3629 = vmatpush.bf16.msra.mxu0 %v2608
    %3630 = vmatpush.bf16.msra.mxu0 %v2604
    %3631 = vmatmul.bf16.gmra.mxu0 %v619
    %v3632 = vpop.f32.mrf.mxu0
    %v3633 = vadd.f32 %v3620, %v3632
    %v3634 = vpop.f32.mrf.mxu0
    %3635 = vdwg.mxu0
    %3636 = vmatpush.bf16.msra.mxu0 %v2664
    %3637 = vmatpush.bf16.msra.mxu0 %v2660
    %3638 = vmatpush.bf16.msra.mxu0 %v2656
    %3639 = vmatpush.bf16.msra.mxu0 %v2652
    %3640 = vmatpush.bf16.msra.mxu0 %v2648
    %3641 = vmatpush.bf16.msra.mxu0 %v2644
    %3642 = vmatpush.bf16.msra.mxu0 %v2640
    %3643 = vmatpush.bf16.msra.mxu0 %v2636
    %3644 = vmatmul.bf16.gmra.mxu0 %v622
    %v3645 = vpop.f32.mrf.mxu0
    %v3646 = vadd.f32 %v3633, %v3645
    %v3647 = vpop.f32.mrf.mxu0
    %3648 = vdwg.mxu0
    %3649 = vmatpush.bf16.msra.mxu0 %v2696
    %3650 = vmatpush.bf16.msra.mxu0 %v2692
    %3651 = vmatpush.bf16.msra.mxu0 %v2688
    %3652 = vmatpush.bf16.msra.mxu0 %v2684
    %3653 = vmatpush.bf16.msra.mxu0 %v2680
    %3654 = vmatpush.bf16.msra.mxu0 %v2676
    %3655 = vmatpush.bf16.msra.mxu0 %v2672
    %3656 = vmatpush.bf16.msra.mxu0 %v2668
    %3657 = vmatmul.bf16.gmra.mxu0 %v623
    %v3658 = vpop.f32.mrf.mxu0
    %v3659 = vadd.f32 %v3646, %v3658
    %v3660 = vpop.f32.mrf.mxu0
    %3661 = vdwg.mxu0
    %3662 = vmatpush.bf16.msra.mxu0 %v2728
    %3663 = vmatpush.bf16.msra.mxu0 %v2724
    %3664 = vmatpush.bf16.msra.mxu0 %v2720
    %3665 = vmatpush.bf16.msra.mxu0 %v2716
    %3666 = vmatpush.bf16.msra.mxu0 %v2712
    %3667 = vmatpush.bf16.msra.mxu0 %v2708
    %3668 = vmatpush.bf16.msra.mxu0 %v2704
    %3669 = vmatpush.bf16.msra.mxu0 %v2700
    %3670 = vmatmul.bf16.gmra.mxu0 %v624
    %v3671 = vpop.f32.mrf.mxu0
    %v3672 = vadd.f32 %v3659, %v3671
    %v3673 = vpop.f32.mrf.mxu0
    %3674 = vdwg.mxu0
    %3675 = vmatpush.bf16.msra.mxu0 %v2760
    %3676 = vmatpush.bf16.msra.mxu0 %v2756
    %3677 = vmatpush.bf16.msra.mxu0 %v2752
    %3678 = vmatpush.bf16.msra.mxu0 %v2748
    %3679 = vmatpush.bf16.msra.mxu0 %v2744
    %3680 = vmatpush.bf16.msra.mxu0 %v2740
    %3681 = vmatpush.bf16.msra.mxu0 %v2736
    %3682 = vmatpush.bf16.msra.mxu0 %v2732
    %3683 = vmatmul.bf16.gmra.mxu0 %v625
    %v3684 = vpop.f32.mrf.mxu0
    %v3685 = vadd.f32 %v3672, %v3684
    %v3686 = vpop.f32.mrf.mxu0
    %3687 = vdwg.mxu0
    %3688 = vmatpush.bf16.msra.mxu0 %v2792
    %3689 = vmatpush.bf16.msra.mxu0 %v2788
    %3690 = vmatpush.bf16.msra.mxu0 %v2784
    %3691 = vmatpush.bf16.msra.mxu0 %v2780
    %3692 = vmatpush.bf16.msra.mxu0 %v2776
    %3693 = vmatpush.bf16.msra.mxu0 %v2772
    %3694 = vmatpush.bf16.msra.mxu0 %v2768
    %3695 = vmatpush.bf16.msra.mxu0 %v2764
    %3696 = vmatmul.bf16.gmra.mxu0 %v626
    %v3697 = vpop.f32.mrf.mxu0
    %v3698 = vadd.f32 %v3685, %v3697
    %v3699 = vpop.f32.mrf.mxu0
    %3700 = vdwg.mxu0
    %3701 = vmatpush.bf16.msra.mxu0 %v2824
    %3702 = vmatpush.bf16.msra.mxu0 %v2820
    %3703 = vmatpush.bf16.msra.mxu0 %v2816
    %3704 = vmatpush.bf16.msra.mxu0 %v2812
    %3705 = vmatpush.bf16.msra.mxu0 %v2808
    %3706 = vmatpush.bf16.msra.mxu0 %v2804
    %3707 = vmatpush.bf16.msra.mxu0 %v2800
    %3708 = vmatpush.bf16.msra.mxu0 %v2796
    %3709 = vmatmul.bf16.gmra.mxu0 %v627
    %v3710 = vpop.f32.mrf.mxu0
    %v3711 = vadd.f32 %v3698, %v3710
    %v3712 = vpop.f32.mrf.mxu0
    %3713 = vdwg.mxu0
    %3714 = vmatpush.bf16.msra.mxu0 %v2856
    %3715 = vmatpush.bf16.msra.mxu0 %v2852
    %3716 = vmatpush.bf16.msra.mxu0 %v2848
    %3717 = vmatpush.bf16.msra.mxu0 %v2844
    %3718 = vmatpush.bf16.msra.mxu0 %v2840
    %3719 = vmatpush.bf16.msra.mxu0 %v2836
    %3720 = vmatpush.bf16.msra.mxu0 %v2832
    %3721 = vmatpush.bf16.msra.mxu0 %v2828
    %3722 = vmatmul.bf16.gmra.mxu0 %v628
    %v3723 = vpop.f32.mrf.mxu0
    %v3724 = vadd.f32 %v3711, %v3723
    %v3725 = vpop.f32.mrf.mxu0
    %3726 = vdwg.mxu0
    %3727 = vmatpush.bf16.msra.mxu0 %v2888
    %3728 = vmatpush.bf16.msra.mxu0 %v2884
    %3729 = vmatpush.bf16.msra.mxu0 %v2880
    %3730 = vmatpush.bf16.msra.mxu0 %v2876
    %3731 = vmatpush.bf16.msra.mxu0 %v2872
    %3732 = vmatpush.bf16.msra.mxu0 %v2868
    %3733 = vmatpush.bf16.msra.mxu0 %v2864
    %3734 = vmatpush.bf16.msra.mxu0 %v2860
    %3735 = vmatmul.bf16.gmra.mxu0 %v629
    %v3736 = vpop.f32.mrf.mxu0
    %v3737 = vadd.f32 %v3724, %v3736
    %v3738 = vpop.f32.mrf.mxu0
    %3739 = vdwg.mxu0
    %3740 = vmatpush.bf16.msra.mxu0 %v2920
    %3741 = vmatpush.bf16.msra.mxu0 %v2916
    %3742 = vmatpush.bf16.msra.mxu0 %v2912
    %3743 = vmatpush.bf16.msra.mxu0 %v2908
    %3744 = vmatpush.bf16.msra.mxu0 %v2904
    %3745 = vmatpush.bf16.msra.mxu0 %v2900
    %3746 = vmatpush.bf16.msra.mxu0 %v2896
    %3747 = vmatpush.bf16.msra.mxu0 %v2892
    %3748 = vmatmul.bf16.gmra.mxu0 %v632
    %v3749 = vpop.f32.mrf.mxu0
    %v3750 = vadd.f32 %v3737, %v3749
    %v3751 = vpop.f32.mrf.mxu0
    %3752 = vdwg.mxu0
    %3753 = vmatpush.bf16.msra.mxu0 %v2952
    %3754 = vmatpush.bf16.msra.mxu0 %v2948
    %3755 = vmatpush.bf16.msra.mxu0 %v2944
    %3756 = vmatpush.bf16.msra.mxu0 %v2940
    %3757 = vmatpush.bf16.msra.mxu0 %v2936
    %3758 = vmatpush.bf16.msra.mxu0 %v2932
    %3759 = vmatpush.bf16.msra.mxu0 %v2928
    %3760 = vmatpush.bf16.msra.mxu0 %v2924
    %3761 = vmatmul.bf16.gmra.mxu0 %v633
    %v3762 = vpop.f32.mrf.mxu0
    %v3763 = vadd.f32 %v3750, %v3762
    %v3764 = vpop.f32.mrf.mxu0
    %3765 = vdwg.mxu0
    %3766 = vmatpush.bf16.msra.mxu0 %v2409
    %3767 = vmatpush.bf16.msra.mxu0 %v2405
    %3768 = vmatpush.bf16.msra.mxu0 %v2401
    %3769 = vmatpush.bf16.msra.mxu0 %v2397
    %3770 = vmatpush.bf16.msra.mxu0 %v2393
    %3771 = vmatpush.bf16.msra.mxu0 %v2389
    %3772 = vmatpush.bf16.msra.mxu0 %v2385
    %3773 = vmatpush.bf16.msra.mxu0 %v2381
    %3774 = vmatmul.bf16.gmra.mxu0 %v612
    %v3775 = vpop.f32.mrf.mxu0
    %v3776 = vadd.f32 %v603, %v3775
    %v3777 = vpop.f32.mrf.mxu0
    %3778 = vdwg.mxu0
    %3779 = vmatpush.bf16.msra.mxu0 %v2441
    %3780 = vmatpush.bf16.msra.mxu0 %v2437
    %3781 = vmatpush.bf16.msra.mxu0 %v2433
    %3782 = vmatpush.bf16.msra.mxu0 %v2429
    %3783 = vmatpush.bf16.msra.mxu0 %v2425
    %3784 = vmatpush.bf16.msra.mxu0 %v2421
    %3785 = vmatpush.bf16.msra.mxu0 %v2417
    %3786 = vmatpush.bf16.msra.mxu0 %v2413
    %3787 = vmatmul.bf16.gmra.mxu0 %v613
    %v3788 = vpop.f32.mrf.mxu0
    %v3789 = vadd.f32 %v3776, %v3788
    %v3790 = vpop.f32.mrf.mxu0
    %3791 = vdwg.mxu0
    %3792 = vmatpush.bf16.msra.mxu0 %v2473
    %3793 = vmatpush.bf16.msra.mxu0 %v2469
    %3794 = vmatpush.bf16.msra.mxu0 %v2465
    %3795 = vmatpush.bf16.msra.mxu0 %v2461
    %3796 = vmatpush.bf16.msra.mxu0 %v2457
    %3797 = vmatpush.bf16.msra.mxu0 %v2453
    %3798 = vmatpush.bf16.msra.mxu0 %v2449
    %3799 = vmatpush.bf16.msra.mxu0 %v2445
    %3800 = vmatmul.bf16.gmra.mxu0 %v614
    %v3801 = vpop.f32.mrf.mxu0
    %v3802 = vadd.f32 %v3789, %v3801
    %v3803 = vpop.f32.mrf.mxu0
    %3804 = vdwg.mxu0
    %3805 = vmatpush.bf16.msra.mxu0 %v2505
    %3806 = vmatpush.bf16.msra.mxu0 %v2501
    %3807 = vmatpush.bf16.msra.mxu0 %v2497
    %3808 = vmatpush.bf16.msra.mxu0 %v2493
    %3809 = vmatpush.bf16.msra.mxu0 %v2489
    %3810 = vmatpush.bf16.msra.mxu0 %v2485
    %3811 = vmatpush.bf16.msra.mxu0 %v2481
    %3812 = vmatpush.bf16.msra.mxu0 %v2477
    %3813 = vmatmul.bf16.gmra.mxu0 %v615
    %v3814 = vpop.f32.mrf.mxu0
    %v3815 = vadd.f32 %v3802, %v3814
    %v3816 = vpop.f32.mrf.mxu0
    %3817 = vdwg.mxu0
    %3818 = vmatpush.bf16.msra.mxu0 %v2537
    %3819 = vmatpush.bf16.msra.mxu0 %v2533
    %3820 = vmatpush.bf16.msra.mxu0 %v2529
    %3821 = vmatpush.bf16.msra.mxu0 %v2525
    %3822 = vmatpush.bf16.msra.mxu0 %v2521
    %3823 = vmatpush.bf16.msra.mxu0 %v2517
    %3824 = vmatpush.bf16.msra.mxu0 %v2513
    %3825 = vmatpush.bf16.msra.mxu0 %v2509
    %3826 = vmatmul.bf16.gmra.mxu0 %v616
    %v3827 = vpop.f32.mrf.mxu0
    %v3828 = vadd.f32 %v3815, %v3827
    %v3829 = vpop.f32.mrf.mxu0
    %3830 = vdwg.mxu0
    %3831 = vmatpush.bf16.msra.mxu0 %v2569
    %3832 = vmatpush.bf16.msra.mxu0 %v2565
    %3833 = vmatpush.bf16.msra.mxu0 %v2561
    %3834 = vmatpush.bf16.msra.mxu0 %v2557
    %3835 = vmatpush.bf16.msra.mxu0 %v2553
    %3836 = vmatpush.bf16.msra.mxu0 %v2549
    %3837 = vmatpush.bf16.msra.mxu0 %v2545
    %3838 = vmatpush.bf16.msra.mxu0 %v2541
    %3839 = vmatmul.bf16.gmra.mxu0 %v617
    %v3840 = vpop.f32.mrf.mxu0
    %v3841 = vadd.f32 %v3828, %v3840
    %v3842 = vpop.f32.mrf.mxu0
    %3843 = vdwg.mxu0
    %3844 = vmatpush.bf16.msra.mxu0 %v2601
    %3845 = vmatpush.bf16.msra.mxu0 %v2597
    %3846 = vmatpush.bf16.msra.mxu0 %v2593
    %3847 = vmatpush.bf16.msra.mxu0 %v2589
    %3848 = vmatpush.bf16.msra.mxu0 %v2585
    %3849 = vmatpush.bf16.msra.mxu0 %v2581
    %3850 = vmatpush.bf16.msra.mxu0 %v2577
    %3851 = vmatpush.bf16.msra.mxu0 %v2573
    %3852 = vmatmul.bf16.gmra.mxu0 %v618
    %v3853 = vpop.f32.mrf.mxu0
    %v3854 = vadd.f32 %v3841, %v3853
    %v3855 = vpop.f32.mrf.mxu0
    %3856 = vdwg.mxu0
    %3857 = vmatpush.bf16.msra.mxu0 %v2633
    %3858 = vmatpush.bf16.msra.mxu0 %v2629
    %3859 = vmatpush.bf16.msra.mxu0 %v2625
    %3860 = vmatpush.bf16.msra.mxu0 %v2621
    %3861 = vmatpush.bf16.msra.mxu0 %v2617
    %3862 = vmatpush.bf16.msra.mxu0 %v2613
    %3863 = vmatpush.bf16.msra.mxu0 %v2609
    %3864 = vmatpush.bf16.msra.mxu0 %v2605
    %3865 = vmatmul.bf16.gmra.mxu0 %v619
    %v3866 = vpop.f32.mrf.mxu0
    %v3867 = vadd.f32 %v3854, %v3866
    %v3868 = vpop.f32.mrf.mxu0
    %3869 = vdwg.mxu0
    %3870 = vmatpush.bf16.msra.mxu0 %v2665
    %3871 = vmatpush.bf16.msra.mxu0 %v2661
    %3872 = vmatpush.bf16.msra.mxu0 %v2657
    %3873 = vmatpush.bf16.msra.mxu0 %v2653
    %3874 = vmatpush.bf16.msra.mxu0 %v2649
    %3875 = vmatpush.bf16.msra.mxu0 %v2645
    %3876 = vmatpush.bf16.msra.mxu0 %v2641
    %3877 = vmatpush.bf16.msra.mxu0 %v2637
    %3878 = vmatmul.bf16.gmra.mxu0 %v622
    %v3879 = vpop.f32.mrf.mxu0
    %v3880 = vadd.f32 %v3867, %v3879
    %v3881 = vpop.f32.mrf.mxu0
    %3882 = vdwg.mxu0
    %3883 = vmatpush.bf16.msra.mxu0 %v2697
    %3884 = vmatpush.bf16.msra.mxu0 %v2693
    %3885 = vmatpush.bf16.msra.mxu0 %v2689
    %3886 = vmatpush.bf16.msra.mxu0 %v2685
    %3887 = vmatpush.bf16.msra.mxu0 %v2681
    %3888 = vmatpush.bf16.msra.mxu0 %v2677
    %3889 = vmatpush.bf16.msra.mxu0 %v2673
    %3890 = vmatpush.bf16.msra.mxu0 %v2669
    %3891 = vmatmul.bf16.gmra.mxu0 %v623
    %v3892 = vpop.f32.mrf.mxu0
    %v3893 = vadd.f32 %v3880, %v3892
    %v3894 = vpop.f32.mrf.mxu0
    %3895 = vdwg.mxu0
    %3896 = vmatpush.bf16.msra.mxu0 %v2729
    %3897 = vmatpush.bf16.msra.mxu0 %v2725
    %3898 = vmatpush.bf16.msra.mxu0 %v2721
    %3899 = vmatpush.bf16.msra.mxu0 %v2717
    %3900 = vmatpush.bf16.msra.mxu0 %v2713
    %3901 = vmatpush.bf16.msra.mxu0 %v2709
    %3902 = vmatpush.bf16.msra.mxu0 %v2705
    %3903 = vmatpush.bf16.msra.mxu0 %v2701
    %3904 = vmatmul.bf16.gmra.mxu0 %v624
    %v3905 = vpop.f32.mrf.mxu0
    %v3906 = vadd.f32 %v3893, %v3905
    %v3907 = vpop.f32.mrf.mxu0
    %3908 = vdwg.mxu0
    %3909 = vmatpush.bf16.msra.mxu0 %v2761
    %3910 = vmatpush.bf16.msra.mxu0 %v2757
    %3911 = vmatpush.bf16.msra.mxu0 %v2753
    %3912 = vmatpush.bf16.msra.mxu0 %v2749
    %3913 = vmatpush.bf16.msra.mxu0 %v2745
    %3914 = vmatpush.bf16.msra.mxu0 %v2741
    %3915 = vmatpush.bf16.msra.mxu0 %v2737
    %3916 = vmatpush.bf16.msra.mxu0 %v2733
    %3917 = vmatmul.bf16.gmra.mxu0 %v625
    %v3918 = vpop.f32.mrf.mxu0
    %v3919 = vadd.f32 %v3906, %v3918
    %v3920 = vpop.f32.mrf.mxu0
    %3921 = vdwg.mxu0
    %3922 = vmatpush.bf16.msra.mxu0 %v2793
    %3923 = vmatpush.bf16.msra.mxu0 %v2789
    %3924 = vmatpush.bf16.msra.mxu0 %v2785
    %3925 = vmatpush.bf16.msra.mxu0 %v2781
    %3926 = vmatpush.bf16.msra.mxu0 %v2777
    %3927 = vmatpush.bf16.msra.mxu0 %v2773
    %3928 = vmatpush.bf16.msra.mxu0 %v2769
    %3929 = vmatpush.bf16.msra.mxu0 %v2765
    %3930 = vmatmul.bf16.gmra.mxu0 %v626
    %v3931 = vpop.f32.mrf.mxu0
    %v3932 = vadd.f32 %v3919, %v3931
    %v3933 = vpop.f32.mrf.mxu0
    %3934 = vdwg.mxu0
    %3935 = vmatpush.bf16.msra.mxu0 %v2825
    %3936 = vmatpush.bf16.msra.mxu0 %v2821
    %3937 = vmatpush.bf16.msra.mxu0 %v2817
    %3938 = vmatpush.bf16.msra.mxu0 %v2813
    %3939 = vmatpush.bf16.msra.mxu0 %v2809
    %3940 = vmatpush.bf16.msra.mxu0 %v2805
    %3941 = vmatpush.bf16.msra.mxu0 %v2801
    %3942 = vmatpush.bf16.msra.mxu0 %v2797
    %3943 = vmatmul.bf16.gmra.mxu0 %v627
    %v3944 = vpop.f32.mrf.mxu0
    %v3945 = vadd.f32 %v3932, %v3944
    %v3946 = vpop.f32.mrf.mxu0
    %3947 = vdwg.mxu0
    %3948 = vmatpush.bf16.msra.mxu0 %v2857
    %3949 = vmatpush.bf16.msra.mxu0 %v2853
    %3950 = vmatpush.bf16.msra.mxu0 %v2849
    %3951 = vmatpush.bf16.msra.mxu0 %v2845
    %3952 = vmatpush.bf16.msra.mxu0 %v2841
    %3953 = vmatpush.bf16.msra.mxu0 %v2837
    %3954 = vmatpush.bf16.msra.mxu0 %v2833
    %3955 = vmatpush.bf16.msra.mxu0 %v2829
    %3956 = vmatmul.bf16.gmra.mxu0 %v628
    %v3957 = vpop.f32.mrf.mxu0
    %v3958 = vadd.f32 %v3945, %v3957
    %v3959 = vpop.f32.mrf.mxu0
    %3960 = vdwg.mxu0
    %3961 = vmatpush.bf16.msra.mxu0 %v2889
    %3962 = vmatpush.bf16.msra.mxu0 %v2885
    %3963 = vmatpush.bf16.msra.mxu0 %v2881
    %3964 = vmatpush.bf16.msra.mxu0 %v2877
    %3965 = vmatpush.bf16.msra.mxu0 %v2873
    %3966 = vmatpush.bf16.msra.mxu0 %v2869
    %3967 = vmatpush.bf16.msra.mxu0 %v2865
    %3968 = vmatpush.bf16.msra.mxu0 %v2861
    %3969 = vmatmul.bf16.gmra.mxu0 %v629
    %v3970 = vpop.f32.mrf.mxu0
    %v3971 = vadd.f32 %v3958, %v3970
    %v3972 = vpop.f32.mrf.mxu0
    %3973 = vdwg.mxu0
    %3974 = vmatpush.bf16.msra.mxu0 %v2921
    %3975 = vmatpush.bf16.msra.mxu0 %v2917
    %3976 = vmatpush.bf16.msra.mxu0 %v2913
    %3977 = vmatpush.bf16.msra.mxu0 %v2909
    %3978 = vmatpush.bf16.msra.mxu0 %v2905
    %3979 = vmatpush.bf16.msra.mxu0 %v2901
    %3980 = vmatpush.bf16.msra.mxu0 %v2897
    %3981 = vmatpush.bf16.msra.mxu0 %v2893
    %3982 = vmatmul.bf16.gmra.mxu0 %v632
    %v3983 = vpop.f32.mrf.mxu0
    %v3984 = vadd.f32 %v3971, %v3983
    %v3985 = vpop.f32.mrf.mxu0
    %3986 = vdwg.mxu0
    %3987 = vmatpush.bf16.msra.mxu0 %v2953
    %3988 = vmatpush.bf16.msra.mxu0 %v2949
    %3989 = vmatpush.bf16.msra.mxu0 %v2945
    %3990 = vmatpush.bf16.msra.mxu0 %v2941
    %3991 = vmatpush.bf16.msra.mxu0 %v2937
    %3992 = vmatpush.bf16.msra.mxu0 %v2933
    %3993 = vmatpush.bf16.msra.mxu0 %v2929
    %3994 = vmatpush.bf16.msra.mxu0 %v2925
    %3995 = vmatmul.bf16.gmra.mxu0 %v633
    %v3996 = vpop.f32.mrf.mxu0
    %v3997 = vadd.f32 %v3984, %v3996
    %v3998 = vpop.f32.mrf.mxu0
    %3999 = vdwg.mxu0
    %4000 = vmatpush.bf16.msra.mxu0 %v2410
    %4001 = vmatpush.bf16.msra.mxu0 %v2406
    %4002 = vmatpush.bf16.msra.mxu0 %v2402
    %4003 = vmatpush.bf16.msra.mxu0 %v2398
    %4004 = vmatpush.bf16.msra.mxu0 %v2394
    %4005 = vmatpush.bf16.msra.mxu0 %v2390
    %4006 = vmatpush.bf16.msra.mxu0 %v2386
    %4007 = vmatpush.bf16.msra.mxu0 %v2382
    %4008 = vmatmul.bf16.gmra.mxu0 %v612
    %v4009 = vpop.f32.mrf.mxu0
    %v4010 = vadd.f32 %v604, %v4009
    %v4011 = vpop.f32.mrf.mxu0
    %4012 = vdwg.mxu0
    %4013 = vmatpush.bf16.msra.mxu0 %v2442
    %4014 = vmatpush.bf16.msra.mxu0 %v2438
    %4015 = vmatpush.bf16.msra.mxu0 %v2434
    %4016 = vmatpush.bf16.msra.mxu0 %v2430
    %4017 = vmatpush.bf16.msra.mxu0 %v2426
    %4018 = vmatpush.bf16.msra.mxu0 %v2422
    %4019 = vmatpush.bf16.msra.mxu0 %v2418
    %4020 = vmatpush.bf16.msra.mxu0 %v2414
    %4021 = vmatmul.bf16.gmra.mxu0 %v613
    %v4022 = vpop.f32.mrf.mxu0
    %v4023 = vadd.f32 %v4010, %v4022
    %v4024 = vpop.f32.mrf.mxu0
    %4025 = vdwg.mxu0
    %4026 = vmatpush.bf16.msra.mxu0 %v2474
    %4027 = vmatpush.bf16.msra.mxu0 %v2470
    %4028 = vmatpush.bf16.msra.mxu0 %v2466
    %4029 = vmatpush.bf16.msra.mxu0 %v2462
    %4030 = vmatpush.bf16.msra.mxu0 %v2458
    %4031 = vmatpush.bf16.msra.mxu0 %v2454
    %4032 = vmatpush.bf16.msra.mxu0 %v2450
    %4033 = vmatpush.bf16.msra.mxu0 %v2446
    %4034 = vmatmul.bf16.gmra.mxu0 %v614
    %v4035 = vpop.f32.mrf.mxu0
    %v4036 = vadd.f32 %v4023, %v4035
    %v4037 = vpop.f32.mrf.mxu0
    %4038 = vdwg.mxu0
    %4039 = vmatpush.bf16.msra.mxu0 %v2506
    %4040 = vmatpush.bf16.msra.mxu0 %v2502
    %4041 = vmatpush.bf16.msra.mxu0 %v2498
    %4042 = vmatpush.bf16.msra.mxu0 %v2494
    %4043 = vmatpush.bf16.msra.mxu0 %v2490
    %4044 = vmatpush.bf16.msra.mxu0 %v2486
    %4045 = vmatpush.bf16.msra.mxu0 %v2482
    %4046 = vmatpush.bf16.msra.mxu0 %v2478
    %4047 = vmatmul.bf16.gmra.mxu0 %v615
    %v4048 = vpop.f32.mrf.mxu0
    %v4049 = vadd.f32 %v4036, %v4048
    %v4050 = vpop.f32.mrf.mxu0
    %4051 = vdwg.mxu0
    %4052 = vmatpush.bf16.msra.mxu0 %v2538
    %4053 = vmatpush.bf16.msra.mxu0 %v2534
    %4054 = vmatpush.bf16.msra.mxu0 %v2530
    %4055 = vmatpush.bf16.msra.mxu0 %v2526
    %4056 = vmatpush.bf16.msra.mxu0 %v2522
    %4057 = vmatpush.bf16.msra.mxu0 %v2518
    %4058 = vmatpush.bf16.msra.mxu0 %v2514
    %4059 = vmatpush.bf16.msra.mxu0 %v2510
    %4060 = vmatmul.bf16.gmra.mxu0 %v616
    %v4061 = vpop.f32.mrf.mxu0
    %v4062 = vadd.f32 %v4049, %v4061
    %v4063 = vpop.f32.mrf.mxu0
    %4064 = vdwg.mxu0
    %4065 = vmatpush.bf16.msra.mxu0 %v2570
    %4066 = vmatpush.bf16.msra.mxu0 %v2566
    %4067 = vmatpush.bf16.msra.mxu0 %v2562
    %4068 = vmatpush.bf16.msra.mxu0 %v2558
    %4069 = vmatpush.bf16.msra.mxu0 %v2554
    %4070 = vmatpush.bf16.msra.mxu0 %v2550
    %4071 = vmatpush.bf16.msra.mxu0 %v2546
    %4072 = vmatpush.bf16.msra.mxu0 %v2542
    %4073 = vmatmul.bf16.gmra.mxu0 %v617
    %v4074 = vpop.f32.mrf.mxu0
    %v4075 = vadd.f32 %v4062, %v4074
    %v4076 = vpop.f32.mrf.mxu0
    %4077 = vdwg.mxu0
    %4078 = vmatpush.bf16.msra.mxu0 %v2602
    %4079 = vmatpush.bf16.msra.mxu0 %v2598
    %4080 = vmatpush.bf16.msra.mxu0 %v2594
    %4081 = vmatpush.bf16.msra.mxu0 %v2590
    %4082 = vmatpush.bf16.msra.mxu0 %v2586
    %4083 = vmatpush.bf16.msra.mxu0 %v2582
    %4084 = vmatpush.bf16.msra.mxu0 %v2578
    %4085 = vmatpush.bf16.msra.mxu0 %v2574
    %4086 = vmatmul.bf16.gmra.mxu0 %v618
    %v4087 = vpop.f32.mrf.mxu0
    %v4088 = vadd.f32 %v4075, %v4087
    %v4089 = vpop.f32.mrf.mxu0
    %4090 = vdwg.mxu0
    %4091 = vmatpush.bf16.msra.mxu0 %v2634
    %4092 = vmatpush.bf16.msra.mxu0 %v2630
    %4093 = vmatpush.bf16.msra.mxu0 %v2626
    %4094 = vmatpush.bf16.msra.mxu0 %v2622
    %4095 = vmatpush.bf16.msra.mxu0 %v2618
    %4096 = vmatpush.bf16.msra.mxu0 %v2614
    %4097 = vmatpush.bf16.msra.mxu0 %v2610
    %4098 = vmatpush.bf16.msra.mxu0 %v2606
    %4099 = vmatmul.bf16.gmra.mxu0 %v619
    %v4100 = vpop.f32.mrf.mxu0
    %v4101 = vadd.f32 %v4088, %v4100
    %v4102 = vpop.f32.mrf.mxu0
    %4103 = vdwg.mxu0
    %4104 = vmatpush.bf16.msra.mxu0 %v2666
    %4105 = vmatpush.bf16.msra.mxu0 %v2662
    %4106 = vmatpush.bf16.msra.mxu0 %v2658
    %4107 = vmatpush.bf16.msra.mxu0 %v2654
    %4108 = vmatpush.bf16.msra.mxu0 %v2650
    %4109 = vmatpush.bf16.msra.mxu0 %v2646
    %4110 = vmatpush.bf16.msra.mxu0 %v2642
    %4111 = vmatpush.bf16.msra.mxu0 %v2638
    %4112 = vmatmul.bf16.gmra.mxu0 %v622
    %v4113 = vpop.f32.mrf.mxu0
    %v4114 = vadd.f32 %v4101, %v4113
    %v4115 = vpop.f32.mrf.mxu0
    %4116 = vdwg.mxu0
    %4117 = vmatpush.bf16.msra.mxu0 %v2698
    %4118 = vmatpush.bf16.msra.mxu0 %v2694
    %4119 = vmatpush.bf16.msra.mxu0 %v2690
    %4120 = vmatpush.bf16.msra.mxu0 %v2686
    %4121 = vmatpush.bf16.msra.mxu0 %v2682
    %4122 = vmatpush.bf16.msra.mxu0 %v2678
    %4123 = vmatpush.bf16.msra.mxu0 %v2674
    %4124 = vmatpush.bf16.msra.mxu0 %v2670
    %4125 = vmatmul.bf16.gmra.mxu0 %v623
    %v4126 = vpop.f32.mrf.mxu0
    %v4127 = vadd.f32 %v4114, %v4126
    %v4128 = vpop.f32.mrf.mxu0
    %4129 = vdwg.mxu0
    %4130 = vmatpush.bf16.msra.mxu0 %v2730
    %4131 = vmatpush.bf16.msra.mxu0 %v2726
    %4132 = vmatpush.bf16.msra.mxu0 %v2722
    %4133 = vmatpush.bf16.msra.mxu0 %v2718
    %4134 = vmatpush.bf16.msra.mxu0 %v2714
    %4135 = vmatpush.bf16.msra.mxu0 %v2710
    %4136 = vmatpush.bf16.msra.mxu0 %v2706
    %4137 = vmatpush.bf16.msra.mxu0 %v2702
    %4138 = vmatmul.bf16.gmra.mxu0 %v624
    %v4139 = vpop.f32.mrf.mxu0
    %v4140 = vadd.f32 %v4127, %v4139
    %v4141 = vpop.f32.mrf.mxu0
    %4142 = vdwg.mxu0
    %4143 = vmatpush.bf16.msra.mxu0 %v2762
    %4144 = vmatpush.bf16.msra.mxu0 %v2758
    %4145 = vmatpush.bf16.msra.mxu0 %v2754
    %4146 = vmatpush.bf16.msra.mxu0 %v2750
    %4147 = vmatpush.bf16.msra.mxu0 %v2746
    %4148 = vmatpush.bf16.msra.mxu0 %v2742
    %4149 = vmatpush.bf16.msra.mxu0 %v2738
    %4150 = vmatpush.bf16.msra.mxu0 %v2734
    %4151 = vmatmul.bf16.gmra.mxu0 %v625
    %v4152 = vpop.f32.mrf.mxu0
    %v4153 = vadd.f32 %v4140, %v4152
    %v4154 = vpop.f32.mrf.mxu0
    %4155 = vdwg.mxu0
    %4156 = vmatpush.bf16.msra.mxu0 %v2794
    %4157 = vmatpush.bf16.msra.mxu0 %v2790
    %4158 = vmatpush.bf16.msra.mxu0 %v2786
    %4159 = vmatpush.bf16.msra.mxu0 %v2782
    %4160 = vmatpush.bf16.msra.mxu0 %v2778
    %4161 = vmatpush.bf16.msra.mxu0 %v2774
    %4162 = vmatpush.bf16.msra.mxu0 %v2770
    %4163 = vmatpush.bf16.msra.mxu0 %v2766
    %4164 = vmatmul.bf16.gmra.mxu0 %v626
    %v4165 = vpop.f32.mrf.mxu0
    %v4166 = vadd.f32 %v4153, %v4165
    %v4167 = vpop.f32.mrf.mxu0
    %4168 = vdwg.mxu0
    %4169 = vmatpush.bf16.msra.mxu0 %v2826
    %4170 = vmatpush.bf16.msra.mxu0 %v2822
    %4171 = vmatpush.bf16.msra.mxu0 %v2818
    %4172 = vmatpush.bf16.msra.mxu0 %v2814
    %4173 = vmatpush.bf16.msra.mxu0 %v2810
    %4174 = vmatpush.bf16.msra.mxu0 %v2806
    %4175 = vmatpush.bf16.msra.mxu0 %v2802
    %4176 = vmatpush.bf16.msra.mxu0 %v2798
    %4177 = vmatmul.bf16.gmra.mxu0 %v627
    %v4178 = vpop.f32.mrf.mxu0
    %v4179 = vadd.f32 %v4166, %v4178
    %v4180 = vpop.f32.mrf.mxu0
    %4181 = vdwg.mxu0
    %4182 = vmatpush.bf16.msra.mxu0 %v2858
    %4183 = vmatpush.bf16.msra.mxu0 %v2854
    %4184 = vmatpush.bf16.msra.mxu0 %v2850
    %4185 = vmatpush.bf16.msra.mxu0 %v2846
    %4186 = vmatpush.bf16.msra.mxu0 %v2842
    %4187 = vmatpush.bf16.msra.mxu0 %v2838
    %4188 = vmatpush.bf16.msra.mxu0 %v2834
    %4189 = vmatpush.bf16.msra.mxu0 %v2830
    %4190 = vmatmul.bf16.gmra.mxu0 %v628
    %v4191 = vpop.f32.mrf.mxu0
    %v4192 = vadd.f32 %v4179, %v4191
    %v4193 = vpop.f32.mrf.mxu0
    %4194 = vdwg.mxu0
    %4195 = vmatpush.bf16.msra.mxu0 %v2890
    %4196 = vmatpush.bf16.msra.mxu0 %v2886
    %4197 = vmatpush.bf16.msra.mxu0 %v2882
    %4198 = vmatpush.bf16.msra.mxu0 %v2878
    %4199 = vmatpush.bf16.msra.mxu0 %v2874
    %4200 = vmatpush.bf16.msra.mxu0 %v2870
    %4201 = vmatpush.bf16.msra.mxu0 %v2866
    %4202 = vmatpush.bf16.msra.mxu0 %v2862
    %4203 = vmatmul.bf16.gmra.mxu0 %v629
    %v4204 = vpop.f32.mrf.mxu0
    %v4205 = vadd.f32 %v4192, %v4204
    %v4206 = vpop.f32.mrf.mxu0
    %4207 = vdwg.mxu0
    %4208 = vmatpush.bf16.msra.mxu0 %v2922
    %4209 = vmatpush.bf16.msra.mxu0 %v2918
    %4210 = vmatpush.bf16.msra.mxu0 %v2914
    %4211 = vmatpush.bf16.msra.mxu0 %v2910
    %4212 = vmatpush.bf16.msra.mxu0 %v2906
    %4213 = vmatpush.bf16.msra.mxu0 %v2902
    %4214 = vmatpush.bf16.msra.mxu0 %v2898
    %4215 = vmatpush.bf16.msra.mxu0 %v2894
    %4216 = vmatmul.bf16.gmra.mxu0 %v632
    %v4217 = vpop.f32.mrf.mxu0
    %v4218 = vadd.f32 %v4205, %v4217
    %v4219 = vpop.f32.mrf.mxu0
    %4220 = vdwg.mxu0
    %4221 = vmatpush.bf16.msra.mxu0 %v2954
    %4222 = vmatpush.bf16.msra.mxu0 %v2950
    %4223 = vmatpush.bf16.msra.mxu0 %v2946
    %4224 = vmatpush.bf16.msra.mxu0 %v2942
    %4225 = vmatpush.bf16.msra.mxu0 %v2938
    %4226 = vmatpush.bf16.msra.mxu0 %v2934
    %4227 = vmatpush.bf16.msra.mxu0 %v2930
    %4228 = vmatpush.bf16.msra.mxu0 %v2926
    %4229 = vmatmul.bf16.gmra.mxu0 %v633
    %v4230 = vpop.f32.mrf.mxu0
    %v4231 = vadd.f32 %v4218, %v4230
    %v4232 = vpop.f32.mrf.mxu0
    %4233 = vdwg.mxu0
    %4234 = vmatpush.bf16.msra.mxu0 %v2411
    %4235 = vmatpush.bf16.msra.mxu0 %v2407
    %4236 = vmatpush.bf16.msra.mxu0 %v2403
    %4237 = vmatpush.bf16.msra.mxu0 %v2399
    %4238 = vmatpush.bf16.msra.mxu0 %v2395
    %4239 = vmatpush.bf16.msra.mxu0 %v2391
    %4240 = vmatpush.bf16.msra.mxu0 %v2387
    %4241 = vmatpush.bf16.msra.mxu0 %v2383
    %4242 = vmatmul.bf16.gmra.mxu0 %v612
    %v4243 = vpop.f32.mrf.mxu0
    %v4244 = vadd.f32 %v605, %v4243
    %v4245 = vpop.f32.mrf.mxu0
    %4246 = vdwg.mxu0
    %4247 = vmatpush.bf16.msra.mxu0 %v2443
    %4248 = vmatpush.bf16.msra.mxu0 %v2439
    %4249 = vmatpush.bf16.msra.mxu0 %v2435
    %4250 = vmatpush.bf16.msra.mxu0 %v2431
    %4251 = vmatpush.bf16.msra.mxu0 %v2427
    %4252 = vmatpush.bf16.msra.mxu0 %v2423
    %4253 = vmatpush.bf16.msra.mxu0 %v2419
    %4254 = vmatpush.bf16.msra.mxu0 %v2415
    %4255 = vmatmul.bf16.gmra.mxu0 %v613
    %v4256 = vpop.f32.mrf.mxu0
    %v4257 = vadd.f32 %v4244, %v4256
    %v4258 = vpop.f32.mrf.mxu0
    %4259 = vdwg.mxu0
    %4260 = vmatpush.bf16.msra.mxu0 %v2475
    %4261 = vmatpush.bf16.msra.mxu0 %v2471
    %4262 = vmatpush.bf16.msra.mxu0 %v2467
    %4263 = vmatpush.bf16.msra.mxu0 %v2463
    %4264 = vmatpush.bf16.msra.mxu0 %v2459
    %4265 = vmatpush.bf16.msra.mxu0 %v2455
    %4266 = vmatpush.bf16.msra.mxu0 %v2451
    %4267 = vmatpush.bf16.msra.mxu0 %v2447
    %4268 = vmatmul.bf16.gmra.mxu0 %v614
    %v4269 = vpop.f32.mrf.mxu0
    %v4270 = vadd.f32 %v4257, %v4269
    %v4271 = vpop.f32.mrf.mxu0
    %4272 = vdwg.mxu0
    %4273 = vmatpush.bf16.msra.mxu0 %v2507
    %4274 = vmatpush.bf16.msra.mxu0 %v2503
    %4275 = vmatpush.bf16.msra.mxu0 %v2499
    %4276 = vmatpush.bf16.msra.mxu0 %v2495
    %4277 = vmatpush.bf16.msra.mxu0 %v2491
    %4278 = vmatpush.bf16.msra.mxu0 %v2487
    %4279 = vmatpush.bf16.msra.mxu0 %v2483
    %4280 = vmatpush.bf16.msra.mxu0 %v2479
    %4281 = vmatmul.bf16.gmra.mxu0 %v615
    %v4282 = vpop.f32.mrf.mxu0
    %v4283 = vadd.f32 %v4270, %v4282
    %v4284 = vpop.f32.mrf.mxu0
    %4285 = vdwg.mxu0
    %4286 = vmatpush.bf16.msra.mxu0 %v2539
    %4287 = vmatpush.bf16.msra.mxu0 %v2535
    %4288 = vmatpush.bf16.msra.mxu0 %v2531
    %4289 = vmatpush.bf16.msra.mxu0 %v2527
    %4290 = vmatpush.bf16.msra.mxu0 %v2523
    %4291 = vmatpush.bf16.msra.mxu0 %v2519
    %4292 = vmatpush.bf16.msra.mxu0 %v2515
    %4293 = vmatpush.bf16.msra.mxu0 %v2511
    %4294 = vmatmul.bf16.gmra.mxu0 %v616
    %v4295 = vpop.f32.mrf.mxu0
    %v4296 = vadd.f32 %v4283, %v4295
    %v4297 = vpop.f32.mrf.mxu0
    %4298 = vdwg.mxu0
    %4299 = vmatpush.bf16.msra.mxu0 %v2571
    %4300 = vmatpush.bf16.msra.mxu0 %v2567
    %4301 = vmatpush.bf16.msra.mxu0 %v2563
    %4302 = vmatpush.bf16.msra.mxu0 %v2559
    %4303 = vmatpush.bf16.msra.mxu0 %v2555
    %4304 = vmatpush.bf16.msra.mxu0 %v2551
    %4305 = vmatpush.bf16.msra.mxu0 %v2547
    %4306 = vmatpush.bf16.msra.mxu0 %v2543
    %4307 = vmatmul.bf16.gmra.mxu0 %v617
    %v4308 = vpop.f32.mrf.mxu0
    %v4309 = vadd.f32 %v4296, %v4308
    %v4310 = vpop.f32.mrf.mxu0
    %4311 = vdwg.mxu0
    %4312 = vmatpush.bf16.msra.mxu0 %v2603
    %4313 = vmatpush.bf16.msra.mxu0 %v2599
    %4314 = vmatpush.bf16.msra.mxu0 %v2595
    %4315 = vmatpush.bf16.msra.mxu0 %v2591
    %4316 = vmatpush.bf16.msra.mxu0 %v2587
    %4317 = vmatpush.bf16.msra.mxu0 %v2583
    %4318 = vmatpush.bf16.msra.mxu0 %v2579
    %4319 = vmatpush.bf16.msra.mxu0 %v2575
    %4320 = vmatmul.bf16.gmra.mxu0 %v618
    %v4321 = vpop.f32.mrf.mxu0
    %v4322 = vadd.f32 %v4309, %v4321
    %v4323 = vpop.f32.mrf.mxu0
    %4324 = vdwg.mxu0
    %4325 = vmatpush.bf16.msra.mxu0 %v2635
    %4326 = vmatpush.bf16.msra.mxu0 %v2631
    %4327 = vmatpush.bf16.msra.mxu0 %v2627
    %4328 = vmatpush.bf16.msra.mxu0 %v2623
    %4329 = vmatpush.bf16.msra.mxu0 %v2619
    %4330 = vmatpush.bf16.msra.mxu0 %v2615
    %4331 = vmatpush.bf16.msra.mxu0 %v2611
    %4332 = vmatpush.bf16.msra.mxu0 %v2607
    %4333 = vmatmul.bf16.gmra.mxu0 %v619
    %v4334 = vpop.f32.mrf.mxu0
    %v4335 = vadd.f32 %v4322, %v4334
    %v4336 = vpop.f32.mrf.mxu0
    %4337 = vdwg.mxu0
    %4338 = vmatpush.bf16.msra.mxu0 %v2667
    %4339 = vmatpush.bf16.msra.mxu0 %v2663
    %4340 = vmatpush.bf16.msra.mxu0 %v2659
    %4341 = vmatpush.bf16.msra.mxu0 %v2655
    %4342 = vmatpush.bf16.msra.mxu0 %v2651
    %4343 = vmatpush.bf16.msra.mxu0 %v2647
    %4344 = vmatpush.bf16.msra.mxu0 %v2643
    %4345 = vmatpush.bf16.msra.mxu0 %v2639
    %4346 = vmatmul.bf16.gmra.mxu0 %v622
    %v4347 = vpop.f32.mrf.mxu0
    %v4348 = vadd.f32 %v4335, %v4347
    %v4349 = vpop.f32.mrf.mxu0
    %4350 = vdwg.mxu0
    %4351 = vmatpush.bf16.msra.mxu0 %v2699
    %4352 = vmatpush.bf16.msra.mxu0 %v2695
    %4353 = vmatpush.bf16.msra.mxu0 %v2691
    %4354 = vmatpush.bf16.msra.mxu0 %v2687
    %4355 = vmatpush.bf16.msra.mxu0 %v2683
    %4356 = vmatpush.bf16.msra.mxu0 %v2679
    %4357 = vmatpush.bf16.msra.mxu0 %v2675
    %4358 = vmatpush.bf16.msra.mxu0 %v2671
    %4359 = vmatmul.bf16.gmra.mxu0 %v623
    %v4360 = vpop.f32.mrf.mxu0
    %v4361 = vadd.f32 %v4348, %v4360
    %v4362 = vpop.f32.mrf.mxu0
    %4363 = vdwg.mxu0
    %4364 = vmatpush.bf16.msra.mxu0 %v2731
    %4365 = vmatpush.bf16.msra.mxu0 %v2727
    %4366 = vmatpush.bf16.msra.mxu0 %v2723
    %4367 = vmatpush.bf16.msra.mxu0 %v2719
    %4368 = vmatpush.bf16.msra.mxu0 %v2715
    %4369 = vmatpush.bf16.msra.mxu0 %v2711
    %4370 = vmatpush.bf16.msra.mxu0 %v2707
    %4371 = vmatpush.bf16.msra.mxu0 %v2703
    %4372 = vmatmul.bf16.gmra.mxu0 %v624
    %v4373 = vpop.f32.mrf.mxu0
    %v4374 = vadd.f32 %v4361, %v4373
    %v4375 = vpop.f32.mrf.mxu0
    %4376 = vdwg.mxu0
    %4377 = vmatpush.bf16.msra.mxu0 %v2763
    %4378 = vmatpush.bf16.msra.mxu0 %v2759
    %4379 = vmatpush.bf16.msra.mxu0 %v2755
    %4380 = vmatpush.bf16.msra.mxu0 %v2751
    %4381 = vmatpush.bf16.msra.mxu0 %v2747
    %4382 = vmatpush.bf16.msra.mxu0 %v2743
    %4383 = vmatpush.bf16.msra.mxu0 %v2739
    %4384 = vmatpush.bf16.msra.mxu0 %v2735
    %4385 = vmatmul.bf16.gmra.mxu0 %v625
    %v4386 = vpop.f32.mrf.mxu0
    %v4387 = vadd.f32 %v4374, %v4386
    %v4388 = vpop.f32.mrf.mxu0
    %4389 = vdwg.mxu0
    %4390 = vmatpush.bf16.msra.mxu0 %v2795
    %4391 = vmatpush.bf16.msra.mxu0 %v2791
    %4392 = vmatpush.bf16.msra.mxu0 %v2787
    %4393 = vmatpush.bf16.msra.mxu0 %v2783
    %4394 = vmatpush.bf16.msra.mxu0 %v2779
    %4395 = vmatpush.bf16.msra.mxu0 %v2775
    %4396 = vmatpush.bf16.msra.mxu0 %v2771
    %4397 = vmatpush.bf16.msra.mxu0 %v2767
    %4398 = vmatmul.bf16.gmra.mxu0 %v626
    %v4399 = vpop.f32.mrf.mxu0
    %v4400 = vadd.f32 %v4387, %v4399
    %v4401 = vpop.f32.mrf.mxu0
    %4402 = vdwg.mxu0
    %4403 = vmatpush.bf16.msra.mxu0 %v2827
    %4404 = vmatpush.bf16.msra.mxu0 %v2823
    %4405 = vmatpush.bf16.msra.mxu0 %v2819
    %4406 = vmatpush.bf16.msra.mxu0 %v2815
    %4407 = vmatpush.bf16.msra.mxu0 %v2811
    %4408 = vmatpush.bf16.msra.mxu0 %v2807
    %4409 = vmatpush.bf16.msra.mxu0 %v2803
    %4410 = vmatpush.bf16.msra.mxu0 %v2799
    %4411 = vmatmul.bf16.gmra.mxu0 %v627
    %v4412 = vpop.f32.mrf.mxu0
    %v4413 = vadd.f32 %v4400, %v4412
    %v4414 = vpop.f32.mrf.mxu0
    %4415 = vdwg.mxu0
    %4416 = vmatpush.bf16.msra.mxu0 %v2859
    %4417 = vmatpush.bf16.msra.mxu0 %v2855
    %4418 = vmatpush.bf16.msra.mxu0 %v2851
    %4419 = vmatpush.bf16.msra.mxu0 %v2847
    %4420 = vmatpush.bf16.msra.mxu0 %v2843
    %4421 = vmatpush.bf16.msra.mxu0 %v2839
    %4422 = vmatpush.bf16.msra.mxu0 %v2835
    %4423 = vmatpush.bf16.msra.mxu0 %v2831
    %4424 = vmatmul.bf16.gmra.mxu0 %v628
    %v4425 = vpop.f32.mrf.mxu0
    %v4426 = vadd.f32 %v4413, %v4425
    %v4427 = vpop.f32.mrf.mxu0
    %4428 = vdwg.mxu0
    %4429 = vmatpush.bf16.msra.mxu0 %v2891
    %4430 = vmatpush.bf16.msra.mxu0 %v2887
    %4431 = vmatpush.bf16.msra.mxu0 %v2883
    %4432 = vmatpush.bf16.msra.mxu0 %v2879
    %4433 = vmatpush.bf16.msra.mxu0 %v2875
    %4434 = vmatpush.bf16.msra.mxu0 %v2871
    %4435 = vmatpush.bf16.msra.mxu0 %v2867
    %4436 = vmatpush.bf16.msra.mxu0 %v2863
    %4437 = vmatmul.bf16.gmra.mxu0 %v629
    %v4438 = vpop.f32.mrf.mxu0
    %v4439 = vadd.f32 %v4426, %v4438
    %v4440 = vpop.f32.mrf.mxu0
    %4441 = vdwg.mxu0
    %4442 = vmatpush.bf16.msra.mxu0 %v2923
    %4443 = vmatpush.bf16.msra.mxu0 %v2919
    %4444 = vmatpush.bf16.msra.mxu0 %v2915
    %4445 = vmatpush.bf16.msra.mxu0 %v2911
    %4446 = vmatpush.bf16.msra.mxu0 %v2907
    %4447 = vmatpush.bf16.msra.mxu0 %v2903
    %4448 = vmatpush.bf16.msra.mxu0 %v2899
    %4449 = vmatpush.bf16.msra.mxu0 %v2895
    %4450 = vmatmul.bf16.gmra.mxu0 %v632
    %v4451 = vpop.f32.mrf.mxu0
    %v4452 = vadd.f32 %v4439, %v4451
    %v4453 = vpop.f32.mrf.mxu0
    %4454 = vdwg.mxu0
    %4455 = vmatpush.bf16.msra.mxu0 %v2955
    %4456 = vmatpush.bf16.msra.mxu0 %v2951
    %4457 = vmatpush.bf16.msra.mxu0 %v2947
    %4458 = vmatpush.bf16.msra.mxu0 %v2943
    %4459 = vmatpush.bf16.msra.mxu0 %v2939
    %4460 = vmatpush.bf16.msra.mxu0 %v2935
    %4461 = vmatpush.bf16.msra.mxu0 %v2931
    %4462 = vmatpush.bf16.msra.mxu0 %v2927
    %4463 = vmatmul.bf16.gmra.mxu0 %v633
    %v4464 = vpop.f32.mrf.mxu0
    %v4465 = vadd.f32 %v4452, %v4464
    %v4466 = vpop.f32.mrf.mxu0
    %4467 = vdwg.mxu0
    %v4468 = vmax.f32 %v3763, 0.0
    %v4469 = vmax.f32 %v3997, 0.0
    %v4470 = vmax.f32 %v4231, 0.0
    %v4471 = vmax.f32 %v4465, 0.0
    %v4472 = vld [vmem:[%s3] sm:$0xff]
    %v4473 = vld [vmem:[%s3 + $0x8] sm:$0xff]
    %v4474 = vld [vmem:[%s3 + $0x10] sm:$0xff]
    %v4475 = vld [vmem:[%s3 + $0x18] sm:$0xff]
    %v4476 = vld [vmem:[%s3 + $0x20] sm:$0xff]
    %v4477 = vld [vmem:[%s3 + $0x28] sm:$0xff]
    %v4478 = vld [vmem:[%s3 + $0x30] sm:$0xff]
    %v4479 = vld [vmem:[%s3 + $0x38] sm:$0xff]
    %v4480 = vld [vmem:[%s3 + $0x40] sm:$0xff]
    %v4481 = vld [vmem:[%s3 + $0x48] sm:$0xff]
    %v4482 = vld [vmem:[%s3 + $0x50] sm:$0xff]
    %v4483 = vld [vmem:[%s3 + $0x58] sm:$0xff]
    %v4484 = vld [vmem:[%s3 + $0x60] sm:$0xff]
    %v4485 = vld [vmem:[%s3 + $0x68] sm:$0xff]
    %v4486 = vld [vmem:[%s3 + $0x70] sm:$0xff]
    %v4487 = vld [vmem:[%s3 + $0x78] sm:$0xff]
    %v4488 = vld [vmem:[%s3 + $0x80] sm:$0xff]
    %v4489 = vld [vmem:[%s3 + $0x88] sm:$0xff]
    %v4490 = vld [vmem:[%s3 + $0x90] sm:$0xff]
    %v4491 = vld [vmem:[%s3 + $0x98] sm:$0xff]
    %v4492 = vld [vmem:[%s3 + $0xa0] sm:$0xff]
    %v4493 = vld [vmem:[%s3 + $0xa8] sm:$0xff]
    %v4494 = vld [vmem:[%s3 + $0xb0] sm:$0xff]
    %v4495 = vld [vmem:[%s3 + $0xb8] sm:$0xff]
    %v4496 = vld [vmem:[%s3 + $0xc0] sm:$0xff]
    %v4497 = vld [vmem:[%s3 + $0xc8] sm:$0xff]
    %v4498 = vld [vmem:[%s3 + $0xd0] sm:$0xff]
    %v4499 = vld [vmem:[%s3 + $0xd8] sm:$0xff]
    %v4500 = vld [vmem:[%s3 + $0xe0] sm:$0xff]
    %v4501 = vld [vmem:[%s3 + $0xe8] sm:$0xff]
    %v4502 = vld [vmem:[%s3 + $0xf0] sm:$0xff]
    %v4503 = vld [vmem:[%s3 + $0xf8] sm:$0xff]
    %v4504 = vld [vmem:[%s3 + $0x100] sm:$0xff]
    %v4505 = vld [vmem:[%s3 + $0x108] sm:$0xff]
    %v4506 = vld [vmem:[%s3 + $0x110] sm:$0xff]
    %v4507 = vld [vmem:[%s3 + $0x118] sm:$0xff]
    %v4508 = vld [vmem:[%s3 + $0x120] sm:$0xff]
    %v4509 = vld [vmem:[%s3 + $0x128] sm:$0xff]
    %v4510 = vld [vmem:[%s3 + $0x130] sm:$0xff]
    %v4511 = vld [vmem:[%s3 + $0x138] sm:$0xff]
    %v4512 = vld [vmem:[%s3 + $0x140] sm:$0xff]
    %v4513 = vld [vmem:[%s3 + $0x148] sm:$0xff]
    %v4514 = vld [vmem:[%s3 + $0x150] sm:$0xff]
    %v4515 = vld [vmem:[%s3 + $0x158] sm:$0xff]
    %v4516 = vld [vmem:[%s3 + $0x160] sm:$0xff]
    %v4517 = vld [vmem:[%s3 + $0x168] sm:$0xff]
    %v4518 = vld [vmem:[%s3 + $0x170] sm:$0xff]
    %v4519 = vld [vmem:[%s3 + $0x178] sm:$0xff]
    %v4520 = vld [vmem:[%s3 + $0x180] sm:$0xff]
    %v4521 = vld [vmem:[%s3 + $0x188] sm:$0xff]
    %v4522 = vld [vmem:[%s3 + $0x190] sm:$0xff]
    %v4523 = vld [vmem:[%s3 + $0x198] sm:$0xff]
    %v4524 = vld [vmem:[%s3 + $0x1a0] sm:$0xff]
    %v4525 = vld [vmem:[%s3 + $0x1a8] sm:$0xff]
    %v4526 = vld [vmem:[%s3 + $0x1b0] sm:$0xff]
    %v4527 = vld [vmem:[%s3 + $0x1b8] sm:$0xff]
    %v4528 = vld [vmem:[%s3 + $0x1c0] sm:$0xff]
    %v4529 = vld [vmem:[%s3 + $0x1c8] sm:$0xff]
    %v4530 = vld [vmem:[%s3 + $0x1d0] sm:$0xff]
    %v4531 = vld [vmem:[%s3 + $0x1d8] sm:$0xff]
    %v4532 = vld [vmem:[%s3 + $0x1e0] sm:$0xff]
    %v4533 = vld [vmem:[%s3 + $0x1e8] sm:$0xff]
    %v4534 = vld [vmem:[%s3 + $0x1f0] sm:$0xff]
    %v4535 = vld [vmem:[%s3 + $0x1f8] sm:$0xff]
    %v4536 = vld [vmem:[%s4] sm:$0x1]
    %v4538 = vperm.slane %v4536, 0
    %4540 = vmatpush.msra.mxu0 %v4487
    %4541 = vmatpush.msra.mxu0 %v4486
    %4542 = vmatpush.msra.mxu0 %v4485
    %4543 = vmatpush.msra.mxu0 %v4484
    %4544 = vmatpush.msra.mxu0 %v4483
    %4545 = vmatpush.msra.mxu0 %v4482
    %4546 = vmatpush.msra.mxu0 %v4481
    %4547 = vmatpush.msra.mxu0 %v4480
    %4548 = vmatpush.msra.mxu0 %v4479
    %4549 = vmatpush.msra.mxu0 %v4478
    %4550 = vmatpush.msra.mxu0 %v4477
    %4551 = vmatpush.msra.mxu0 %v4476
    %4552 = vmatpush.msra.mxu0 %v4475
    %4553 = vmatpush.msra.mxu0 %v4474
    %4554 = vmatpush.msra.mxu0 %v4473
    %4555 = vmatpush.msra.mxu0 %v4472
    %4556 = vmatmul.f32.gmra.mxu0 %v4468
    %v4557 = vpop.f32.mrf.mxu0
    %v4558 = vadd.f32 %v4538, %v4557
    %4559 = vdwg.mxu0
    %4560 = vmatpush.msra.mxu0 %v4503
    %4561 = vmatpush.msra.mxu0 %v4502
    %4562 = vmatpush.msra.mxu0 %v4501
    %4563 = vmatpush.msra.mxu0 %v4500
    %4564 = vmatpush.msra.mxu0 %v4499
    %4565 = vmatpush.msra.mxu0 %v4498
    %4566 = vmatpush.msra.mxu0 %v4497
    %4567 = vmatpush.msra.mxu0 %v4496
    %4568 = vmatpush.msra.mxu0 %v4495
    %4569 = vmatpush.msra.mxu0 %v4494
    %4570 = vmatpush.msra.mxu0 %v4493
    %4571 = vmatpush.msra.mxu0 %v4492
    %4572 = vmatpush.msra.mxu0 %v4491
    %4573 = vmatpush.msra.mxu0 %v4490
    %4574 = vmatpush.msra.mxu0 %v4489
    %4575 = vmatpush.msra.mxu0 %v4488
    %4576 = vmatmul.f32.gmra.mxu0 %v4469
    %v4577 = vpop.f32.mrf.mxu0
    %v4578 = vadd.f32 %v4558, %v4577
    %4579 = vdwg.mxu0
    %4580 = vmatpush.msra.mxu0 %v4519
    %4581 = vmatpush.msra.mxu0 %v4518
    %4582 = vmatpush.msra.mxu0 %v4517
    %4583 = vmatpush.msra.mxu0 %v4516
    %4584 = vmatpush.msra.mxu0 %v4515
    %4585 = vmatpush.msra.mxu0 %v4514
    %4586 = vmatpush.msra.mxu0 %v4513
    %4587 = vmatpush.msra.mxu0 %v4512
    %4588 = vmatpush.msra.mxu0 %v4511
    %4589 = vmatpush.msra.mxu0 %v4510
    %4590 = vmatpush.msra.mxu0 %v4509
    %4591 = vmatpush.msra.mxu0 %v4508
    %4592 = vmatpush.msra.mxu0 %v4507
    %4593 = vmatpush.msra.mxu0 %v4506
    %4594 = vmatpush.msra.mxu0 %v4505
    %4595 = vmatpush.msra.mxu0 %v4504
    %4596 = vmatmul.f32.gmra.mxu0 %v4470
    %v4597 = vpop.f32.mrf.mxu0
    %v4598 = vadd.f32 %v4578, %v4597
    %4599 = vdwg.mxu0
    %4600 = vmatpush.msra.mxu0 %v4535
    %4601 = vmatpush.msra.mxu0 %v4534
    %4602 = vmatpush.msra.mxu0 %v4533
    %4603 = vmatpush.msra.mxu0 %v4532
    %4604 = vmatpush.msra.mxu0 %v4531
    %4605 = vmatpush.msra.mxu0 %v4530
    %4606 = vmatpush.msra.mxu0 %v4529
    %4607 = vmatpush.msra.mxu0 %v4528
    %4608 = vmatpush.msra.mxu0 %v4527
    %4609 = vmatpush.msra.mxu0 %v4526
    %4610 = vmatpush.msra.mxu0 %v4525
    %4611 = vmatpush.msra.mxu0 %v4524
    %4612 = vmatpush.msra.mxu0 %v4523
    %4613 = vmatpush.msra.mxu0 %v4522
    %4614 = vmatpush.msra.mxu0 %v4521
    %4615 = vmatpush.msra.mxu0 %v4520
    %4616 = vmatmul.f32.gmra.mxu0 %v4471
    %v4617 = vpop.f32.mrf.mxu0
    %v4618 = vadd.f32 %v4598, %v4617
    %4619 = vdwg.mxu0
    %4620 = vst [vmem:[#allocation2] sm:$0x3] %v4618
    // Predicated region
    $region22: #{flappy_bird_cnn.7} parent=1 // pred_check
      _
    $region23: #{flappy_bird_cnn.7} parent=1 // pred_check_branch
      %4622 = sbr.rel (0) target = $region25
    $region24: #{flappy_bird_cnn.7} parent=1 // pred_region
      %4624 = vsyncadd [#allocation3], 0
      %s4626 = sshll.u32 [#allocation2], 4
      %s4627 = int_to_ptr.vmem [resolvable:$true] %s4626
      %s4628 = sshll.u32 %s5, 4
      %s4629 = int_to_ptr.hbm [resolvable:$true] %s4628
      %4631 = dma.vmem_to_hbm [thread:$0]  %s4627, 32, %s4629, [#allocation3]
    $region25: #{flappy_bird_cnn.7} parent=1 // pred_fallthru
      _
    // Predicated region
    $region26: #{flappy_bird_cnn.7} parent=1 // pred_check
      _
    $region27: #{flappy_bird_cnn.7} parent=1 // pred_check_branch
      %4633 = sbr.rel (0) target = $region29
    $region28: #{flappy_bird_cnn.7} parent=1 // pred_region
      %4635 = dma.done [#allocation3], 32
    $region29: #{flappy_bird_cnn.7} parent=1 // pred_fallthru
      _
    %4636 = vsyncpa [#allocation3], 1

</llo_original>
